<compile_context>
chip_gen: v7x
topology: tpu7x:2x2x1
jax: 0.10.0
libtpu: 0.0.40
codegen_flags: <defaults>
</compile_context>

<pallas_src>
from math import floor

import numpy as np
import jax
import jax.numpy as jnp
from jax.experimental import pallas as pl
from jax.experimental.pallas import tpu as pltpu

BN_EPS = 1e-5


# ----------------------------------------------------------------------------
# parameter helpers
# ----------------------------------------------------------------------------
def fold_bn(lin_bias, gamma, beta, mean, var):
    scale = gamma / jnp.sqrt(var + BN_EPS)
    bias = (lin_bias - mean) * scale + beta
    return scale.reshape(1, -1), bias.reshape(1, -1)


def init_conv_bn(key, cin, cout):
    """Random Conv(k=1)+BN(eval) params. Returns W (cout, cin), scale/bias (1, cout)."""
    k = jax.random.split(key, 6)
    w = 0.1 * jax.random.normal(k[0], (cout, cin), jnp.float32)
    b = 0.1 * jax.random.normal(k[1], (cout,), jnp.float32)
    gamma = 1.0 + 0.1 * jax.random.normal(k[2], (cout,), jnp.float32)
    beta = 0.1 * jax.random.normal(k[3], (cout,), jnp.float32)
    mean = 0.1 * jax.random.normal(k[4], (cout,), jnp.float32)
    var = jnp.abs(jax.random.normal(k[5], (cout,), jnp.float32)) + 0.5
    scale, bias = fold_bn(b, gamma, beta, mean, var)
    return w, scale, bias


# ----------------------------------------------------------------------------
# model
# ----------------------------------------------------------------------------
class FixationNetWithoutClusterPallas:
    def __init__(self, key, gazeSeqSize, headSeqSize, objectSeqSize, saliencySize):
        self.gazeSeqSize = gazeSeqSize
        self.headSeqSize = headSeqSize
        self.objectSeqSize = objectSeqSize
        self.saliencySize = saliencySize

        self.gazeFeatureNum = 2
        self.gazeSeqLength = gazeSeqSize // self.gazeFeatureNum
        self.headFeatureNum = 2
        self.headSeqLength = headSeqSize // self.headFeatureNum
        self.objectFeatureNum = 12
        self.objectSeqLength = objectSeqSize // self.objectFeatureNum
        self.saliencyWidth = 24
        self.saliencyNum = saliencySize // (self.saliencyWidth * self.saliencyWidth)

        # feature sizes (kernel size 1, pooling rate 2) — mirrors the torch __init__
        self.gazeFeat1 = floor((self.gazeSeqLength - 1 + 1) / 2)
        self.headFeat1 = floor((self.headSeqLength - 1 + 1) / 2)
        self.objFeat1 = floor((self.objectSeqLength - 1 + 1) / 2)
        self.objFeat2 = floor((self.objFeat1 - 1 + 1) / 2)
        self.salFeat = floor((self.saliencyWidth - 1 + 0 + 1) / 2)
        self.prdIn = (self.gazeFeat1 * 32 + self.headFeat1 * 64 +
                      self.objFeat2 * 32 + self.salFeat * self.salFeat * 8)

        keys = jax.random.split(key, 6)
        gw, self.gaze_s, self.gaze_b = init_conv_bn(keys[0], self.gazeFeatureNum, 32)
        hw, self.head_s, self.head_b = init_conv_bn(keys[1], self.headFeatureNum, 64)
        o1w, self.obj1_s, self.obj1_b = init_conv_bn(keys[2], self.objectFeatureNum, 64)
        o2w, self.obj2_s, self.obj2_b = init_conv_bn(keys[3], 64, 32)
        sw, self.sal_s, self.sal_b = init_conv_bn(keys[4], self.saliencyNum, 8)

        # layouts used inside the kernel
        self.gaze_wT = gw.T          # (Cin, Cout) for row-broadcast FMA
        self.head_wT = hw.T
        self.obj1_wT = o1w.T
        self.obj2_wT = o2w.T         # (64, 32) for the MXU matmul
        self.sal_w = sw              # (Cout=8, Cin) for per-channel FMA

        kf = jax.random.split(keys[5], 8)
        w1 = 0.05 * jax.random.normal(kf[0], (128, self.prdIn), jnp.float32)
        b1 = 0.05 * jax.random.normal(kf[1], (128,), jnp.float32)
        g1 = 1.0 + 0.05 * jax.random.normal(kf[2], (128,), jnp.float32)
        be1 = 0.05 * jax.random.normal(kf[3], (128,), jnp.float32)
        m1 = 0.05 * jax.random.normal(kf[4], (128,), jnp.float32)
        v1 = jnp.abs(jax.random.normal(kf[5], (128,), jnp.float32)) + 0.5
        w2 = 0.05 * jax.random.normal(kf[6], (2, 128), jnp.float32)
        b2 = 0.05 * jax.random.normal(kf[7], (2,), jnp.float32)

        # Permute W1's columns from torch's channel-major flatten order into the
        # kernel's position-major, lane-dense feature order -> no in-kernel
        # transposes needed; result identical to torch for the same weights.
        perm = self._feature_perm()
        self.w1t = jnp.asarray(w1)[:, perm].T            # (prdIn, 128)
        self.s1, self.b1 = fold_bn(b1, g1, be1, m1, v1)  # (1, 128)
        self.w2t = w2.T                                  # (128, 2)
        self.b2 = b2.reshape(1, -1)

        self._kernel = self._build_kernel()

    # ------------------------------------------------------------------ utils
    def _feature_perm(self):
        """kernel feature j -> torch (channel-major) feature index."""
        idx = []
        off = 0
        for (P, C) in ((self.gazeFeat1, 32), (self.headFeat1, 64), (self.objFeat2, 32)):
            for p in range(P):
                for c in range(C):
                    idx.append(off + c * P + p)
            off += P * C
        PP = self.salFeat * self.salFeat
        for c in range(8):                      # saliency block: same order as torch
            for p in range(PP):
                idx.append(off + c * PP + p)
        return np.asarray(idx, dtype=np.int64)

    # ----------------------------------------------------------------- kernel
    def _build_kernel(self):
        Lg, Cg = self.gazeSeqLength, self.gazeFeatureNum
        Lh, Ch = self.headSeqLength, self.headFeatureNum
        Lo, Co = self.objectSeqLength, self.objectFeatureNum
        Cs = self.saliencyNum
        PP = self.salFeat * self.salFeat
        off_g = 0
        off_h = off_g + Lg * Cg
        off_o = off_h + Lh * Ch

        def seq_conv_bn_relu(x_ref, base, cin, l, w_v, s_v, b_v):
            # one sequence position: Cin-term broadcast-FMA chain (VPU), folded BN, ReLU
            col = base + l * cin
            acc = x_ref[:, col:col + 1] * w_v[0:1, :]
            for ci in range(1, cin):
                acc = acc + x_ref[:, col + ci:col + ci + 1] * w_v[ci:ci + 1, :]
            return jnp.maximum(acc * s_v + b_v, 0.0)

        def kernel(xseq_ref, salq_ref,
                   gw_ref, gs_ref, gb_ref,
                   hw_ref, hs_ref, hb_ref,
                   o1w_ref, o1s_ref, o1b_ref,
                   o2w_ref, o2s_ref, o2b_ref,
                   sw_ref, ss_ref, sb_ref,
                   w1t_ref, s1_ref, b1_ref, w2t_ref, b2_ref,
                   o_ref, feat_ref):
            feats = []

            # ---- gaze / head branches: Conv1d(k=1) + BN + ReLU + MaxPool1d(2) ----
            for (base, L, C, w_ref, s_ref, b_ref) in (
                    (off_g, Lg, Cg, gw_ref, gs_ref, gb_ref),
                    (off_h, Lh, Ch, hw_ref, hs_ref, hb_ref)):
                w_v, s_v, b_v = w_ref[...], s_ref[...], b_ref[...]
                ys = [seq_conv_bn_relu(xseq_ref, base, C, l, w_v, s_v, b_v)
                      for l in range(L)]
                for p in range(L // 2):
                    feats.append(jnp.maximum(ys[2 * p], ys[2 * p + 1]))

            # ---- object branch: two Conv1d(k=1)+BN+ReLU+MaxPool1d(2) stages ----
            w_v, s_v, b_v = o1w_ref[...], o1s_ref[...], o1b_ref[...]
            ys = [seq_conv_bn_relu(xseq_ref, off_o, Co, l, w_v, s_v, b_v)
                  for l in range(Lo)]
            p1 = [jnp.maximum(ys[2 * p], ys[2 * p + 1]) for p in range(Lo // 2)]
            ow2, os2, ob2 = o2w_ref[...], o2s_ref[...], o2b_ref[...]
            zs = [jnp.maximum(
                      jnp.dot(v, ow2, preferred_element_type=jnp.float32) * os2 + ob2,
                      0.0)
                  for v in p1]
            for p in range(len(zs) // 2):
                feats.append(jnp.maximum(zs[2 * p], zs[2 * p + 1]))

            # ---- saliency branch: Conv2d(k=1) + BN + ReLU + MaxPool2d(2) ----
            # salq_ref columns: (quadrant*Cs + channel)*PP + pooled_pixel
            for co in range(8):
                sc = ss_ref[0:1, co:co + 1]
                bi = sb_ref[0:1, co:co + 1]
                pooled = None
                for q in range(4):
                    acc = sw_ref[co:co + 1, 0:1] * \
                        salq_ref[:, (q * Cs) * PP:(q * Cs + 1) * PP]
                    for c in range(1, Cs):
                        acc = acc + sw_ref[co:co + 1, c:c + 1] * \
                            salq_ref[:, (q * Cs + c) * PP:(q * Cs + c + 1) * PP]
                    y = jnp.maximum(acc * sc + bi, 0.0)
                    pooled = y if pooled is None else jnp.maximum(pooled, y)
                feats.append(pooled)            # (B, PP), torch order c*PP + p

            # Dropout layers are identity at inference.
            # Write features lane-dense into the (B, prdIn) scratch.
            off = 0
            for piece in feats:
                w = piece.shape[1]
                feat_ref[:, off:off + w] = piece
                off += w
            full = feat_ref[...]                 # (B, prdIn)

            # ---- PrdFC: Linear -> folded BN(eval) -> ReLU -> Linear ----
            h = jnp.dot(full, w1t_ref[...], preferred_element_type=jnp.float32)
            h = jnp.maximum(h * s1_ref[...] + b1_ref[...], 0.0)
            out = jnp.dot(h, w2t_ref[...], preferred_element_type=jnp.float32) + b2_ref[...]
            o_ref[...] = out.astype(o_ref.dtype)

        return kernel

    # ---------------------------------------------------------------- forward
    def __call__(self, x):
        B = x.shape[0]
        seq_total = self.gazeSeqSize + self.headSeqSize + self.objectSeqSize
        x_seq = x[:, :seq_total]

        # De-interleave the 2x2 pooling windows of the saliency maps once,
        # outside the kernel (tiny XLA op on the raw input).
        sal = x[:, seq_total:].reshape(
            B, self.saliencyNum, self.saliencyWidth, self.saliencyWidth)
        quads = [sal[:, :, di::2, dj::2].reshape(B, self.saliencyNum, -1)
                 for (di, dj) in ((0, 0), (0, 1), (1, 0), (1, 1))]
        sal_quads = jnp.stack(quads, axis=1).reshape(B, -1)   # (B, 4*Cs*PP)

        args = (x_seq, sal_quads,
                self.gaze_wT, self.gaze_s, self.gaze_b,
                self.head_wT, self.head_s, self.head_b,
                self.obj1_wT, self.obj1_s, self.obj1_b,
                self.obj2_wT, self.obj2_s, self.obj2_b,
                self.sal_w, self.sal_s, self.sal_b,
                self.w1t, self.s1, self.b1, self.w2t, self.b2)
        in_specs = [pl.BlockSpec(a.shape, (lambda i, nd=a.ndim: (0,) * nd))
                    for a in args]

        # Single grid point: whole batch + all weights resident in VMEM.
        # NOTE(v7x): with larger batches, add a leading "parallel" batch axis to
        # use the second TensorCore; at these sizes one core is the right call.
        return pl.pallas_call(
            self._kernel,
            out_shape=jax.ShapeDtypeStruct((B, 2), jnp.float32),
            grid=(1,),
            in_specs=in_specs,
            out_specs=pl.BlockSpec((B, 2), lambda i: (0, 0)),
            scratch_shapes=[pltpu.VMEM((B, self.prdIn), jnp.float32)],
            compiler_params=pltpu.CompilerParams(
                dimension_semantics=("arbitrary",)),
        )(*args)


# ----------------------------------------------------------------------------
if __name__ == "__main__":
    key = jax.random.PRNGKey(0)
    kp, kx = jax.random.split(key)

    gazeSeqSize = 16      # -> seq length 8 (2 features)
    headSeqSize = 16      # -> seq length 8 (2 features)
    objectSeqSize = 96    # -> seq length 8 (12 features)
    saliencySize = 1152   # -> 2 saliency maps of 24x24
    batch = 4

    model = FixationNetWithoutClusterPallas(
        kp, gazeSeqSize, headSeqSize, objectSeqSize, saliencySize)

    total = gazeSeqSize + headSeqSize + objectSeqSize + saliencySize
    x = jax.random.normal(kx, (batch, total), jnp.float32)

    out = jax.jit(model.__call__)(x)
    out = jax.block_until_ready(out)

    assert out.shape == (batch, 2), out.shape
    assert bool(jnp.all(jnp.isfinite(out)))
    print("KERNEL_OK")
</pallas_src>

<mosaic_0001>
module attributes {stable_mosaic.version = 11 : i64} {
  func.func @kernel(%arg0: i32, %arg1: memref<4x128xf32, #tpu.memory_space<vmem>>, %arg2: memref<4x1152xf32, #tpu.memory_space<vmem>>, %arg3: memref<2x32xf32, #tpu.memory_space<vmem>>, %arg4: memref<1x32xf32, #tpu.memory_space<vmem>>, %arg5: memref<1x32xf32, #tpu.memory_space<vmem>>, %arg6: memref<2x64xf32, #tpu.memory_space<vmem>>, %arg7: memref<1x64xf32, #tpu.memory_space<vmem>>, %arg8: memref<1x64xf32, #tpu.memory_space<vmem>>, %arg9: memref<12x64xf32, #tpu.memory_space<vmem>>, %arg10: memref<1x64xf32, #tpu.memory_space<vmem>>, %arg11: memref<1x64xf32, #tpu.memory_space<vmem>>, %arg12: memref<64x32xf32, #tpu.memory_space<vmem>>, %arg13: memref<1x32xf32, #tpu.memory_space<vmem>>, %arg14: memref<1x32xf32, #tpu.memory_space<vmem>>, %arg15: memref<8x2xf32, #tpu.memory_space<vmem>>, %arg16: memref<1x8xf32, #tpu.memory_space<vmem>>, %arg17: memref<1x8xf32, #tpu.memory_space<vmem>>, %arg18: memref<1600x128xf32, #tpu.memory_space<vmem>>, %arg19: memref<1x128xf32, #tpu.memory_space<vmem>>, %arg20: memref<1x128xf32, #tpu.memory_space<vmem>>, %arg21: memref<128x2xf32, #tpu.memory_space<vmem>>, %arg22: memref<1x2xf32, #tpu.memory_space<vmem>>, %arg23: memref<4x2xf32, #tpu.memory_space<vmem>>, %arg24: memref<4x1600xf32, #tpu.memory_space<vmem>>) attributes {dimension_semantics = [#tpu.dimension_semantics<arbitrary>], iteration_bounds = array<i64: 1>, scalar_prefetch = 0 : i64, scratch_operands = 1 : i64, tpu.core_type = #tpu.core_type<tc>, window_params = [{pipeline_mode = #tpu.pipeline_mode<synchronous>, transform_indices = @transform_0, window_bounds = array<i64: 4, 128>}, {pipeline_mode = #tpu.pipeline_mode<synchronous>, transform_indices = @transform_1, window_bounds = array<i64: 4, 1152>}, {pipeline_mode = #tpu.pipeline_mode<synchronous>, transform_indices = @transform_2, window_bounds = array<i64: 2, 32>}, {pipeline_mode = #tpu.pipeline_mode<synchronous>, transform_indices = @transform_3, window_bounds = array<i64: 1, 32>}, {pipeline_mode = #tpu.pipeline_mode<synchronous>, transform_indices = @transform_4, window_bounds = array<i64: 1, 32>}, {pipeline_mode = #tpu.pipeline_mode<synchronous>, transform_indices = @transform_5, window_bounds = array<i64: 2, 64>}, {pipeline_mode = #tpu.pipeline_mode<synchronous>, transform_indices = @transform_6, window_bounds = array<i64: 1, 64>}, {pipeline_mode = #tpu.pipeline_mode<synchronous>, transform_indices = @transform_7, window_bounds = array<i64: 1, 64>}, {pipeline_mode = #tpu.pipeline_mode<synchronous>, transform_indices = @transform_8, window_bounds = array<i64: 12, 64>}, {pipeline_mode = #tpu.pipeline_mode<synchronous>, transform_indices = @transform_9, window_bounds = array<i64: 1, 64>}, {pipeline_mode = #tpu.pipeline_mode<synchronous>, transform_indices = @transform_10, window_bounds = array<i64: 1, 64>}, {pipeline_mode = #tpu.pipeline_mode<synchronous>, transform_indices = @transform_11, window_bounds = array<i64: 64, 32>}, {pipeline_mode = #tpu.pipeline_mode<synchronous>, transform_indices = @transform_12, window_bounds = array<i64: 1, 32>}, {pipeline_mode = #tpu.pipeline_mode<synchronous>, transform_indices = @transform_13, window_bounds = array<i64: 1, 32>}, {pipeline_mode = #tpu.pipeline_mode<synchronous>, transform_indices = @transform_14, window_bounds = array<i64: 8, 2>}, {pipeline_mode = #tpu.pipeline_mode<synchronous>, transform_indices = @transform_15, window_bounds = array<i64: 1, 8>}, {pipeline_mode = #tpu.pipeline_mode<synchronous>, transform_indices = @transform_16, window_bounds = array<i64: 1, 8>}, {pipeline_mode = #tpu.pipeline_mode<synchronous>, transform_indices = @transform_17, window_bounds = array<i64: 1600, 128>}, {pipeline_mode = #tpu.pipeline_mode<synchronous>, transform_indices = @transform_18, window_bounds = array<i64: 1, 128>}, {pipeline_mode = #tpu.pipeline_mode<synchronous>, transform_indices = @transform_19, window_bounds = array<i64: 1, 128>}, {pipeline_mode = #tpu.pipeline_mode<synchronous>, transform_indices = @transform_20, window_bounds = array<i64: 128, 2>}, {pipeline_mode = #tpu.pipeline_mode<synchronous>, transform_indices = @transform_21, window_bounds = array<i64: 1, 2>}, {pipeline_mode = #tpu.pipeline_mode<synchronous>, transform_indices = @transform_22, window_bounds = array<i64: 4, 2>}]} {
    %c0 = arith.constant 0 : index
    %c0_0 = arith.constant 0 : index
    %0 = vector.load %arg3[%c0, %c0_0] : memref<2x32xf32, #tpu.memory_space<vmem>>, vector<2x32xf32>
    %c0_1 = arith.constant 0 : index
    %c0_2 = arith.constant 0 : index
    %1 = vector.load %arg4[%c0_1, %c0_2] : memref<1x32xf32, #tpu.memory_space<vmem>>, vector<1x32xf32>
    %c0_3 = arith.constant 0 : index
    %c0_4 = arith.constant 0 : index
    %2 = vector.load %arg5[%c0_3, %c0_4] : memref<1x32xf32, #tpu.memory_space<vmem>>, vector<1x32xf32>
    %c0_5 = arith.constant 0 : index
    %c0_6 = arith.constant 0 : index
    %3 = vector.load %arg1[%c0_5, %c0_6] : memref<4x128xf32, #tpu.memory_space<vmem>>, vector<4x1xf32>
    %4 = vector.extract_strided_slice %0 {offsets = [0, 0], sizes = [1, 32], strides = [1, 1]} : vector<2x32xf32> to vector<1x32xf32>
    %5 = vector.broadcast %3 : vector<4x1xf32> to vector<4x32xf32>
    %6 = vector.broadcast %4 : vector<1x32xf32> to vector<4x32xf32>
    %7 = arith.mulf %5, %6 : vector<4x32xf32>
    %c0_7 = arith.constant 0 : index
    %c1 = arith.constant 1 : index
    %8 = vector.load %arg1[%c0_7, %c1] : memref<4x128xf32, #tpu.memory_space<vmem>>, vector<4x1xf32>
    %9 = vector.extract_strided_slice %0 {offsets = [1, 0], sizes = [1, 32], strides = [1, 1]} : vector<2x32xf32> to vector<1x32xf32>
    %10 = vector.broadcast %8 : vector<4x1xf32> to vector<4x32xf32>
    %11 = vector.broadcast %9 : vector<1x32xf32> to vector<4x32xf32>
    %12 = arith.mulf %10, %11 : vector<4x32xf32>
    %13 = arith.addf %7, %12 : vector<4x32xf32>
    %14 = vector.broadcast %1 : vector<1x32xf32> to vector<4x32xf32>
    %15 = arith.mulf %13, %14 : vector<4x32xf32>
    %16 = vector.broadcast %2 : vector<1x32xf32> to vector<4x32xf32>
    %17 = arith.addf %15, %16 : vector<4x32xf32>
    %cst = arith.constant 0.000000e+00 : f32
    %18 = vector.broadcast %cst : f32 to vector<4x32xf32>
    %19 = arith.maximumf %17, %18 : vector<4x32xf32>
    %c0_8 = arith.constant 0 : index
    %c2 = arith.constant 2 : index
    %20 = vector.load %arg1[%c0_8, %c2] : memref<4x128xf32, #tpu.memory_space<vmem>>, vector<4x1xf32>
    %21 = vector.extract_strided_slice %0 {offsets = [0, 0], sizes = [1, 32], strides = [1, 1]} : vector<2x32xf32> to vector<1x32xf32>
    %22 = vector.broadcast %20 : vector<4x1xf32> to vector<4x32xf32>
    %23 = vector.broadcast %21 : vector<1x32xf32> to vector<4x32xf32>
    %24 = arith.mulf %22, %23 : vector<4x32xf32>
    %c0_9 = arith.constant 0 : index
    %c3 = arith.constant 3 : index
    %25 = vector.load %arg1[%c0_9, %c3] : memref<4x128xf32, #tpu.memory_space<vmem>>, vector<4x1xf32>
    %26 = vector.extract_strided_slice %0 {offsets = [1, 0], sizes = [1, 32], strides = [1, 1]} : vector<2x32xf32> to vector<1x32xf32>
    %27 = vector.broadcast %25 : vector<4x1xf32> to vector<4x32xf32>
    %28 = vector.broadcast %26 : vector<1x32xf32> to vector<4x32xf32>
    %29 = arith.mulf %27, %28 : vector<4x32xf32>
    %30 = arith.addf %24, %29 : vector<4x32xf32>
    %31 = vector.broadcast %1 : vector<1x32xf32> to vector<4x32xf32>
    %32 = arith.mulf %30, %31 : vector<4x32xf32>
    %33 = vector.broadcast %2 : vector<1x32xf32> to vector<4x32xf32>
    %34 = arith.addf %32, %33 : vector<4x32xf32>
    %cst_10 = arith.constant 0.000000e+00 : f32
    %35 = vector.broadcast %cst_10 : f32 to vector<4x32xf32>
    %36 = arith.maximumf %34, %35 : vector<4x32xf32>
    %c0_11 = arith.constant 0 : index
    %c4 = arith.constant 4 : index
    %37 = vector.load %arg1[%c0_11, %c4] : memref<4x128xf32, #tpu.memory_space<vmem>>, vector<4x1xf32>
    %38 = vector.extract_strided_slice %0 {offsets = [0, 0], sizes = [1, 32], strides = [1, 1]} : vector<2x32xf32> to vector<1x32xf32>
    %39 = vector.broadcast %37 : vector<4x1xf32> to vector<4x32xf32>
    %40 = vector.broadcast %38 : vector<1x32xf32> to vector<4x32xf32>
    %41 = arith.mulf %39, %40 : vector<4x32xf32>
    %c0_12 = arith.constant 0 : index
    %c5 = arith.constant 5 : index
    %42 = vector.load %arg1[%c0_12, %c5] : memref<4x128xf32, #tpu.memory_space<vmem>>, vector<4x1xf32>
    %43 = vector.extract_strided_slice %0 {offsets = [1, 0], sizes = [1, 32], strides = [1, 1]} : vector<2x32xf32> to vector<1x32xf32>
    %44 = vector.broadcast %42 : vector<4x1xf32> to vector<4x32xf32>
    %45 = vector.broadcast %43 : vector<1x32xf32> to vector<4x32xf32>
    %46 = arith.mulf %44, %45 : vector<4x32xf32>
    %47 = arith.addf %41, %46 : vector<4x32xf32>
    %48 = vector.broadcast %1 : vector<1x32xf32> to vector<4x32xf32>
    %49 = arith.mulf %47, %48 : vector<4x32xf32>
    %50 = vector.broadcast %2 : vector<1x32xf32> to vector<4x32xf32>
    %51 = arith.addf %49, %50 : vector<4x32xf32>
    %cst_13 = arith.constant 0.000000e+00 : f32
    %52 = vector.broadcast %cst_13 : f32 to vector<4x32xf32>
    %53 = arith.maximumf %51, %52 : vector<4x32xf32>
    %c0_14 = arith.constant 0 : index
    %c6 = arith.constant 6 : index
    %54 = vector.load %arg1[%c0_14, %c6] : memref<4x128xf32, #tpu.memory_space<vmem>>, vector<4x1xf32>
    %55 = vector.extract_strided_slice %0 {offsets = [0, 0], sizes = [1, 32], strides = [1, 1]} : vector<2x32xf32> to vector<1x32xf32>
    %56 = vector.broadcast %54 : vector<4x1xf32> to vector<4x32xf32>
    %57 = vector.broadcast %55 : vector<1x32xf32> to vector<4x32xf32>
    %58 = arith.mulf %56, %57 : vector<4x32xf32>
    %c0_15 = arith.constant 0 : index
    %c7 = arith.constant 7 : index
    %59 = vector.load %arg1[%c0_15, %c7] : memref<4x128xf32, #tpu.memory_space<vmem>>, vector<4x1xf32>
    %60 = vector.extract_strided_slice %0 {offsets = [1, 0], sizes = [1, 32], strides = [1, 1]} : vector<2x32xf32> to vector<1x32xf32>
    %61 = vector.broadcast %59 : vector<4x1xf32> to vector<4x32xf32>
    %62 = vector.broadcast %60 : vector<1x32xf32> to vector<4x32xf32>
    %63 = arith.mulf %61, %62 : vector<4x32xf32>
    %64 = arith.addf %58, %63 : vector<4x32xf32>
    %65 = vector.broadcast %1 : vector<1x32xf32> to vector<4x32xf32>
    %66 = arith.mulf %64, %65 : vector<4x32xf32>
    %67 = vector.broadcast %2 : vector<1x32xf32> to vector<4x32xf32>
    %68 = arith.addf %66, %67 : vector<4x32xf32>
    %cst_16 = arith.constant 0.000000e+00 : f32
    %69 = vector.broadcast %cst_16 : f32 to vector<4x32xf32>
    %70 = arith.maximumf %68, %69 : vector<4x32xf32>
    %c0_17 = arith.constant 0 : index
    %c8 = arith.constant 8 : index
    %71 = vector.load %arg1[%c0_17, %c8] : memref<4x128xf32, #tpu.memory_space<vmem>>, vector<4x1xf32>
    %72 = vector.extract_strided_slice %0 {offsets = [0, 0], sizes = [1, 32], strides = [1, 1]} : vector<2x32xf32> to vector<1x32xf32>
    %73 = vector.broadcast %71 : vector<4x1xf32> to vector<4x32xf32>
    %74 = vector.broadcast %72 : vector<1x32xf32> to vector<4x32xf32>
    %75 = arith.mulf %73, %74 : vector<4x32xf32>
    %c0_18 = arith.constant 0 : index
    %c9 = arith.constant 9 : index
    %76 = vector.load %arg1[%c0_18, %c9] : memref<4x128xf32, #tpu.memory_space<vmem>>, vector<4x1xf32>
    %77 = vector.extract_strided_slice %0 {offsets = [1, 0], sizes = [1, 32], strides = [1, 1]} : vector<2x32xf32> to vector<1x32xf32>
    %78 = vector.broadcast %76 : vector<4x1xf32> to vector<4x32xf32>
    %79 = vector.broadcast %77 : vector<1x32xf32> to vector<4x32xf32>
    %80 = arith.mulf %78, %79 : vector<4x32xf32>
    %81 = arith.addf %75, %80 : vector<4x32xf32>
    %82 = vector.broadcast %1 : vector<1x32xf32> to vector<4x32xf32>
    %83 = arith.mulf %81, %82 : vector<4x32xf32>
    %84 = vector.broadcast %2 : vector<1x32xf32> to vector<4x32xf32>
    %85 = arith.addf %83, %84 : vector<4x32xf32>
    %cst_19 = arith.constant 0.000000e+00 : f32
    %86 = vector.broadcast %cst_19 : f32 to vector<4x32xf32>
    %87 = arith.maximumf %85, %86 : vector<4x32xf32>
    %c0_20 = arith.constant 0 : index
    %c10 = arith.constant 10 : index
    %88 = vector.load %arg1[%c0_20, %c10] : memref<4x128xf32, #tpu.memory_space<vmem>>, vector<4x1xf32>
    %89 = vector.extract_strided_slice %0 {offsets = [0, 0], sizes = [1, 32], strides = [1, 1]} : vector<2x32xf32> to vector<1x32xf32>
    %90 = vector.broadcast %88 : vector<4x1xf32> to vector<4x32xf32>
    %91 = vector.broadcast %89 : vector<1x32xf32> to vector<4x32xf32>
    %92 = arith.mulf %90, %91 : vector<4x32xf32>
    %c0_21 = arith.constant 0 : index
    %c11 = arith.constant 11 : index
    %93 = vector.load %arg1[%c0_21, %c11] : memref<4x128xf32, #tpu.memory_space<vmem>>, vector<4x1xf32>
    %94 = vector.extract_strided_slice %0 {offsets = [1, 0], sizes = [1, 32], strides = [1, 1]} : vector<2x32xf32> to vector<1x32xf32>
    %95 = vector.broadcast %93 : vector<4x1xf32> to vector<4x32xf32>
    %96 = vector.broadcast %94 : vector<1x32xf32> to vector<4x32xf32>
    %97 = arith.mulf %95, %96 : vector<4x32xf32>
    %98 = arith.addf %92, %97 : vector<4x32xf32>
    %99 = vector.broadcast %1 : vector<1x32xf32> to vector<4x32xf32>
    %100 = arith.mulf %98, %99 : vector<4x32xf32>
    %101 = vector.broadcast %2 : vector<1x32xf32> to vector<4x32xf32>
    %102 = arith.addf %100, %101 : vector<4x32xf32>
    %cst_22 = arith.constant 0.000000e+00 : f32
    %103 = vector.broadcast %cst_22 : f32 to vector<4x32xf32>
    %104 = arith.maximumf %102, %103 : vector<4x32xf32>
    %c0_23 = arith.constant 0 : index
    %c12 = arith.constant 12 : index
    %105 = vector.load %arg1[%c0_23, %c12] : memref<4x128xf32, #tpu.memory_space<vmem>>, vector<4x1xf32>
    %106 = vector.extract_strided_slice %0 {offsets = [0, 0], sizes = [1, 32], strides = [1, 1]} : vector<2x32xf32> to vector<1x32xf32>
    %107 = vector.broadcast %105 : vector<4x1xf32> to vector<4x32xf32>
    %108 = vector.broadcast %106 : vector<1x32xf32> to vector<4x32xf32>
    %109 = arith.mulf %107, %108 : vector<4x32xf32>
    %c0_24 = arith.constant 0 : index
    %c13 = arith.constant 13 : index
    %110 = vector.load %arg1[%c0_24, %c13] : memref<4x128xf32, #tpu.memory_space<vmem>>, vector<4x1xf32>
    %111 = vector.extract_strided_slice %0 {offsets = [1, 0], sizes = [1, 32], strides = [1, 1]} : vector<2x32xf32> to vector<1x32xf32>
    %112 = vector.broadcast %110 : vector<4x1xf32> to vector<4x32xf32>
    %113 = vector.broadcast %111 : vector<1x32xf32> to vector<4x32xf32>
    %114 = arith.mulf %112, %113 : vector<4x32xf32>
    %115 = arith.addf %109, %114 : vector<4x32xf32>
    %116 = vector.broadcast %1 : vector<1x32xf32> to vector<4x32xf32>
    %117 = arith.mulf %115, %116 : vector<4x32xf32>
    %118 = vector.broadcast %2 : vector<1x32xf32> to vector<4x32xf32>
    %119 = arith.addf %117, %118 : vector<4x32xf32>
    %cst_25 = arith.constant 0.000000e+00 : f32
    %120 = vector.broadcast %cst_25 : f32 to vector<4x32xf32>
    %121 = arith.maximumf %119, %120 : vector<4x32xf32>
    %c0_26 = arith.constant 0 : index
    %c14 = arith.constant 14 : index
    %122 = vector.load %arg1[%c0_26, %c14] : memref<4x128xf32, #tpu.memory_space<vmem>>, vector<4x1xf32>
    %123 = vector.extract_strided_slice %0 {offsets = [0, 0], sizes = [1, 32], strides = [1, 1]} : vector<2x32xf32> to vector<1x32xf32>
    %124 = vector.broadcast %122 : vector<4x1xf32> to vector<4x32xf32>
    %125 = vector.broadcast %123 : vector<1x32xf32> to vector<4x32xf32>
    %126 = arith.mulf %124, %125 : vector<4x32xf32>
    %c0_27 = arith.constant 0 : index
    %c15 = arith.constant 15 : index
    %127 = vector.load %arg1[%c0_27, %c15] : memref<4x128xf32, #tpu.memory_space<vmem>>, vector<4x1xf32>
    %128 = vector.extract_strided_slice %0 {offsets = [1, 0], sizes = [1, 32], strides = [1, 1]} : vector<2x32xf32> to vector<1x32xf32>
    %129 = vector.broadcast %127 : vector<4x1xf32> to vector<4x32xf32>
    %130 = vector.broadcast %128 : vector<1x32xf32> to vector<4x32xf32>
    %131 = arith.mulf %129, %130 : vector<4x32xf32>
    %132 = arith.addf %126, %131 : vector<4x32xf32>
    %133 = vector.broadcast %1 : vector<1x32xf32> to vector<4x32xf32>
    %134 = arith.mulf %132, %133 : vector<4x32xf32>
    %135 = vector.broadcast %2 : vector<1x32xf32> to vector<4x32xf32>
    %136 = arith.addf %134, %135 : vector<4x32xf32>
    %cst_28 = arith.constant 0.000000e+00 : f32
    %137 = vector.broadcast %cst_28 : f32 to vector<4x32xf32>
    %138 = arith.maximumf %136, %137 : vector<4x32xf32>
    %139 = arith.maximumf %19, %36 : vector<4x32xf32>
    %140 = arith.maximumf %53, %70 : vector<4x32xf32>
    %141 = arith.maximumf %87, %104 : vector<4x32xf32>
    %142 = arith.maximumf %121, %138 : vector<4x32xf32>
    %c0_29 = arith.constant 0 : index
    %c0_30 = arith.constant 0 : index
    %143 = vector.load %arg6[%c0_29, %c0_30] : memref<2x64xf32, #tpu.memory_space<vmem>>, vector<2x64xf32>
    %c0_31 = arith.constant 0 : index
    %c0_32 = arith.constant 0 : index
    %144 = vector.load %arg7[%c0_31, %c0_32] : memref<1x64xf32, #tpu.memory_space<vmem>>, vector<1x64xf32>
    %c0_33 = arith.constant 0 : index
    %c0_34 = arith.constant 0 : index
    %145 = vector.load %arg8[%c0_33, %c0_34] : memref<1x64xf32, #tpu.memory_space<vmem>>, vector<1x64xf32>
    %c0_35 = arith.constant 0 : index
    %c16 = arith.constant 16 : index
    %146 = vector.load %arg1[%c0_35, %c16] : memref<4x128xf32, #tpu.memory_space<vmem>>, vector<4x1xf32>
    %147 = vector.extract_strided_slice %143 {offsets = [0, 0], sizes = [1, 64], strides = [1, 1]} : vector<2x64xf32> to vector<1x64xf32>
    %148 = vector.broadcast %146 : vector<4x1xf32> to vector<4x64xf32>
    %149 = vector.broadcast %147 : vector<1x64xf32> to vector<4x64xf32>
    %150 = arith.mulf %148, %149 : vector<4x64xf32>
    %c0_36 = arith.constant 0 : index
    %c17 = arith.constant 17 : index
    %151 = vector.load %arg1[%c0_36, %c17] : memref<4x128xf32, #tpu.memory_space<vmem>>, vector<4x1xf32>
    %152 = vector.extract_strided_slice %143 {offsets = [1, 0], sizes = [1, 64], strides = [1, 1]} : vector<2x64xf32> to vector<1x64xf32>
    %153 = vector.broadcast %151 : vector<4x1xf32> to vector<4x64xf32>
    %154 = vector.broadcast %152 : vector<1x64xf32> to vector<4x64xf32>
    %155 = arith.mulf %153, %154 : vector<4x64xf32>
    %156 = arith.addf %150, %155 : vector<4x64xf32>
    %157 = vector.broadcast %144 : vector<1x64xf32> to vector<4x64xf32>
    %158 = arith.mulf %156, %157 : vector<4x64xf32>
    %159 = vector.broadcast %145 : vector<1x64xf32> to vector<4x64xf32>
    %160 = arith.addf %158, %159 : vector<4x64xf32>
    %cst_37 = arith.constant 0.000000e+00 : f32
    %161 = vector.broadcast %cst_37 : f32 to vector<4x64xf32>
    %162 = arith.maximumf %160, %161 : vector<4x64xf32>
    %c0_38 = arith.constant 0 : index
    %c18 = arith.constant 18 : index
    %163 = vector.load %arg1[%c0_38, %c18] : memref<4x128xf32, #tpu.memory_space<vmem>>, vector<4x1xf32>
    %164 = vector.extract_strided_slice %143 {offsets = [0, 0], sizes = [1, 64], strides = [1, 1]} : vector<2x64xf32> to vector<1x64xf32>
    %165 = vector.broadcast %163 : vector<4x1xf32> to vector<4x64xf32>
    %166 = vector.broadcast %164 : vector<1x64xf32> to vector<4x64xf32>
    %167 = arith.mulf %165, %166 : vector<4x64xf32>
    %c0_39 = arith.constant 0 : index
    %c19 = arith.constant 19 : index
    %168 = vector.load %arg1[%c0_39, %c19] : memref<4x128xf32, #tpu.memory_space<vmem>>, vector<4x1xf32>
    %169 = vector.extract_strided_slice %143 {offsets = [1, 0], sizes = [1, 64], strides = [1, 1]} : vector<2x64xf32> to vector<1x64xf32>
    %170 = vector.broadcast %168 : vector<4x1xf32> to vector<4x64xf32>
    %171 = vector.broadcast %169 : vector<1x64xf32> to vector<4x64xf32>
    %172 = arith.mulf %170, %171 : vector<4x64xf32>
    %173 = arith.addf %167, %172 : vector<4x64xf32>
    %174 = vector.broadcast %144 : vector<1x64xf32> to vector<4x64xf32>
    %175 = arith.mulf %173, %174 : vector<4x64xf32>
    %176 = vector.broadcast %145 : vector<1x64xf32> to vector<4x64xf32>
    %177 = arith.addf %175, %176 : vector<4x64xf32>
    %cst_40 = arith.constant 0.000000e+00 : f32
    %178 = vector.broadcast %cst_40 : f32 to vector<4x64xf32>
    %179 = arith.maximumf %177, %178 : vector<4x64xf32>
    %c0_41 = arith.constant 0 : index
    %c20 = arith.constant 20 : index
    %180 = vector.load %arg1[%c0_41, %c20] : memref<4x128xf32, #tpu.memory_space<vmem>>, vector<4x1xf32>
    %181 = vector.extract_strided_slice %143 {offsets = [0, 0], sizes = [1, 64], strides = [1, 1]} : vector<2x64xf32> to vector<1x64xf32>
    %182 = vector.broadcast %180 : vector<4x1xf32> to vector<4x64xf32>
    %183 = vector.broadcast %181 : vector<1x64xf32> to vector<4x64xf32>
    %184 = arith.mulf %182, %183 : vector<4x64xf32>
    %c0_42 = arith.constant 0 : index
    %c21 = arith.constant 21 : index
    %185 = vector.load %arg1[%c0_42, %c21] : memref<4x128xf32, #tpu.memory_space<vmem>>, vector<4x1xf32>
    %186 = vector.extract_strided_slice %143 {offsets = [1, 0], sizes = [1, 64], strides = [1, 1]} : vector<2x64xf32> to vector<1x64xf32>
    %187 = vector.broadcast %185 : vector<4x1xf32> to vector<4x64xf32>
    %188 = vector.broadcast %186 : vector<1x64xf32> to vector<4x64xf32>
    %189 = arith.mulf %187, %188 : vector<4x64xf32>
    %190 = arith.addf %184, %189 : vector<4x64xf32>
    %191 = vector.broadcast %144 : vector<1x64xf32> to vector<4x64xf32>
    %192 = arith.mulf %190, %191 : vector<4x64xf32>
    %193 = vector.broadcast %145 : vector<1x64xf32> to vector<4x64xf32>
    %194 = arith.addf %192, %193 : vector<4x64xf32>
    %cst_43 = arith.constant 0.000000e+00 : f32
    %195 = vector.broadcast %cst_43 : f32 to vector<4x64xf32>
    %196 = arith.maximumf %194, %195 : vector<4x64xf32>
    %c0_44 = arith.constant 0 : index
    %c22 = arith.constant 22 : index
    %197 = vector.load %arg1[%c0_44, %c22] : memref<4x128xf32, #tpu.memory_space<vmem>>, vector<4x1xf32>
    %198 = vector.extract_strided_slice %143 {offsets = [0, 0], sizes = [1, 64], strides = [1, 1]} : vector<2x64xf32> to vector<1x64xf32>
    %199 = vector.broadcast %197 : vector<4x1xf32> to vector<4x64xf32>
    %200 = vector.broadcast %198 : vector<1x64xf32> to vector<4x64xf32>
    %201 = arith.mulf %199, %200 : vector<4x64xf32>
    %c0_45 = arith.constant 0 : index
    %c23 = arith.constant 23 : index
    %202 = vector.load %arg1[%c0_45, %c23] : memref<4x128xf32, #tpu.memory_space<vmem>>, vector<4x1xf32>
    %203 = vector.extract_strided_slice %143 {offsets = [1, 0], sizes = [1, 64], strides = [1, 1]} : vector<2x64xf32> to vector<1x64xf32>
    %204 = vector.broadcast %202 : vector<4x1xf32> to vector<4x64xf32>
    %205 = vector.broadcast %203 : vector<1x64xf32> to vector<4x64xf32>
    %206 = arith.mulf %204, %205 : vector<4x64xf32>
    %207 = arith.addf %201, %206 : vector<4x64xf32>
    %208 = vector.broadcast %144 : vector<1x64xf32> to vector<4x64xf32>
    %209 = arith.mulf %207, %208 : vector<4x64xf32>
    %210 = vector.broadcast %145 : vector<1x64xf32> to vector<4x64xf32>
    %211 = arith.addf %209, %210 : vector<4x64xf32>
    %cst_46 = arith.constant 0.000000e+00 : f32
    %212 = vector.broadcast %cst_46 : f32 to vector<4x64xf32>
    %213 = arith.maximumf %211, %212 : vector<4x64xf32>
    %c0_47 = arith.constant 0 : index
    %c24 = arith.constant 24 : index
    %214 = vector.load %arg1[%c0_47, %c24] : memref<4x128xf32, #tpu.memory_space<vmem>>, vector<4x1xf32>
    %215 = vector.extract_strided_slice %143 {offsets = [0, 0], sizes = [1, 64], strides = [1, 1]} : vector<2x64xf32> to vector<1x64xf32>
    %216 = vector.broadcast %214 : vector<4x1xf32> to vector<4x64xf32>
    %217 = vector.broadcast %215 : vector<1x64xf32> to vector<4x64xf32>
    %218 = arith.mulf %216, %217 : vector<4x64xf32>
    %c0_48 = arith.constant 0 : index
    %c25 = arith.constant 25 : index
    %219 = vector.load %arg1[%c0_48, %c25] : memref<4x128xf32, #tpu.memory_space<vmem>>, vector<4x1xf32>
    %220 = vector.extract_strided_slice %143 {offsets = [1, 0], sizes = [1, 64], strides = [1, 1]} : vector<2x64xf32> to vector<1x64xf32>
    %221 = vector.broadcast %219 : vector<4x1xf32> to vector<4x64xf32>
    %222 = vector.broadcast %220 : vector<1x64xf32> to vector<4x64xf32>
    %223 = arith.mulf %221, %222 : vector<4x64xf32>
    %224 = arith.addf %218, %223 : vector<4x64xf32>
    %225 = vector.broadcast %144 : vector<1x64xf32> to vector<4x64xf32>
    %226 = arith.mulf %224, %225 : vector<4x64xf32>
    %227 = vector.broadcast %145 : vector<1x64xf32> to vector<4x64xf32>
    %228 = arith.addf %226, %227 : vector<4x64xf32>
    %cst_49 = arith.constant 0.000000e+00 : f32
    %229 = vector.broadcast %cst_49 : f32 to vector<4x64xf32>
    %230 = arith.maximumf %228, %229 : vector<4x64xf32>
    %c0_50 = arith.constant 0 : index
    %c26 = arith.constant 26 : index
    %231 = vector.load %arg1[%c0_50, %c26] : memref<4x128xf32, #tpu.memory_space<vmem>>, vector<4x1xf32>
    %232 = vector.extract_strided_slice %143 {offsets = [0, 0], sizes = [1, 64], strides = [1, 1]} : vector<2x64xf32> to vector<1x64xf32>
    %233 = vector.broadcast %231 : vector<4x1xf32> to vector<4x64xf32>
    %234 = vector.broadcast %232 : vector<1x64xf32> to vector<4x64xf32>
    %235 = arith.mulf %233, %234 : vector<4x64xf32>
    %c0_51 = arith.constant 0 : index
    %c27 = arith.constant 27 : index
    %236 = vector.load %arg1[%c0_51, %c27] : memref<4x128xf32, #tpu.memory_space<vmem>>, vector<4x1xf32>
    %237 = vector.extract_strided_slice %143 {offsets = [1, 0], sizes = [1, 64], strides = [1, 1]} : vector<2x64xf32> to vector<1x64xf32>
    %238 = vector.broadcast %236 : vector<4x1xf32> to vector<4x64xf32>
    %239 = vector.broadcast %237 : vector<1x64xf32> to vector<4x64xf32>
    %240 = arith.mulf %238, %239 : vector<4x64xf32>
    %241 = arith.addf %235, %240 : vector<4x64xf32>
    %242 = vector.broadcast %144 : vector<1x64xf32> to vector<4x64xf32>
    %243 = arith.mulf %241, %242 : vector<4x64xf32>
    %244 = vector.broadcast %145 : vector<1x64xf32> to vector<4x64xf32>
    %245 = arith.addf %243, %244 : vector<4x64xf32>
    %cst_52 = arith.constant 0.000000e+00 : f32
    %246 = vector.broadcast %cst_52 : f32 to vector<4x64xf32>
    %247 = arith.maximumf %245, %246 : vector<4x64xf32>
    %c0_53 = arith.constant 0 : index
    %c28 = arith.constant 28 : index
    %248 = vector.load %arg1[%c0_53, %c28] : memref<4x128xf32, #tpu.memory_space<vmem>>, vector<4x1xf32>
    %249 = vector.extract_strided_slice %143 {offsets = [0, 0], sizes = [1, 64], strides = [1, 1]} : vector<2x64xf32> to vector<1x64xf32>
    %250 = vector.broadcast %248 : vector<4x1xf32> to vector<4x64xf32>
    %251 = vector.broadcast %249 : vector<1x64xf32> to vector<4x64xf32>
    %252 = arith.mulf %250, %251 : vector<4x64xf32>
    %c0_54 = arith.constant 0 : index
    %c29 = arith.constant 29 : index
    %253 = vector.load %arg1[%c0_54, %c29] : memref<4x128xf32, #tpu.memory_space<vmem>>, vector<4x1xf32>
    %254 = vector.extract_strided_slice %143 {offsets = [1, 0], sizes = [1, 64], strides = [1, 1]} : vector<2x64xf32> to vector<1x64xf32>
    %255 = vector.broadcast %253 : vector<4x1xf32> to vector<4x64xf32>
    %256 = vector.broadcast %254 : vector<1x64xf32> to vector<4x64xf32>
    %257 = arith.mulf %255, %256 : vector<4x64xf32>
    %258 = arith.addf %252, %257 : vector<4x64xf32>
    %259 = vector.broadcast %144 : vector<1x64xf32> to vector<4x64xf32>
    %260 = arith.mulf %258, %259 : vector<4x64xf32>
    %261 = vector.broadcast %145 : vector<1x64xf32> to vector<4x64xf32>
    %262 = arith.addf %260, %261 : vector<4x64xf32>
    %cst_55 = arith.constant 0.000000e+00 : f32
    %263 = vector.broadcast %cst_55 : f32 to vector<4x64xf32>
    %264 = arith.maximumf %262, %263 : vector<4x64xf32>
    %c0_56 = arith.constant 0 : index
    %c30 = arith.constant 30 : index
    %265 = vector.load %arg1[%c0_56, %c30] : memref<4x128xf32, #tpu.memory_space<vmem>>, vector<4x1xf32>
    %266 = vector.extract_strided_slice %143 {offsets = [0, 0], sizes = [1, 64], strides = [1, 1]} : vector<2x64xf32> to vector<1x64xf32>
    %267 = vector.broadcast %265 : vector<4x1xf32> to vector<4x64xf32>
    %268 = vector.broadcast %266 : vector<1x64xf32> to vector<4x64xf32>
    %269 = arith.mulf %267, %268 : vector<4x64xf32>
    %c0_57 = arith.constant 0 : index
    %c31 = arith.constant 31 : index
    %270 = vector.load %arg1[%c0_57, %c31] : memref<4x128xf32, #tpu.memory_space<vmem>>, vector<4x1xf32>
    %271 = vector.extract_strided_slice %143 {offsets = [1, 0], sizes = [1, 64], strides = [1, 1]} : vector<2x64xf32> to vector<1x64xf32>
    %272 = vector.broadcast %270 : vector<4x1xf32> to vector<4x64xf32>
    %273 = vector.broadcast %271 : vector<1x64xf32> to vector<4x64xf32>
    %274 = arith.mulf %272, %273 : vector<4x64xf32>
    %275 = arith.addf %269, %274 : vector<4x64xf32>
    %276 = vector.broadcast %144 : vector<1x64xf32> to vector<4x64xf32>
    %277 = arith.mulf %275, %276 : vector<4x64xf32>
    %278 = vector.broadcast %145 : vector<1x64xf32> to vector<4x64xf32>
    %279 = arith.addf %277, %278 : vector<4x64xf32>
    %cst_58 = arith.constant 0.000000e+00 : f32
    %280 = vector.broadcast %cst_58 : f32 to vector<4x64xf32>
    %281 = arith.maximumf %279, %280 : vector<4x64xf32>
    %282 = arith.maximumf %162, %179 : vector<4x64xf32>
    %283 = arith.maximumf %196, %213 : vector<4x64xf32>
    %284 = arith.maximumf %230, %247 : vector<4x64xf32>
    %285 = arith.maximumf %264, %281 : vector<4x64xf32>
    %c0_59 = arith.constant 0 : index
    %c0_60 = arith.constant 0 : index
    %286 = vector.load %arg9[%c0_59, %c0_60] : memref<12x64xf32, #tpu.memory_space<vmem>>, vector<12x64xf32>
    %c0_61 = arith.constant 0 : index
    %c0_62 = arith.constant 0 : index
    %287 = vector.load %arg10[%c0_61, %c0_62] : memref<1x64xf32, #tpu.memory_space<vmem>>, vector<1x64xf32>
    %c0_63 = arith.constant 0 : index
    %c0_64 = arith.constant 0 : index
    %288 = vector.load %arg11[%c0_63, %c0_64] : memref<1x64xf32, #tpu.memory_space<vmem>>, vector<1x64xf32>
    %c0_65 = arith.constant 0 : index
    %c32 = arith.constant 32 : index
    %289 = vector.load %arg1[%c0_65, %c32] : memref<4x128xf32, #tpu.memory_space<vmem>>, vector<4x1xf32>
    %290 = vector.extract_strided_slice %286 {offsets = [0, 0], sizes = [1, 64], strides = [1, 1]} : vector<12x64xf32> to vector<1x64xf32>
    %291 = vector.broadcast %289 : vector<4x1xf32> to vector<4x64xf32>
    %292 = vector.broadcast %290 : vector<1x64xf32> to vector<4x64xf32>
    %293 = arith.mulf %291, %292 : vector<4x64xf32>
    %c0_66 = arith.constant 0 : index
    %c33 = arith.constant 33 : index
    %294 = vector.load %arg1[%c0_66, %c33] : memref<4x128xf32, #tpu.memory_space<vmem>>, vector<4x1xf32>
    %295 = vector.extract_strided_slice %286 {offsets = [1, 0], sizes = [1, 64], strides = [1, 1]} : vector<12x64xf32> to vector<1x64xf32>
    %296 = vector.broadcast %294 : vector<4x1xf32> to vector<4x64xf32>
    %297 = vector.broadcast %295 : vector<1x64xf32> to vector<4x64xf32>
    %298 = arith.mulf %296, %297 : vector<4x64xf32>
    %299 = arith.addf %293, %298 : vector<4x64xf32>
    %c0_67 = arith.constant 0 : index
    %c34 = arith.constant 34 : index
    %300 = vector.load %arg1[%c0_67, %c34] : memref<4x128xf32, #tpu.memory_space<vmem>>, vector<4x1xf32>
    %301 = vector.extract_strided_slice %286 {offsets = [2, 0], sizes = [1, 64], strides = [1, 1]} : vector<12x64xf32> to vector<1x64xf32>
    %302 = vector.broadcast %300 : vector<4x1xf32> to vector<4x64xf32>
    %303 = vector.broadcast %301 : vector<1x64xf32> to vector<4x64xf32>
    %304 = arith.mulf %302, %303 : vector<4x64xf32>
    %305 = arith.addf %299, %304 : vector<4x64xf32>
    %c0_68 = arith.constant 0 : index
    %c35 = arith.constant 35 : index
    %306 = vector.load %arg1[%c0_68, %c35] : memref<4x128xf32, #tpu.memory_space<vmem>>, vector<4x1xf32>
    %307 = vector.extract_strided_slice %286 {offsets = [3, 0], sizes = [1, 64], strides = [1, 1]} : vector<12x64xf32> to vector<1x64xf32>
    %308 = vector.broadcast %306 : vector<4x1xf32> to vector<4x64xf32>
    %309 = vector.broadcast %307 : vector<1x64xf32> to vector<4x64xf32>
    %310 = arith.mulf %308, %309 : vector<4x64xf32>
    %311 = arith.addf %305, %310 : vector<4x64xf32>
    %c0_69 = arith.constant 0 : index
    %c36 = arith.constant 36 : index
    %312 = vector.load %arg1[%c0_69, %c36] : memref<4x128xf32, #tpu.memory_space<vmem>>, vector<4x1xf32>
    %313 = vector.extract_strided_slice %286 {offsets = [4, 0], sizes = [1, 64], strides = [1, 1]} : vector<12x64xf32> to vector<1x64xf32>
    %314 = vector.broadcast %312 : vector<4x1xf32> to vector<4x64xf32>
    %315 = vector.broadcast %313 : vector<1x64xf32> to vector<4x64xf32>
    %316 = arith.mulf %314, %315 : vector<4x64xf32>
    %317 = arith.addf %311, %316 : vector<4x64xf32>
    %c0_70 = arith.constant 0 : index
    %c37 = arith.constant 37 : index
    %318 = vector.load %arg1[%c0_70, %c37] : memref<4x128xf32, #tpu.memory_space<vmem>>, vector<4x1xf32>
    %319 = vector.extract_strided_slice %286 {offsets = [5, 0], sizes = [1, 64], strides = [1, 1]} : vector<12x64xf32> to vector<1x64xf32>
    %320 = vector.broadcast %318 : vector<4x1xf32> to vector<4x64xf32>
    %321 = vector.broadcast %319 : vector<1x64xf32> to vector<4x64xf32>
    %322 = arith.mulf %320, %321 : vector<4x64xf32>
    %323 = arith.addf %317, %322 : vector<4x64xf32>
    %c0_71 = arith.constant 0 : index
    %c38 = arith.constant 38 : index
    %324 = vector.load %arg1[%c0_71, %c38] : memref<4x128xf32, #tpu.memory_space<vmem>>, vector<4x1xf32>
    %325 = vector.extract_strided_slice %286 {offsets = [6, 0], sizes = [1, 64], strides = [1, 1]} : vector<12x64xf32> to vector<1x64xf32>
    %326 = vector.broadcast %324 : vector<4x1xf32> to vector<4x64xf32>
    %327 = vector.broadcast %325 : vector<1x64xf32> to vector<4x64xf32>
    %328 = arith.mulf %326, %327 : vector<4x64xf32>
    %329 = arith.addf %323, %328 : vector<4x64xf32>
    %c0_72 = arith.constant 0 : index
    %c39 = arith.constant 39 : index
    %330 = vector.load %arg1[%c0_72, %c39] : memref<4x128xf32, #tpu.memory_space<vmem>>, vector<4x1xf32>
    %331 = vector.extract_strided_slice %286 {offsets = [7, 0], sizes = [1, 64], strides = [1, 1]} : vector<12x64xf32> to vector<1x64xf32>
    %332 = vector.broadcast %330 : vector<4x1xf32> to vector<4x64xf32>
    %333 = vector.broadcast %331 : vector<1x64xf32> to vector<4x64xf32>
    %334 = arith.mulf %332, %333 : vector<4x64xf32>
    %335 = arith.addf %329, %334 : vector<4x64xf32>
    %c0_73 = arith.constant 0 : index
    %c40 = arith.constant 40 : index
    %336 = vector.load %arg1[%c0_73, %c40] : memref<4x128xf32, #tpu.memory_space<vmem>>, vector<4x1xf32>
    %337 = vector.extract_strided_slice %286 {offsets = [8, 0], sizes = [1, 64], strides = [1, 1]} : vector<12x64xf32> to vector<1x64xf32>
    %338 = vector.broadcast %336 : vector<4x1xf32> to vector<4x64xf32>
    %339 = vector.broadcast %337 : vector<1x64xf32> to vector<4x64xf32>
    %340 = arith.mulf %338, %339 : vector<4x64xf32>
    %341 = arith.addf %335, %340 : vector<4x64xf32>
    %c0_74 = arith.constant 0 : index
    %c41 = arith.constant 41 : index
    %342 = vector.load %arg1[%c0_74, %c41] : memref<4x128xf32, #tpu.memory_space<vmem>>, vector<4x1xf32>
    %343 = vector.extract_strided_slice %286 {offsets = [9, 0], sizes = [1, 64], strides = [1, 1]} : vector<12x64xf32> to vector<1x64xf32>
    %344 = vector.broadcast %342 : vector<4x1xf32> to vector<4x64xf32>
    %345 = vector.broadcast %343 : vector<1x64xf32> to vector<4x64xf32>
    %346 = arith.mulf %344, %345 : vector<4x64xf32>
    %347 = arith.addf %341, %346 : vector<4x64xf32>
    %c0_75 = arith.constant 0 : index
    %c42 = arith.constant 42 : index
    %348 = vector.load %arg1[%c0_75, %c42] : memref<4x128xf32, #tpu.memory_space<vmem>>, vector<4x1xf32>
    %349 = vector.extract_strided_slice %286 {offsets = [10, 0], sizes = [1, 64], strides = [1, 1]} : vector<12x64xf32> to vector<1x64xf32>
    %350 = vector.broadcast %348 : vector<4x1xf32> to vector<4x64xf32>
    %351 = vector.broadcast %349 : vector<1x64xf32> to vector<4x64xf32>
    %352 = arith.mulf %350, %351 : vector<4x64xf32>
    %353 = arith.addf %347, %352 : vector<4x64xf32>
    %c0_76 = arith.constant 0 : index
    %c43 = arith.constant 43 : index
    %354 = vector.load %arg1[%c0_76, %c43] : memref<4x128xf32, #tpu.memory_space<vmem>>, vector<4x1xf32>
    %355 = vector.extract_strided_slice %286 {offsets = [11, 0], sizes = [1, 64], strides = [1, 1]} : vector<12x64xf32> to vector<1x64xf32>
    %356 = vector.broadcast %354 : vector<4x1xf32> to vector<4x64xf32>
    %357 = vector.broadcast %355 : vector<1x64xf32> to vector<4x64xf32>
    %358 = arith.mulf %356, %357 : vector<4x64xf32>
    %359 = arith.addf %353, %358 : vector<4x64xf32>
    %360 = vector.broadcast %287 : vector<1x64xf32> to vector<4x64xf32>
    %361 = arith.mulf %359, %360 : vector<4x64xf32>
    %362 = vector.broadcast %288 : vector<1x64xf32> to vector<4x64xf32>
    %363 = arith.addf %361, %362 : vector<4x64xf32>
    %cst_77 = arith.constant 0.000000e+00 : f32
    %364 = vector.broadcast %cst_77 : f32 to vector<4x64xf32>
    %365 = arith.maximumf %363, %364 : vector<4x64xf32>
    %c0_78 = arith.constant 0 : index
    %c44 = arith.constant 44 : index
    %366 = vector.load %arg1[%c0_78, %c44] : memref<4x128xf32, #tpu.memory_space<vmem>>, vector<4x1xf32>
    %367 = vector.extract_strided_slice %286 {offsets = [0, 0], sizes = [1, 64], strides = [1, 1]} : vector<12x64xf32> to vector<1x64xf32>
    %368 = vector.broadcast %366 : vector<4x1xf32> to vector<4x64xf32>
    %369 = vector.broadcast %367 : vector<1x64xf32> to vector<4x64xf32>
    %370 = arith.mulf %368, %369 : vector<4x64xf32>
    %c0_79 = arith.constant 0 : index
    %c45 = arith.constant 45 : index
    %371 = vector.load %arg1[%c0_79, %c45] : memref<4x128xf32, #tpu.memory_space<vmem>>, vector<4x1xf32>
    %372 = vector.extract_strided_slice %286 {offsets = [1, 0], sizes = [1, 64], strides = [1, 1]} : vector<12x64xf32> to vector<1x64xf32>
    %373 = vector.broadcast %371 : vector<4x1xf32> to vector<4x64xf32>
    %374 = vector.broadcast %372 : vector<1x64xf32> to vector<4x64xf32>
    %375 = arith.mulf %373, %374 : vector<4x64xf32>
    %376 = arith.addf %370, %375 : vector<4x64xf32>
    %c0_80 = arith.constant 0 : index
    %c46 = arith.constant 46 : index
    %377 = vector.load %arg1[%c0_80, %c46] : memref<4x128xf32, #tpu.memory_space<vmem>>, vector<4x1xf32>
    %378 = vector.extract_strided_slice %286 {offsets = [2, 0], sizes = [1, 64], strides = [1, 1]} : vector<12x64xf32> to vector<1x64xf32>
    %379 = vector.broadcast %377 : vector<4x1xf32> to vector<4x64xf32>
    %380 = vector.broadcast %378 : vector<1x64xf32> to vector<4x64xf32>
    %381 = arith.mulf %379, %380 : vector<4x64xf32>
    %382 = arith.addf %376, %381 : vector<4x64xf32>
    %c0_81 = arith.constant 0 : index
    %c47 = arith.constant 47 : index
    %383 = vector.load %arg1[%c0_81, %c47] : memref<4x128xf32, #tpu.memory_space<vmem>>, vector<4x1xf32>
    %384 = vector.extract_strided_slice %286 {offsets = [3, 0], sizes = [1, 64], strides = [1, 1]} : vector<12x64xf32> to vector<1x64xf32>
    %385 = vector.broadcast %383 : vector<4x1xf32> to vector<4x64xf32>
    %386 = vector.broadcast %384 : vector<1x64xf32> to vector<4x64xf32>
    %387 = arith.mulf %385, %386 : vector<4x64xf32>
    %388 = arith.addf %382, %387 : vector<4x64xf32>
    %c0_82 = arith.constant 0 : index
    %c48 = arith.constant 48 : index
    %389 = vector.load %arg1[%c0_82, %c48] : memref<4x128xf32, #tpu.memory_space<vmem>>, vector<4x1xf32>
    %390 = vector.extract_strided_slice %286 {offsets = [4, 0], sizes = [1, 64], strides = [1, 1]} : vector<12x64xf32> to vector<1x64xf32>
    %391 = vector.broadcast %389 : vector<4x1xf32> to vector<4x64xf32>
    %392 = vector.broadcast %390 : vector<1x64xf32> to vector<4x64xf32>
    %393 = arith.mulf %391, %392 : vector<4x64xf32>
    %394 = arith.addf %388, %393 : vector<4x64xf32>
    %c0_83 = arith.constant 0 : index
    %c49 = arith.constant 49 : index
    %395 = vector.load %arg1[%c0_83, %c49] : memref<4x128xf32, #tpu.memory_space<vmem>>, vector<4x1xf32>
    %396 = vector.extract_strided_slice %286 {offsets = [5, 0], sizes = [1, 64], strides = [1, 1]} : vector<12x64xf32> to vector<1x64xf32>
    %397 = vector.broadcast %395 : vector<4x1xf32> to vector<4x64xf32>
    %398 = vector.broadcast %396 : vector<1x64xf32> to vector<4x64xf32>
    %399 = arith.mulf %397, %398 : vector<4x64xf32>
    %400 = arith.addf %394, %399 : vector<4x64xf32>
    %c0_84 = arith.constant 0 : index
    %c50 = arith.constant 50 : index
    %401 = vector.load %arg1[%c0_84, %c50] : memref<4x128xf32, #tpu.memory_space<vmem>>, vector<4x1xf32>
    %402 = vector.extract_strided_slice %286 {offsets = [6, 0], sizes = [1, 64], strides = [1, 1]} : vector<12x64xf32> to vector<1x64xf32>
    %403 = vector.broadcast %401 : vector<4x1xf32> to vector<4x64xf32>
    %404 = vector.broadcast %402 : vector<1x64xf32> to vector<4x64xf32>
    %405 = arith.mulf %403, %404 : vector<4x64xf32>
    %406 = arith.addf %400, %405 : vector<4x64xf32>
    %c0_85 = arith.constant 0 : index
    %c51 = arith.constant 51 : index
    %407 = vector.load %arg1[%c0_85, %c51] : memref<4x128xf32, #tpu.memory_space<vmem>>, vector<4x1xf32>
    %408 = vector.extract_strided_slice %286 {offsets = [7, 0], sizes = [1, 64], strides = [1, 1]} : vector<12x64xf32> to vector<1x64xf32>
    %409 = vector.broadcast %407 : vector<4x1xf32> to vector<4x64xf32>
    %410 = vector.broadcast %408 : vector<1x64xf32> to vector<4x64xf32>
    %411 = arith.mulf %409, %410 : vector<4x64xf32>
    %412 = arith.addf %406, %411 : vector<4x64xf32>
    %c0_86 = arith.constant 0 : index
    %c52 = arith.constant 52 : index
    %413 = vector.load %arg1[%c0_86, %c52] : memref<4x128xf32, #tpu.memory_space<vmem>>, vector<4x1xf32>
    %414 = vector.extract_strided_slice %286 {offsets = [8, 0], sizes = [1, 64], strides = [1, 1]} : vector<12x64xf32> to vector<1x64xf32>
    %415 = vector.broadcast %413 : vector<4x1xf32> to vector<4x64xf32>
    %416 = vector.broadcast %414 : vector<1x64xf32> to vector<4x64xf32>
    %417 = arith.mulf %415, %416 : vector<4x64xf32>
    %418 = arith.addf %412, %417 : vector<4x64xf32>
    %c0_87 = arith.constant 0 : index
    %c53 = arith.constant 53 : index
    %419 = vector.load %arg1[%c0_87, %c53] : memref<4x128xf32, #tpu.memory_space<vmem>>, vector<4x1xf32>
    %420 = vector.extract_strided_slice %286 {offsets = [9, 0], sizes = [1, 64], strides = [1, 1]} : vector<12x64xf32> to vector<1x64xf32>
    %421 = vector.broadcast %419 : vector<4x1xf32> to vector<4x64xf32>
    %422 = vector.broadcast %420 : vector<1x64xf32> to vector<4x64xf32>
    %423 = arith.mulf %421, %422 : vector<4x64xf32>
    %424 = arith.addf %418, %423 : vector<4x64xf32>
    %c0_88 = arith.constant 0 : index
    %c54 = arith.constant 54 : index
    %425 = vector.load %arg1[%c0_88, %c54] : memref<4x128xf32, #tpu.memory_space<vmem>>, vector<4x1xf32>
    %426 = vector.extract_strided_slice %286 {offsets = [10, 0], sizes = [1, 64], strides = [1, 1]} : vector<12x64xf32> to vector<1x64xf32>
    %427 = vector.broadcast %425 : vector<4x1xf32> to vector<4x64xf32>
    %428 = vector.broadcast %426 : vector<1x64xf32> to vector<4x64xf32>
    %429 = arith.mulf %427, %428 : vector<4x64xf32>
    %430 = arith.addf %424, %429 : vector<4x64xf32>
    %c0_89 = arith.constant 0 : index
    %c55 = arith.constant 55 : index
    %431 = vector.load %arg1[%c0_89, %c55] : memref<4x128xf32, #tpu.memory_space<vmem>>, vector<4x1xf32>
    %432 = vector.extract_strided_slice %286 {offsets = [11, 0], sizes = [1, 64], strides = [1, 1]} : vector<12x64xf32> to vector<1x64xf32>
    %433 = vector.broadcast %431 : vector<4x1xf32> to vector<4x64xf32>
    %434 = vector.broadcast %432 : vector<1x64xf32> to vector<4x64xf32>
    %435 = arith.mulf %433, %434 : vector<4x64xf32>
    %436 = arith.addf %430, %435 : vector<4x64xf32>
    %437 = vector.broadcast %287 : vector<1x64xf32> to vector<4x64xf32>
    %438 = arith.mulf %436, %437 : vector<4x64xf32>
    %439 = vector.broadcast %288 : vector<1x64xf32> to vector<4x64xf32>
    %440 = arith.addf %438, %439 : vector<4x64xf32>
    %cst_90 = arith.constant 0.000000e+00 : f32
    %441 = vector.broadcast %cst_90 : f32 to vector<4x64xf32>
    %442 = arith.maximumf %440, %441 : vector<4x64xf32>
    %c0_91 = arith.constant 0 : index
    %c56 = arith.constant 56 : index
    %443 = vector.load %arg1[%c0_91, %c56] : memref<4x128xf32, #tpu.memory_space<vmem>>, vector<4x1xf32>
    %444 = vector.extract_strided_slice %286 {offsets = [0, 0], sizes = [1, 64], strides = [1, 1]} : vector<12x64xf32> to vector<1x64xf32>
    %445 = vector.broadcast %443 : vector<4x1xf32> to vector<4x64xf32>
    %446 = vector.broadcast %444 : vector<1x64xf32> to vector<4x64xf32>
    %447 = arith.mulf %445, %446 : vector<4x64xf32>
    %c0_92 = arith.constant 0 : index
    %c57 = arith.constant 57 : index
    %448 = vector.load %arg1[%c0_92, %c57] : memref<4x128xf32, #tpu.memory_space<vmem>>, vector<4x1xf32>
    %449 = vector.extract_strided_slice %286 {offsets = [1, 0], sizes = [1, 64], strides = [1, 1]} : vector<12x64xf32> to vector<1x64xf32>
    %450 = vector.broadcast %448 : vector<4x1xf32> to vector<4x64xf32>
    %451 = vector.broadcast %449 : vector<1x64xf32> to vector<4x64xf32>
    %452 = arith.mulf %450, %451 : vector<4x64xf32>
    %453 = arith.addf %447, %452 : vector<4x64xf32>
    %c0_93 = arith.constant 0 : index
    %c58 = arith.constant 58 : index
    %454 = vector.load %arg1[%c0_93, %c58] : memref<4x128xf32, #tpu.memory_space<vmem>>, vector<4x1xf32>
    %455 = vector.extract_strided_slice %286 {offsets = [2, 0], sizes = [1, 64], strides = [1, 1]} : vector<12x64xf32> to vector<1x64xf32>
    %456 = vector.broadcast %454 : vector<4x1xf32> to vector<4x64xf32>
    %457 = vector.broadcast %455 : vector<1x64xf32> to vector<4x64xf32>
    %458 = arith.mulf %456, %457 : vector<4x64xf32>
    %459 = arith.addf %453, %458 : vector<4x64xf32>
    %c0_94 = arith.constant 0 : index
    %c59 = arith.constant 59 : index
    %460 = vector.load %arg1[%c0_94, %c59] : memref<4x128xf32, #tpu.memory_space<vmem>>, vector<4x1xf32>
    %461 = vector.extract_strided_slice %286 {offsets = [3, 0], sizes = [1, 64], strides = [1, 1]} : vector<12x64xf32> to vector<1x64xf32>
    %462 = vector.broadcast %460 : vector<4x1xf32> to vector<4x64xf32>
    %463 = vector.broadcast %461 : vector<1x64xf32> to vector<4x64xf32>
    %464 = arith.mulf %462, %463 : vector<4x64xf32>
    %465 = arith.addf %459, %464 : vector<4x64xf32>
    %c0_95 = arith.constant 0 : index
    %c60 = arith.constant 60 : index
    %466 = vector.load %arg1[%c0_95, %c60] : memref<4x128xf32, #tpu.memory_space<vmem>>, vector<4x1xf32>
    %467 = vector.extract_strided_slice %286 {offsets = [4, 0], sizes = [1, 64], strides = [1, 1]} : vector<12x64xf32> to vector<1x64xf32>
    %468 = vector.broadcast %466 : vector<4x1xf32> to vector<4x64xf32>
    %469 = vector.broadcast %467 : vector<1x64xf32> to vector<4x64xf32>
    %470 = arith.mulf %468, %469 : vector<4x64xf32>
    %471 = arith.addf %465, %470 : vector<4x64xf32>
    %c0_96 = arith.constant 0 : index
    %c61 = arith.constant 61 : index
    %472 = vector.load %arg1[%c0_96, %c61] : memref<4x128xf32, #tpu.memory_space<vmem>>, vector<4x1xf32>
    %473 = vector.extract_strided_slice %286 {offsets = [5, 0], sizes = [1, 64], strides = [1, 1]} : vector<12x64xf32> to vector<1x64xf32>
    %474 = vector.broadcast %472 : vector<4x1xf32> to vector<4x64xf32>
    %475 = vector.broadcast %473 : vector<1x64xf32> to vector<4x64xf32>
    %476 = arith.mulf %474, %475 : vector<4x64xf32>
    %477 = arith.addf %471, %476 : vector<4x64xf32>
    %c0_97 = arith.constant 0 : index
    %c62 = arith.constant 62 : index
    %478 = vector.load %arg1[%c0_97, %c62] : memref<4x128xf32, #tpu.memory_space<vmem>>, vector<4x1xf32>
    %479 = vector.extract_strided_slice %286 {offsets = [6, 0], sizes = [1, 64], strides = [1, 1]} : vector<12x64xf32> to vector<1x64xf32>
    %480 = vector.broadcast %478 : vector<4x1xf32> to vector<4x64xf32>
    %481 = vector.broadcast %479 : vector<1x64xf32> to vector<4x64xf32>
    %482 = arith.mulf %480, %481 : vector<4x64xf32>
    %483 = arith.addf %477, %482 : vector<4x64xf32>
    %c0_98 = arith.constant 0 : index
    %c63 = arith.constant 63 : index
    %484 = vector.load %arg1[%c0_98, %c63] : memref<4x128xf32, #tpu.memory_space<vmem>>, vector<4x1xf32>
    %485 = vector.extract_strided_slice %286 {offsets = [7, 0], sizes = [1, 64], strides = [1, 1]} : vector<12x64xf32> to vector<1x64xf32>
    %486 = vector.broadcast %484 : vector<4x1xf32> to vector<4x64xf32>
    %487 = vector.broadcast %485 : vector<1x64xf32> to vector<4x64xf32>
    %488 = arith.mulf %486, %487 : vector<4x64xf32>
    %489 = arith.addf %483, %488 : vector<4x64xf32>
    %c0_99 = arith.constant 0 : index
    %c64 = arith.constant 64 : index
    %490 = vector.load %arg1[%c0_99, %c64] : memref<4x128xf32, #tpu.memory_space<vmem>>, vector<4x1xf32>
    %491 = vector.extract_strided_slice %286 {offsets = [8, 0], sizes = [1, 64], strides = [1, 1]} : vector<12x64xf32> to vector<1x64xf32>
    %492 = vector.broadcast %490 : vector<4x1xf32> to vector<4x64xf32>
    %493 = vector.broadcast %491 : vector<1x64xf32> to vector<4x64xf32>
    %494 = arith.mulf %492, %493 : vector<4x64xf32>
    %495 = arith.addf %489, %494 : vector<4x64xf32>
    %c0_100 = arith.constant 0 : index
    %c65 = arith.constant 65 : index
    %496 = vector.load %arg1[%c0_100, %c65] : memref<4x128xf32, #tpu.memory_space<vmem>>, vector<4x1xf32>
    %497 = vector.extract_strided_slice %286 {offsets = [9, 0], sizes = [1, 64], strides = [1, 1]} : vector<12x64xf32> to vector<1x64xf32>
    %498 = vector.broadcast %496 : vector<4x1xf32> to vector<4x64xf32>
    %499 = vector.broadcast %497 : vector<1x64xf32> to vector<4x64xf32>
    %500 = arith.mulf %498, %499 : vector<4x64xf32>
    %501 = arith.addf %495, %500 : vector<4x64xf32>
    %c0_101 = arith.constant 0 : index
    %c66 = arith.constant 66 : index
    %502 = vector.load %arg1[%c0_101, %c66] : memref<4x128xf32, #tpu.memory_space<vmem>>, vector<4x1xf32>
    %503 = vector.extract_strided_slice %286 {offsets = [10, 0], sizes = [1, 64], strides = [1, 1]} : vector<12x64xf32> to vector<1x64xf32>
    %504 = vector.broadcast %502 : vector<4x1xf32> to vector<4x64xf32>
    %505 = vector.broadcast %503 : vector<1x64xf32> to vector<4x64xf32>
    %506 = arith.mulf %504, %505 : vector<4x64xf32>
    %507 = arith.addf %501, %506 : vector<4x64xf32>
    %c0_102 = arith.constant 0 : index
    %c67 = arith.constant 67 : index
    %508 = vector.load %arg1[%c0_102, %c67] : memref<4x128xf32, #tpu.memory_space<vmem>>, vector<4x1xf32>
    %509 = vector.extract_strided_slice %286 {offsets = [11, 0], sizes = [1, 64], strides = [1, 1]} : vector<12x64xf32> to vector<1x64xf32>
    %510 = vector.broadcast %508 : vector<4x1xf32> to vector<4x64xf32>
    %511 = vector.broadcast %509 : vector<1x64xf32> to vector<4x64xf32>
    %512 = arith.mulf %510, %511 : vector<4x64xf32>
    %513 = arith.addf %507, %512 : vector<4x64xf32>
    %514 = vector.broadcast %287 : vector<1x64xf32> to vector<4x64xf32>
    %515 = arith.mulf %513, %514 : vector<4x64xf32>
    %516 = vector.broadcast %288 : vector<1x64xf32> to vector<4x64xf32>
    %517 = arith.addf %515, %516 : vector<4x64xf32>
    %cst_103 = arith.constant 0.000000e+00 : f32
    %518 = vector.broadcast %cst_103 : f32 to vector<4x64xf32>
    %519 = arith.maximumf %517, %518 : vector<4x64xf32>
    %c0_104 = arith.constant 0 : index
    %c68 = arith.constant 68 : index
    %520 = vector.load %arg1[%c0_104, %c68] : memref<4x128xf32, #tpu.memory_space<vmem>>, vector<4x1xf32>
    %521 = vector.extract_strided_slice %286 {offsets = [0, 0], sizes = [1, 64], strides = [1, 1]} : vector<12x64xf32> to vector<1x64xf32>
    %522 = vector.broadcast %520 : vector<4x1xf32> to vector<4x64xf32>
    %523 = vector.broadcast %521 : vector<1x64xf32> to vector<4x64xf32>
    %524 = arith.mulf %522, %523 : vector<4x64xf32>
    %c0_105 = arith.constant 0 : index
    %c69 = arith.constant 69 : index
    %525 = vector.load %arg1[%c0_105, %c69] : memref<4x128xf32, #tpu.memory_space<vmem>>, vector<4x1xf32>
    %526 = vector.extract_strided_slice %286 {offsets = [1, 0], sizes = [1, 64], strides = [1, 1]} : vector<12x64xf32> to vector<1x64xf32>
    %527 = vector.broadcast %525 : vector<4x1xf32> to vector<4x64xf32>
    %528 = vector.broadcast %526 : vector<1x64xf32> to vector<4x64xf32>
    %529 = arith.mulf %527, %528 : vector<4x64xf32>
    %530 = arith.addf %524, %529 : vector<4x64xf32>
    %c0_106 = arith.constant 0 : index
    %c70 = arith.constant 70 : index
    %531 = vector.load %arg1[%c0_106, %c70] : memref<4x128xf32, #tpu.memory_space<vmem>>, vector<4x1xf32>
    %532 = vector.extract_strided_slice %286 {offsets = [2, 0], sizes = [1, 64], strides = [1, 1]} : vector<12x64xf32> to vector<1x64xf32>
    %533 = vector.broadcast %531 : vector<4x1xf32> to vector<4x64xf32>
    %534 = vector.broadcast %532 : vector<1x64xf32> to vector<4x64xf32>
    %535 = arith.mulf %533, %534 : vector<4x64xf32>
    %536 = arith.addf %530, %535 : vector<4x64xf32>
    %c0_107 = arith.constant 0 : index
    %c71 = arith.constant 71 : index
    %537 = vector.load %arg1[%c0_107, %c71] : memref<4x128xf32, #tpu.memory_space<vmem>>, vector<4x1xf32>
    %538 = vector.extract_strided_slice %286 {offsets = [3, 0], sizes = [1, 64], strides = [1, 1]} : vector<12x64xf32> to vector<1x64xf32>
    %539 = vector.broadcast %537 : vector<4x1xf32> to vector<4x64xf32>
    %540 = vector.broadcast %538 : vector<1x64xf32> to vector<4x64xf32>
    %541 = arith.mulf %539, %540 : vector<4x64xf32>
    %542 = arith.addf %536, %541 : vector<4x64xf32>
    %c0_108 = arith.constant 0 : index
    %c72 = arith.constant 72 : index
    %543 = vector.load %arg1[%c0_108, %c72] : memref<4x128xf32, #tpu.memory_space<vmem>>, vector<4x1xf32>
    %544 = vector.extract_strided_slice %286 {offsets = [4, 0], sizes = [1, 64], strides = [1, 1]} : vector<12x64xf32> to vector<1x64xf32>
    %545 = vector.broadcast %543 : vector<4x1xf32> to vector<4x64xf32>
    %546 = vector.broadcast %544 : vector<1x64xf32> to vector<4x64xf32>
    %547 = arith.mulf %545, %546 : vector<4x64xf32>
    %548 = arith.addf %542, %547 : vector<4x64xf32>
    %c0_109 = arith.constant 0 : index
    %c73 = arith.constant 73 : index
    %549 = vector.load %arg1[%c0_109, %c73] : memref<4x128xf32, #tpu.memory_space<vmem>>, vector<4x1xf32>
    %550 = vector.extract_strided_slice %286 {offsets = [5, 0], sizes = [1, 64], strides = [1, 1]} : vector<12x64xf32> to vector<1x64xf32>
    %551 = vector.broadcast %549 : vector<4x1xf32> to vector<4x64xf32>
    %552 = vector.broadcast %550 : vector<1x64xf32> to vector<4x64xf32>
    %553 = arith.mulf %551, %552 : vector<4x64xf32>
    %554 = arith.addf %548, %553 : vector<4x64xf32>
    %c0_110 = arith.constant 0 : index
    %c74 = arith.constant 74 : index
    %555 = vector.load %arg1[%c0_110, %c74] : memref<4x128xf32, #tpu.memory_space<vmem>>, vector<4x1xf32>
    %556 = vector.extract_strided_slice %286 {offsets = [6, 0], sizes = [1, 64], strides = [1, 1]} : vector<12x64xf32> to vector<1x64xf32>
    %557 = vector.broadcast %555 : vector<4x1xf32> to vector<4x64xf32>
    %558 = vector.broadcast %556 : vector<1x64xf32> to vector<4x64xf32>
    %559 = arith.mulf %557, %558 : vector<4x64xf32>
    %560 = arith.addf %554, %559 : vector<4x64xf32>
    %c0_111 = arith.constant 0 : index
    %c75 = arith.constant 75 : index
    %561 = vector.load %arg1[%c0_111, %c75] : memref<4x128xf32, #tpu.memory_space<vmem>>, vector<4x1xf32>
    %562 = vector.extract_strided_slice %286 {offsets = [7, 0], sizes = [1, 64], strides = [1, 1]} : vector<12x64xf32> to vector<1x64xf32>
    %563 = vector.broadcast %561 : vector<4x1xf32> to vector<4x64xf32>
    %564 = vector.broadcast %562 : vector<1x64xf32> to vector<4x64xf32>
    %565 = arith.mulf %563, %564 : vector<4x64xf32>
    %566 = arith.addf %560, %565 : vector<4x64xf32>
    %c0_112 = arith.constant 0 : index
    %c76 = arith.constant 76 : index
    %567 = vector.load %arg1[%c0_112, %c76] : memref<4x128xf32, #tpu.memory_space<vmem>>, vector<4x1xf32>
    %568 = vector.extract_strided_slice %286 {offsets = [8, 0], sizes = [1, 64], strides = [1, 1]} : vector<12x64xf32> to vector<1x64xf32>
    %569 = vector.broadcast %567 : vector<4x1xf32> to vector<4x64xf32>
    %570 = vector.broadcast %568 : vector<1x64xf32> to vector<4x64xf32>
    %571 = arith.mulf %569, %570 : vector<4x64xf32>
    %572 = arith.addf %566, %571 : vector<4x64xf32>
    %c0_113 = arith.constant 0 : index
    %c77 = arith.constant 77 : index
    %573 = vector.load %arg1[%c0_113, %c77] : memref<4x128xf32, #tpu.memory_space<vmem>>, vector<4x1xf32>
    %574 = vector.extract_strided_slice %286 {offsets = [9, 0], sizes = [1, 64], strides = [1, 1]} : vector<12x64xf32> to vector<1x64xf32>
    %575 = vector.broadcast %573 : vector<4x1xf32> to vector<4x64xf32>
    %576 = vector.broadcast %574 : vector<1x64xf32> to vector<4x64xf32>
    %577 = arith.mulf %575, %576 : vector<4x64xf32>
    %578 = arith.addf %572, %577 : vector<4x64xf32>
    %c0_114 = arith.constant 0 : index
    %c78 = arith.constant 78 : index
    %579 = vector.load %arg1[%c0_114, %c78] : memref<4x128xf32, #tpu.memory_space<vmem>>, vector<4x1xf32>
    %580 = vector.extract_strided_slice %286 {offsets = [10, 0], sizes = [1, 64], strides = [1, 1]} : vector<12x64xf32> to vector<1x64xf32>
    %581 = vector.broadcast %579 : vector<4x1xf32> to vector<4x64xf32>
    %582 = vector.broadcast %580 : vector<1x64xf32> to vector<4x64xf32>
    %583 = arith.mulf %581, %582 : vector<4x64xf32>
    %584 = arith.addf %578, %583 : vector<4x64xf32>
    %c0_115 = arith.constant 0 : index
    %c79 = arith.constant 79 : index
    %585 = vector.load %arg1[%c0_115, %c79] : memref<4x128xf32, #tpu.memory_space<vmem>>, vector<4x1xf32>
    %586 = vector.extract_strided_slice %286 {offsets = [11, 0], sizes = [1, 64], strides = [1, 1]} : vector<12x64xf32> to vector<1x64xf32>
    %587 = vector.broadcast %585 : vector<4x1xf32> to vector<4x64xf32>
    %588 = vector.broadcast %586 : vector<1x64xf32> to vector<4x64xf32>
    %589 = arith.mulf %587, %588 : vector<4x64xf32>
    %590 = arith.addf %584, %589 : vector<4x64xf32>
    %591 = vector.broadcast %287 : vector<1x64xf32> to vector<4x64xf32>
    %592 = arith.mulf %590, %591 : vector<4x64xf32>
    %593 = vector.broadcast %288 : vector<1x64xf32> to vector<4x64xf32>
    %594 = arith.addf %592, %593 : vector<4x64xf32>
    %cst_116 = arith.constant 0.000000e+00 : f32
    %595 = vector.broadcast %cst_116 : f32 to vector<4x64xf32>
    %596 = arith.maximumf %594, %595 : vector<4x64xf32>
    %c0_117 = arith.constant 0 : index
    %c80 = arith.constant 80 : index
    %597 = vector.load %arg1[%c0_117, %c80] : memref<4x128xf32, #tpu.memory_space<vmem>>, vector<4x1xf32>
    %598 = vector.extract_strided_slice %286 {offsets = [0, 0], sizes = [1, 64], strides = [1, 1]} : vector<12x64xf32> to vector<1x64xf32>
    %599 = vector.broadcast %597 : vector<4x1xf32> to vector<4x64xf32>
    %600 = vector.broadcast %598 : vector<1x64xf32> to vector<4x64xf32>
    %601 = arith.mulf %599, %600 : vector<4x64xf32>
    %c0_118 = arith.constant 0 : index
    %c81 = arith.constant 81 : index
    %602 = vector.load %arg1[%c0_118, %c81] : memref<4x128xf32, #tpu.memory_space<vmem>>, vector<4x1xf32>
    %603 = vector.extract_strided_slice %286 {offsets = [1, 0], sizes = [1, 64], strides = [1, 1]} : vector<12x64xf32> to vector<1x64xf32>
    %604 = vector.broadcast %602 : vector<4x1xf32> to vector<4x64xf32>
    %605 = vector.broadcast %603 : vector<1x64xf32> to vector<4x64xf32>
    %606 = arith.mulf %604, %605 : vector<4x64xf32>
    %607 = arith.addf %601, %606 : vector<4x64xf32>
    %c0_119 = arith.constant 0 : index
    %c82 = arith.constant 82 : index
    %608 = vector.load %arg1[%c0_119, %c82] : memref<4x128xf32, #tpu.memory_space<vmem>>, vector<4x1xf32>
    %609 = vector.extract_strided_slice %286 {offsets = [2, 0], sizes = [1, 64], strides = [1, 1]} : vector<12x64xf32> to vector<1x64xf32>
    %610 = vector.broadcast %608 : vector<4x1xf32> to vector<4x64xf32>
    %611 = vector.broadcast %609 : vector<1x64xf32> to vector<4x64xf32>
    %612 = arith.mulf %610, %611 : vector<4x64xf32>
    %613 = arith.addf %607, %612 : vector<4x64xf32>
    %c0_120 = arith.constant 0 : index
    %c83 = arith.constant 83 : index
    %614 = vector.load %arg1[%c0_120, %c83] : memref<4x128xf32, #tpu.memory_space<vmem>>, vector<4x1xf32>
    %615 = vector.extract_strided_slice %286 {offsets = [3, 0], sizes = [1, 64], strides = [1, 1]} : vector<12x64xf32> to vector<1x64xf32>
    %616 = vector.broadcast %614 : vector<4x1xf32> to vector<4x64xf32>
    %617 = vector.broadcast %615 : vector<1x64xf32> to vector<4x64xf32>
    %618 = arith.mulf %616, %617 : vector<4x64xf32>
    %619 = arith.addf %613, %618 : vector<4x64xf32>
    %c0_121 = arith.constant 0 : index
    %c84 = arith.constant 84 : index
    %620 = vector.load %arg1[%c0_121, %c84] : memref<4x128xf32, #tpu.memory_space<vmem>>, vector<4x1xf32>
    %621 = vector.extract_strided_slice %286 {offsets = [4, 0], sizes = [1, 64], strides = [1, 1]} : vector<12x64xf32> to vector<1x64xf32>
    %622 = vector.broadcast %620 : vector<4x1xf32> to vector<4x64xf32>
    %623 = vector.broadcast %621 : vector<1x64xf32> to vector<4x64xf32>
    %624 = arith.mulf %622, %623 : vector<4x64xf32>
    %625 = arith.addf %619, %624 : vector<4x64xf32>
    %c0_122 = arith.constant 0 : index
    %c85 = arith.constant 85 : index
    %626 = vector.load %arg1[%c0_122, %c85] : memref<4x128xf32, #tpu.memory_space<vmem>>, vector<4x1xf32>
    %627 = vector.extract_strided_slice %286 {offsets = [5, 0], sizes = [1, 64], strides = [1, 1]} : vector<12x64xf32> to vector<1x64xf32>
    %628 = vector.broadcast %626 : vector<4x1xf32> to vector<4x64xf32>
    %629 = vector.broadcast %627 : vector<1x64xf32> to vector<4x64xf32>
    %630 = arith.mulf %628, %629 : vector<4x64xf32>
    %631 = arith.addf %625, %630 : vector<4x64xf32>
    %c0_123 = arith.constant 0 : index
    %c86 = arith.constant 86 : index
    %632 = vector.load %arg1[%c0_123, %c86] : memref<4x128xf32, #tpu.memory_space<vmem>>, vector<4x1xf32>
    %633 = vector.extract_strided_slice %286 {offsets = [6, 0], sizes = [1, 64], strides = [1, 1]} : vector<12x64xf32> to vector<1x64xf32>
    %634 = vector.broadcast %632 : vector<4x1xf32> to vector<4x64xf32>
    %635 = vector.broadcast %633 : vector<1x64xf32> to vector<4x64xf32>
    %636 = arith.mulf %634, %635 : vector<4x64xf32>
    %637 = arith.addf %631, %636 : vector<4x64xf32>
    %c0_124 = arith.constant 0 : index
    %c87 = arith.constant 87 : index
    %638 = vector.load %arg1[%c0_124, %c87] : memref<4x128xf32, #tpu.memory_space<vmem>>, vector<4x1xf32>
    %639 = vector.extract_strided_slice %286 {offsets = [7, 0], sizes = [1, 64], strides = [1, 1]} : vector<12x64xf32> to vector<1x64xf32>
    %640 = vector.broadcast %638 : vector<4x1xf32> to vector<4x64xf32>
    %641 = vector.broadcast %639 : vector<1x64xf32> to vector<4x64xf32>
    %642 = arith.mulf %640, %641 : vector<4x64xf32>
    %643 = arith.addf %637, %642 : vector<4x64xf32>
    %c0_125 = arith.constant 0 : index
    %c88 = arith.constant 88 : index
    %644 = vector.load %arg1[%c0_125, %c88] : memref<4x128xf32, #tpu.memory_space<vmem>>, vector<4x1xf32>
    %645 = vector.extract_strided_slice %286 {offsets = [8, 0], sizes = [1, 64], strides = [1, 1]} : vector<12x64xf32> to vector<1x64xf32>
    %646 = vector.broadcast %644 : vector<4x1xf32> to vector<4x64xf32>
    %647 = vector.broadcast %645 : vector<1x64xf32> to vector<4x64xf32>
    %648 = arith.mulf %646, %647 : vector<4x64xf32>
    %649 = arith.addf %643, %648 : vector<4x64xf32>
    %c0_126 = arith.constant 0 : index
    %c89 = arith.constant 89 : index
    %650 = vector.load %arg1[%c0_126, %c89] : memref<4x128xf32, #tpu.memory_space<vmem>>, vector<4x1xf32>
    %651 = vector.extract_strided_slice %286 {offsets = [9, 0], sizes = [1, 64], strides = [1, 1]} : vector<12x64xf32> to vector<1x64xf32>
    %652 = vector.broadcast %650 : vector<4x1xf32> to vector<4x64xf32>
    %653 = vector.broadcast %651 : vector<1x64xf32> to vector<4x64xf32>
    %654 = arith.mulf %652, %653 : vector<4x64xf32>
    %655 = arith.addf %649, %654 : vector<4x64xf32>
    %c0_127 = arith.constant 0 : index
    %c90 = arith.constant 90 : index
    %656 = vector.load %arg1[%c0_127, %c90] : memref<4x128xf32, #tpu.memory_space<vmem>>, vector<4x1xf32>
    %657 = vector.extract_strided_slice %286 {offsets = [10, 0], sizes = [1, 64], strides = [1, 1]} : vector<12x64xf32> to vector<1x64xf32>
    %658 = vector.broadcast %656 : vector<4x1xf32> to vector<4x64xf32>
    %659 = vector.broadcast %657 : vector<1x64xf32> to vector<4x64xf32>
    %660 = arith.mulf %658, %659 : vector<4x64xf32>
    %661 = arith.addf %655, %660 : vector<4x64xf32>
    %c0_128 = arith.constant 0 : index
    %c91 = arith.constant 91 : index
    %662 = vector.load %arg1[%c0_128, %c91] : memref<4x128xf32, #tpu.memory_space<vmem>>, vector<4x1xf32>
    %663 = vector.extract_strided_slice %286 {offsets = [11, 0], sizes = [1, 64], strides = [1, 1]} : vector<12x64xf32> to vector<1x64xf32>
    %664 = vector.broadcast %662 : vector<4x1xf32> to vector<4x64xf32>
    %665 = vector.broadcast %663 : vector<1x64xf32> to vector<4x64xf32>
    %666 = arith.mulf %664, %665 : vector<4x64xf32>
    %667 = arith.addf %661, %666 : vector<4x64xf32>
    %668 = vector.broadcast %287 : vector<1x64xf32> to vector<4x64xf32>
    %669 = arith.mulf %667, %668 : vector<4x64xf32>
    %670 = vector.broadcast %288 : vector<1x64xf32> to vector<4x64xf32>
    %671 = arith.addf %669, %670 : vector<4x64xf32>
    %cst_129 = arith.constant 0.000000e+00 : f32
    %672 = vector.broadcast %cst_129 : f32 to vector<4x64xf32>
    %673 = arith.maximumf %671, %672 : vector<4x64xf32>
    %c0_130 = arith.constant 0 : index
    %c92 = arith.constant 92 : index
    %674 = vector.load %arg1[%c0_130, %c92] : memref<4x128xf32, #tpu.memory_space<vmem>>, vector<4x1xf32>
    %675 = vector.extract_strided_slice %286 {offsets = [0, 0], sizes = [1, 64], strides = [1, 1]} : vector<12x64xf32> to vector<1x64xf32>
    %676 = vector.broadcast %674 : vector<4x1xf32> to vector<4x64xf32>
    %677 = vector.broadcast %675 : vector<1x64xf32> to vector<4x64xf32>
    %678 = arith.mulf %676, %677 : vector<4x64xf32>
    %c0_131 = arith.constant 0 : index
    %c93 = arith.constant 93 : index
    %679 = vector.load %arg1[%c0_131, %c93] : memref<4x128xf32, #tpu.memory_space<vmem>>, vector<4x1xf32>
    %680 = vector.extract_strided_slice %286 {offsets = [1, 0], sizes = [1, 64], strides = [1, 1]} : vector<12x64xf32> to vector<1x64xf32>
    %681 = vector.broadcast %679 : vector<4x1xf32> to vector<4x64xf32>
    %682 = vector.broadcast %680 : vector<1x64xf32> to vector<4x64xf32>
    %683 = arith.mulf %681, %682 : vector<4x64xf32>
    %684 = arith.addf %678, %683 : vector<4x64xf32>
    %c0_132 = arith.constant 0 : index
    %c94 = arith.constant 94 : index
    %685 = vector.load %arg1[%c0_132, %c94] : memref<4x128xf32, #tpu.memory_space<vmem>>, vector<4x1xf32>
    %686 = vector.extract_strided_slice %286 {offsets = [2, 0], sizes = [1, 64], strides = [1, 1]} : vector<12x64xf32> to vector<1x64xf32>
    %687 = vector.broadcast %685 : vector<4x1xf32> to vector<4x64xf32>
    %688 = vector.broadcast %686 : vector<1x64xf32> to vector<4x64xf32>
    %689 = arith.mulf %687, %688 : vector<4x64xf32>
    %690 = arith.addf %684, %689 : vector<4x64xf32>
    %c0_133 = arith.constant 0 : index
    %c95 = arith.constant 95 : index
    %691 = vector.load %arg1[%c0_133, %c95] : memref<4x128xf32, #tpu.memory_space<vmem>>, vector<4x1xf32>
    %692 = vector.extract_strided_slice %286 {offsets = [3, 0], sizes = [1, 64], strides = [1, 1]} : vector<12x64xf32> to vector<1x64xf32>
    %693 = vector.broadcast %691 : vector<4x1xf32> to vector<4x64xf32>
    %694 = vector.broadcast %692 : vector<1x64xf32> to vector<4x64xf32>
    %695 = arith.mulf %693, %694 : vector<4x64xf32>
    %696 = arith.addf %690, %695 : vector<4x64xf32>
    %c0_134 = arith.constant 0 : index
    %c96 = arith.constant 96 : index
    %697 = vector.load %arg1[%c0_134, %c96] : memref<4x128xf32, #tpu.memory_space<vmem>>, vector<4x1xf32>
    %698 = vector.extract_strided_slice %286 {offsets = [4, 0], sizes = [1, 64], strides = [1, 1]} : vector<12x64xf32> to vector<1x64xf32>
    %699 = vector.broadcast %697 : vector<4x1xf32> to vector<4x64xf32>
    %700 = vector.broadcast %698 : vector<1x64xf32> to vector<4x64xf32>
    %701 = arith.mulf %699, %700 : vector<4x64xf32>
    %702 = arith.addf %696, %701 : vector<4x64xf32>
    %c0_135 = arith.constant 0 : index
    %c97 = arith.constant 97 : index
    %703 = vector.load %arg1[%c0_135, %c97] : memref<4x128xf32, #tpu.memory_space<vmem>>, vector<4x1xf32>
    %704 = vector.extract_strided_slice %286 {offsets = [5, 0], sizes = [1, 64], strides = [1, 1]} : vector<12x64xf32> to vector<1x64xf32>
    %705 = vector.broadcast %703 : vector<4x1xf32> to vector<4x64xf32>
    %706 = vector.broadcast %704 : vector<1x64xf32> to vector<4x64xf32>
    %707 = arith.mulf %705, %706 : vector<4x64xf32>
    %708 = arith.addf %702, %707 : vector<4x64xf32>
    %c0_136 = arith.constant 0 : index
    %c98 = arith.constant 98 : index
    %709 = vector.load %arg1[%c0_136, %c98] : memref<4x128xf32, #tpu.memory_space<vmem>>, vector<4x1xf32>
    %710 = vector.extract_strided_slice %286 {offsets = [6, 0], sizes = [1, 64], strides = [1, 1]} : vector<12x64xf32> to vector<1x64xf32>
    %711 = vector.broadcast %709 : vector<4x1xf32> to vector<4x64xf32>
    %712 = vector.broadcast %710 : vector<1x64xf32> to vector<4x64xf32>
    %713 = arith.mulf %711, %712 : vector<4x64xf32>
    %714 = arith.addf %708, %713 : vector<4x64xf32>
    %c0_137 = arith.constant 0 : index
    %c99 = arith.constant 99 : index
    %715 = vector.load %arg1[%c0_137, %c99] : memref<4x128xf32, #tpu.memory_space<vmem>>, vector<4x1xf32>
    %716 = vector.extract_strided_slice %286 {offsets = [7, 0], sizes = [1, 64], strides = [1, 1]} : vector<12x64xf32> to vector<1x64xf32>
    %717 = vector.broadcast %715 : vector<4x1xf32> to vector<4x64xf32>
    %718 = vector.broadcast %716 : vector<1x64xf32> to vector<4x64xf32>
    %719 = arith.mulf %717, %718 : vector<4x64xf32>
    %720 = arith.addf %714, %719 : vector<4x64xf32>
    %c0_138 = arith.constant 0 : index
    %c100 = arith.constant 100 : index
    %721 = vector.load %arg1[%c0_138, %c100] : memref<4x128xf32, #tpu.memory_space<vmem>>, vector<4x1xf32>
    %722 = vector.extract_strided_slice %286 {offsets = [8, 0], sizes = [1, 64], strides = [1, 1]} : vector<12x64xf32> to vector<1x64xf32>
    %723 = vector.broadcast %721 : vector<4x1xf32> to vector<4x64xf32>
    %724 = vector.broadcast %722 : vector<1x64xf32> to vector<4x64xf32>
    %725 = arith.mulf %723, %724 : vector<4x64xf32>
    %726 = arith.addf %720, %725 : vector<4x64xf32>
    %c0_139 = arith.constant 0 : index
    %c101 = arith.constant 101 : index
    %727 = vector.load %arg1[%c0_139, %c101] : memref<4x128xf32, #tpu.memory_space<vmem>>, vector<4x1xf32>
    %728 = vector.extract_strided_slice %286 {offsets = [9, 0], sizes = [1, 64], strides = [1, 1]} : vector<12x64xf32> to vector<1x64xf32>
    %729 = vector.broadcast %727 : vector<4x1xf32> to vector<4x64xf32>
    %730 = vector.broadcast %728 : vector<1x64xf32> to vector<4x64xf32>
    %731 = arith.mulf %729, %730 : vector<4x64xf32>
    %732 = arith.addf %726, %731 : vector<4x64xf32>
    %c0_140 = arith.constant 0 : index
    %c102 = arith.constant 102 : index
    %733 = vector.load %arg1[%c0_140, %c102] : memref<4x128xf32, #tpu.memory_space<vmem>>, vector<4x1xf32>
    %734 = vector.extract_strided_slice %286 {offsets = [10, 0], sizes = [1, 64], strides = [1, 1]} : vector<12x64xf32> to vector<1x64xf32>
    %735 = vector.broadcast %733 : vector<4x1xf32> to vector<4x64xf32>
    %736 = vector.broadcast %734 : vector<1x64xf32> to vector<4x64xf32>
    %737 = arith.mulf %735, %736 : vector<4x64xf32>
    %738 = arith.addf %732, %737 : vector<4x64xf32>
    %c0_141 = arith.constant 0 : index
    %c103 = arith.constant 103 : index
    %739 = vector.load %arg1[%c0_141, %c103] : memref<4x128xf32, #tpu.memory_space<vmem>>, vector<4x1xf32>
    %740 = vector.extract_strided_slice %286 {offsets = [11, 0], sizes = [1, 64], strides = [1, 1]} : vector<12x64xf32> to vector<1x64xf32>
    %741 = vector.broadcast %739 : vector<4x1xf32> to vector<4x64xf32>
    %742 = vector.broadcast %740 : vector<1x64xf32> to vector<4x64xf32>
    %743 = arith.mulf %741, %742 : vector<4x64xf32>
    %744 = arith.addf %738, %743 : vector<4x64xf32>
    %745 = vector.broadcast %287 : vector<1x64xf32> to vector<4x64xf32>
    %746 = arith.mulf %744, %745 : vector<4x64xf32>
    %747 = vector.broadcast %288 : vector<1x64xf32> to vector<4x64xf32>
    %748 = arith.addf %746, %747 : vector<4x64xf32>
    %cst_142 = arith.constant 0.000000e+00 : f32
    %749 = vector.broadcast %cst_142 : f32 to vector<4x64xf32>
    %750 = arith.maximumf %748, %749 : vector<4x64xf32>
    %c0_143 = arith.constant 0 : index
    %c104 = arith.constant 104 : index
    %751 = vector.load %arg1[%c0_143, %c104] : memref<4x128xf32, #tpu.memory_space<vmem>>, vector<4x1xf32>
    %752 = vector.extract_strided_slice %286 {offsets = [0, 0], sizes = [1, 64], strides = [1, 1]} : vector<12x64xf32> to vector<1x64xf32>
    %753 = vector.broadcast %751 : vector<4x1xf32> to vector<4x64xf32>
    %754 = vector.broadcast %752 : vector<1x64xf32> to vector<4x64xf32>
    %755 = arith.mulf %753, %754 : vector<4x64xf32>
    %c0_144 = arith.constant 0 : index
    %c105 = arith.constant 105 : index
    %756 = vector.load %arg1[%c0_144, %c105] : memref<4x128xf32, #tpu.memory_space<vmem>>, vector<4x1xf32>
    %757 = vector.extract_strided_slice %286 {offsets = [1, 0], sizes = [1, 64], strides = [1, 1]} : vector<12x64xf32> to vector<1x64xf32>
    %758 = vector.broadcast %756 : vector<4x1xf32> to vector<4x64xf32>
    %759 = vector.broadcast %757 : vector<1x64xf32> to vector<4x64xf32>
    %760 = arith.mulf %758, %759 : vector<4x64xf32>
    %761 = arith.addf %755, %760 : vector<4x64xf32>
    %c0_145 = arith.constant 0 : index
    %c106 = arith.constant 106 : index
    %762 = vector.load %arg1[%c0_145, %c106] : memref<4x128xf32, #tpu.memory_space<vmem>>, vector<4x1xf32>
    %763 = vector.extract_strided_slice %286 {offsets = [2, 0], sizes = [1, 64], strides = [1, 1]} : vector<12x64xf32> to vector<1x64xf32>
    %764 = vector.broadcast %762 : vector<4x1xf32> to vector<4x64xf32>
    %765 = vector.broadcast %763 : vector<1x64xf32> to vector<4x64xf32>
    %766 = arith.mulf %764, %765 : vector<4x64xf32>
    %767 = arith.addf %761, %766 : vector<4x64xf32>
    %c0_146 = arith.constant 0 : index
    %c107 = arith.constant 107 : index
    %768 = vector.load %arg1[%c0_146, %c107] : memref<4x128xf32, #tpu.memory_space<vmem>>, vector<4x1xf32>
    %769 = vector.extract_strided_slice %286 {offsets = [3, 0], sizes = [1, 64], strides = [1, 1]} : vector<12x64xf32> to vector<1x64xf32>
    %770 = vector.broadcast %768 : vector<4x1xf32> to vector<4x64xf32>
    %771 = vector.broadcast %769 : vector<1x64xf32> to vector<4x64xf32>
    %772 = arith.mulf %770, %771 : vector<4x64xf32>
    %773 = arith.addf %767, %772 : vector<4x64xf32>
    %c0_147 = arith.constant 0 : index
    %c108 = arith.constant 108 : index
    %774 = vector.load %arg1[%c0_147, %c108] : memref<4x128xf32, #tpu.memory_space<vmem>>, vector<4x1xf32>
    %775 = vector.extract_strided_slice %286 {offsets = [4, 0], sizes = [1, 64], strides = [1, 1]} : vector<12x64xf32> to vector<1x64xf32>
    %776 = vector.broadcast %774 : vector<4x1xf32> to vector<4x64xf32>
    %777 = vector.broadcast %775 : vector<1x64xf32> to vector<4x64xf32>
    %778 = arith.mulf %776, %777 : vector<4x64xf32>
    %779 = arith.addf %773, %778 : vector<4x64xf32>
    %c0_148 = arith.constant 0 : index
    %c109 = arith.constant 109 : index
    %780 = vector.load %arg1[%c0_148, %c109] : memref<4x128xf32, #tpu.memory_space<vmem>>, vector<4x1xf32>
    %781 = vector.extract_strided_slice %286 {offsets = [5, 0], sizes = [1, 64], strides = [1, 1]} : vector<12x64xf32> to vector<1x64xf32>
    %782 = vector.broadcast %780 : vector<4x1xf32> to vector<4x64xf32>
    %783 = vector.broadcast %781 : vector<1x64xf32> to vector<4x64xf32>
    %784 = arith.mulf %782, %783 : vector<4x64xf32>
    %785 = arith.addf %779, %784 : vector<4x64xf32>
    %c0_149 = arith.constant 0 : index
    %c110 = arith.constant 110 : index
    %786 = vector.load %arg1[%c0_149, %c110] : memref<4x128xf32, #tpu.memory_space<vmem>>, vector<4x1xf32>
    %787 = vector.extract_strided_slice %286 {offsets = [6, 0], sizes = [1, 64], strides = [1, 1]} : vector<12x64xf32> to vector<1x64xf32>
    %788 = vector.broadcast %786 : vector<4x1xf32> to vector<4x64xf32>
    %789 = vector.broadcast %787 : vector<1x64xf32> to vector<4x64xf32>
    %790 = arith.mulf %788, %789 : vector<4x64xf32>
    %791 = arith.addf %785, %790 : vector<4x64xf32>
    %c0_150 = arith.constant 0 : index
    %c111 = arith.constant 111 : index
    %792 = vector.load %arg1[%c0_150, %c111] : memref<4x128xf32, #tpu.memory_space<vmem>>, vector<4x1xf32>
    %793 = vector.extract_strided_slice %286 {offsets = [7, 0], sizes = [1, 64], strides = [1, 1]} : vector<12x64xf32> to vector<1x64xf32>
    %794 = vector.broadcast %792 : vector<4x1xf32> to vector<4x64xf32>
    %795 = vector.broadcast %793 : vector<1x64xf32> to vector<4x64xf32>
    %796 = arith.mulf %794, %795 : vector<4x64xf32>
    %797 = arith.addf %791, %796 : vector<4x64xf32>
    %c0_151 = arith.constant 0 : index
    %c112 = arith.constant 112 : index
    %798 = vector.load %arg1[%c0_151, %c112] : memref<4x128xf32, #tpu.memory_space<vmem>>, vector<4x1xf32>
    %799 = vector.extract_strided_slice %286 {offsets = [8, 0], sizes = [1, 64], strides = [1, 1]} : vector<12x64xf32> to vector<1x64xf32>
    %800 = vector.broadcast %798 : vector<4x1xf32> to vector<4x64xf32>
    %801 = vector.broadcast %799 : vector<1x64xf32> to vector<4x64xf32>
    %802 = arith.mulf %800, %801 : vector<4x64xf32>
    %803 = arith.addf %797, %802 : vector<4x64xf32>
    %c0_152 = arith.constant 0 : index
    %c113 = arith.constant 113 : index
    %804 = vector.load %arg1[%c0_152, %c113] : memref<4x128xf32, #tpu.memory_space<vmem>>, vector<4x1xf32>
    %805 = vector.extract_strided_slice %286 {offsets = [9, 0], sizes = [1, 64], strides = [1, 1]} : vector<12x64xf32> to vector<1x64xf32>
    %806 = vector.broadcast %804 : vector<4x1xf32> to vector<4x64xf32>
    %807 = vector.broadcast %805 : vector<1x64xf32> to vector<4x64xf32>
    %808 = arith.mulf %806, %807 : vector<4x64xf32>
    %809 = arith.addf %803, %808 : vector<4x64xf32>
    %c0_153 = arith.constant 0 : index
    %c114 = arith.constant 114 : index
    %810 = vector.load %arg1[%c0_153, %c114] : memref<4x128xf32, #tpu.memory_space<vmem>>, vector<4x1xf32>
    %811 = vector.extract_strided_slice %286 {offsets = [10, 0], sizes = [1, 64], strides = [1, 1]} : vector<12x64xf32> to vector<1x64xf32>
    %812 = vector.broadcast %810 : vector<4x1xf32> to vector<4x64xf32>
    %813 = vector.broadcast %811 : vector<1x64xf32> to vector<4x64xf32>
    %814 = arith.mulf %812, %813 : vector<4x64xf32>
    %815 = arith.addf %809, %814 : vector<4x64xf32>
    %c0_154 = arith.constant 0 : index
    %c115 = arith.constant 115 : index
    %816 = vector.load %arg1[%c0_154, %c115] : memref<4x128xf32, #tpu.memory_space<vmem>>, vector<4x1xf32>
    %817 = vector.extract_strided_slice %286 {offsets = [11, 0], sizes = [1, 64], strides = [1, 1]} : vector<12x64xf32> to vector<1x64xf32>
    %818 = vector.broadcast %816 : vector<4x1xf32> to vector<4x64xf32>
    %819 = vector.broadcast %817 : vector<1x64xf32> to vector<4x64xf32>
    %820 = arith.mulf %818, %819 : vector<4x64xf32>
    %821 = arith.addf %815, %820 : vector<4x64xf32>
    %822 = vector.broadcast %287 : vector<1x64xf32> to vector<4x64xf32>
    %823 = arith.mulf %821, %822 : vector<4x64xf32>
    %824 = vector.broadcast %288 : vector<1x64xf32> to vector<4x64xf32>
    %825 = arith.addf %823, %824 : vector<4x64xf32>
    %cst_155 = arith.constant 0.000000e+00 : f32
    %826 = vector.broadcast %cst_155 : f32 to vector<4x64xf32>
    %827 = arith.maximumf %825, %826 : vector<4x64xf32>
    %c0_156 = arith.constant 0 : index
    %c116 = arith.constant 116 : index
    %828 = vector.load %arg1[%c0_156, %c116] : memref<4x128xf32, #tpu.memory_space<vmem>>, vector<4x1xf32>
    %829 = vector.extract_strided_slice %286 {offsets = [0, 0], sizes = [1, 64], strides = [1, 1]} : vector<12x64xf32> to vector<1x64xf32>
    %830 = vector.broadcast %828 : vector<4x1xf32> to vector<4x64xf32>
    %831 = vector.broadcast %829 : vector<1x64xf32> to vector<4x64xf32>
    %832 = arith.mulf %830, %831 : vector<4x64xf32>
    %c0_157 = arith.constant 0 : index
    %c117 = arith.constant 117 : index
    %833 = vector.load %arg1[%c0_157, %c117] : memref<4x128xf32, #tpu.memory_space<vmem>>, vector<4x1xf32>
    %834 = vector.extract_strided_slice %286 {offsets = [1, 0], sizes = [1, 64], strides = [1, 1]} : vector<12x64xf32> to vector<1x64xf32>
    %835 = vector.broadcast %833 : vector<4x1xf32> to vector<4x64xf32>
    %836 = vector.broadcast %834 : vector<1x64xf32> to vector<4x64xf32>
    %837 = arith.mulf %835, %836 : vector<4x64xf32>
    %838 = arith.addf %832, %837 : vector<4x64xf32>
    %c0_158 = arith.constant 0 : index
    %c118 = arith.constant 118 : index
    %839 = vector.load %arg1[%c0_158, %c118] : memref<4x128xf32, #tpu.memory_space<vmem>>, vector<4x1xf32>
    %840 = vector.extract_strided_slice %286 {offsets = [2, 0], sizes = [1, 64], strides = [1, 1]} : vector<12x64xf32> to vector<1x64xf32>
    %841 = vector.broadcast %839 : vector<4x1xf32> to vector<4x64xf32>
    %842 = vector.broadcast %840 : vector<1x64xf32> to vector<4x64xf32>
    %843 = arith.mulf %841, %842 : vector<4x64xf32>
    %844 = arith.addf %838, %843 : vector<4x64xf32>
    %c0_159 = arith.constant 0 : index
    %c119 = arith.constant 119 : index
    %845 = vector.load %arg1[%c0_159, %c119] : memref<4x128xf32, #tpu.memory_space<vmem>>, vector<4x1xf32>
    %846 = vector.extract_strided_slice %286 {offsets = [3, 0], sizes = [1, 64], strides = [1, 1]} : vector<12x64xf32> to vector<1x64xf32>
    %847 = vector.broadcast %845 : vector<4x1xf32> to vector<4x64xf32>
    %848 = vector.broadcast %846 : vector<1x64xf32> to vector<4x64xf32>
    %849 = arith.mulf %847, %848 : vector<4x64xf32>
    %850 = arith.addf %844, %849 : vector<4x64xf32>
    %c0_160 = arith.constant 0 : index
    %c120 = arith.constant 120 : index
    %851 = vector.load %arg1[%c0_160, %c120] : memref<4x128xf32, #tpu.memory_space<vmem>>, vector<4x1xf32>
    %852 = vector.extract_strided_slice %286 {offsets = [4, 0], sizes = [1, 64], strides = [1, 1]} : vector<12x64xf32> to vector<1x64xf32>
    %853 = vector.broadcast %851 : vector<4x1xf32> to vector<4x64xf32>
    %854 = vector.broadcast %852 : vector<1x64xf32> to vector<4x64xf32>
    %855 = arith.mulf %853, %854 : vector<4x64xf32>
    %856 = arith.addf %850, %855 : vector<4x64xf32>
    %c0_161 = arith.constant 0 : index
    %c121 = arith.constant 121 : index
    %857 = vector.load %arg1[%c0_161, %c121] : memref<4x128xf32, #tpu.memory_space<vmem>>, vector<4x1xf32>
    %858 = vector.extract_strided_slice %286 {offsets = [5, 0], sizes = [1, 64], strides = [1, 1]} : vector<12x64xf32> to vector<1x64xf32>
    %859 = vector.broadcast %857 : vector<4x1xf32> to vector<4x64xf32>
    %860 = vector.broadcast %858 : vector<1x64xf32> to vector<4x64xf32>
    %861 = arith.mulf %859, %860 : vector<4x64xf32>
    %862 = arith.addf %856, %861 : vector<4x64xf32>
    %c0_162 = arith.constant 0 : index
    %c122 = arith.constant 122 : index
    %863 = vector.load %arg1[%c0_162, %c122] : memref<4x128xf32, #tpu.memory_space<vmem>>, vector<4x1xf32>
    %864 = vector.extract_strided_slice %286 {offsets = [6, 0], sizes = [1, 64], strides = [1, 1]} : vector<12x64xf32> to vector<1x64xf32>
    %865 = vector.broadcast %863 : vector<4x1xf32> to vector<4x64xf32>
    %866 = vector.broadcast %864 : vector<1x64xf32> to vector<4x64xf32>
    %867 = arith.mulf %865, %866 : vector<4x64xf32>
    %868 = arith.addf %862, %867 : vector<4x64xf32>
    %c0_163 = arith.constant 0 : index
    %c123 = arith.constant 123 : index
    %869 = vector.load %arg1[%c0_163, %c123] : memref<4x128xf32, #tpu.memory_space<vmem>>, vector<4x1xf32>
    %870 = vector.extract_strided_slice %286 {offsets = [7, 0], sizes = [1, 64], strides = [1, 1]} : vector<12x64xf32> to vector<1x64xf32>
    %871 = vector.broadcast %869 : vector<4x1xf32> to vector<4x64xf32>
    %872 = vector.broadcast %870 : vector<1x64xf32> to vector<4x64xf32>
    %873 = arith.mulf %871, %872 : vector<4x64xf32>
    %874 = arith.addf %868, %873 : vector<4x64xf32>
    %c0_164 = arith.constant 0 : index
    %c124 = arith.constant 124 : index
    %875 = vector.load %arg1[%c0_164, %c124] : memref<4x128xf32, #tpu.memory_space<vmem>>, vector<4x1xf32>
    %876 = vector.extract_strided_slice %286 {offsets = [8, 0], sizes = [1, 64], strides = [1, 1]} : vector<12x64xf32> to vector<1x64xf32>
    %877 = vector.broadcast %875 : vector<4x1xf32> to vector<4x64xf32>
    %878 = vector.broadcast %876 : vector<1x64xf32> to vector<4x64xf32>
    %879 = arith.mulf %877, %878 : vector<4x64xf32>
    %880 = arith.addf %874, %879 : vector<4x64xf32>
    %c0_165 = arith.constant 0 : index
    %c125 = arith.constant 125 : index
    %881 = vector.load %arg1[%c0_165, %c125] : memref<4x128xf32, #tpu.memory_space<vmem>>, vector<4x1xf32>
    %882 = vector.extract_strided_slice %286 {offsets = [9, 0], sizes = [1, 64], strides = [1, 1]} : vector<12x64xf32> to vector<1x64xf32>
    %883 = vector.broadcast %881 : vector<4x1xf32> to vector<4x64xf32>
    %884 = vector.broadcast %882 : vector<1x64xf32> to vector<4x64xf32>
    %885 = arith.mulf %883, %884 : vector<4x64xf32>
    %886 = arith.addf %880, %885 : vector<4x64xf32>
    %c0_166 = arith.constant 0 : index
    %c126 = arith.constant 126 : index
    %887 = vector.load %arg1[%c0_166, %c126] : memref<4x128xf32, #tpu.memory_space<vmem>>, vector<4x1xf32>
    %888 = vector.extract_strided_slice %286 {offsets = [10, 0], sizes = [1, 64], strides = [1, 1]} : vector<12x64xf32> to vector<1x64xf32>
    %889 = vector.broadcast %887 : vector<4x1xf32> to vector<4x64xf32>
    %890 = vector.broadcast %888 : vector<1x64xf32> to vector<4x64xf32>
    %891 = arith.mulf %889, %890 : vector<4x64xf32>
    %892 = arith.addf %886, %891 : vector<4x64xf32>
    %c0_167 = arith.constant 0 : index
    %c127 = arith.constant 127 : index
    %893 = vector.load %arg1[%c0_167, %c127] : memref<4x128xf32, #tpu.memory_space<vmem>>, vector<4x1xf32>
    %894 = vector.extract_strided_slice %286 {offsets = [11, 0], sizes = [1, 64], strides = [1, 1]} : vector<12x64xf32> to vector<1x64xf32>
    %895 = vector.broadcast %893 : vector<4x1xf32> to vector<4x64xf32>
    %896 = vector.broadcast %894 : vector<1x64xf32> to vector<4x64xf32>
    %897 = arith.mulf %895, %896 : vector<4x64xf32>
    %898 = arith.addf %892, %897 : vector<4x64xf32>
    %899 = vector.broadcast %287 : vector<1x64xf32> to vector<4x64xf32>
    %900 = arith.mulf %898, %899 : vector<4x64xf32>
    %901 = vector.broadcast %288 : vector<1x64xf32> to vector<4x64xf32>
    %902 = arith.addf %900, %901 : vector<4x64xf32>
    %cst_168 = arith.constant 0.000000e+00 : f32
    %903 = vector.broadcast %cst_168 : f32 to vector<4x64xf32>
    %904 = arith.maximumf %902, %903 : vector<4x64xf32>
    %905 = arith.maximumf %365, %442 : vector<4x64xf32>
    %906 = arith.maximumf %519, %596 : vector<4x64xf32>
    %907 = arith.maximumf %673, %750 : vector<4x64xf32>
    %908 = arith.maximumf %827, %904 : vector<4x64xf32>
    %c0_169 = arith.constant 0 : index
    %c0_170 = arith.constant 0 : index
    %909 = vector.load %arg12[%c0_169, %c0_170] : memref<64x32xf32, #tpu.memory_space<vmem>>, vector<64x32xf32>
    %c0_171 = arith.constant 0 : index
    %c0_172 = arith.constant 0 : index
    %910 = vector.load %arg13[%c0_171, %c0_172] : memref<1x32xf32, #tpu.memory_space<vmem>>, vector<1x32xf32>
    %c0_173 = arith.constant 0 : index
    %c0_174 = arith.constant 0 : index
    %911 = vector.load %arg14[%c0_173, %c0_174] : memref<1x32xf32, #tpu.memory_space<vmem>>, vector<1x32xf32>
    %cst_175 = arith.constant dense<0.000000e+00> : vector<4x32xf32>
    %912 = tpu.matmul %905, %909, %cst_175 {dimension_numbers = #tpu.dot_dimension_numbers<[1], [0], [0], [1], [0, 0, 1, 1], [], []>} : vector<4x64xf32>, vector<64x32xf32>, vector<4x32xf32> -> vector<4x32xf32>
    %913 = vector.broadcast %910 : vector<1x32xf32> to vector<4x32xf32>
    %914 = arith.mulf %912, %913 : vector<4x32xf32>
    %915 = vector.broadcast %911 : vector<1x32xf32> to vector<4x32xf32>
    %916 = arith.addf %914, %915 : vector<4x32xf32>
    %cst_176 = arith.constant 0.000000e+00 : f32
    %917 = vector.broadcast %cst_176 : f32 to vector<4x32xf32>
    %918 = arith.maximumf %916, %917 : vector<4x32xf32>
    %cst_177 = arith.constant dense<0.000000e+00> : vector<4x32xf32>
    %919 = tpu.matmul %906, %909, %cst_177 {dimension_numbers = #tpu.dot_dimension_numbers<[1], [0], [0], [1], [0, 0, 1, 1], [], []>} : vector<4x64xf32>, vector<64x32xf32>, vector<4x32xf32> -> vector<4x32xf32>
    %920 = vector.broadcast %910 : vector<1x32xf32> to vector<4x32xf32>
    %921 = arith.mulf %919, %920 : vector<4x32xf32>
    %922 = vector.broadcast %911 : vector<1x32xf32> to vector<4x32xf32>
    %923 = arith.addf %921, %922 : vector<4x32xf32>
    %cst_178 = arith.constant 0.000000e+00 : f32
    %924 = vector.broadcast %cst_178 : f32 to vector<4x32xf32>
    %925 = arith.maximumf %923, %924 : vector<4x32xf32>
    %cst_179 = arith.constant dense<0.000000e+00> : vector<4x32xf32>
    %926 = tpu.matmul %907, %909, %cst_179 {dimension_numbers = #tpu.dot_dimension_numbers<[1], [0], [0], [1], [0, 0, 1, 1], [], []>} : vector<4x64xf32>, vector<64x32xf32>, vector<4x32xf32> -> vector<4x32xf32>
    %927 = vector.broadcast %910 : vector<1x32xf32> to vector<4x32xf32>
    %928 = arith.mulf %926, %927 : vector<4x32xf32>
    %929 = vector.broadcast %911 : vector<1x32xf32> to vector<4x32xf32>
    %930 = arith.addf %928, %929 : vector<4x32xf32>
    %cst_180 = arith.constant 0.000000e+00 : f32
    %931 = vector.broadcast %cst_180 : f32 to vector<4x32xf32>
    %932 = arith.maximumf %930, %931 : vector<4x32xf32>
    %cst_181 = arith.constant dense<0.000000e+00> : vector<4x32xf32>
    %933 = tpu.matmul %908, %909, %cst_181 {dimension_numbers = #tpu.dot_dimension_numbers<[1], [0], [0], [1], [0, 0, 1, 1], [], []>} : vector<4x64xf32>, vector<64x32xf32>, vector<4x32xf32> -> vector<4x32xf32>
    %934 = vector.broadcast %910 : vector<1x32xf32> to vector<4x32xf32>
    %935 = arith.mulf %933, %934 : vector<4x32xf32>
    %936 = vector.broadcast %911 : vector<1x32xf32> to vector<4x32xf32>
    %937 = arith.addf %935, %936 : vector<4x32xf32>
    %cst_182 = arith.constant 0.000000e+00 : f32
    %938 = vector.broadcast %cst_182 : f32 to vector<4x32xf32>
    %939 = arith.maximumf %937, %938 : vector<4x32xf32>
    %940 = arith.maximumf %918, %925 : vector<4x32xf32>
    %941 = arith.maximumf %932, %939 : vector<4x32xf32>
    %c0_183 = arith.constant 0 : index
    %c0_184 = arith.constant 0 : index
    %942 = vector.load %arg16[%c0_183, %c0_184] : memref<1x8xf32, #tpu.memory_space<vmem>>, vector<1x1xf32>
    %c0_185 = arith.constant 0 : index
    %c0_186 = arith.constant 0 : index
    %943 = vector.load %arg17[%c0_185, %c0_186] : memref<1x8xf32, #tpu.memory_space<vmem>>, vector<1x1xf32>
    %c0_187 = arith.constant 0 : index
    %c0_188 = arith.constant 0 : index
    %944 = vector.load %arg15[%c0_187, %c0_188] : memref<8x2xf32, #tpu.memory_space<vmem>>, vector<1x1xf32>
    %c0_189 = arith.constant 0 : index
    %c0_190 = arith.constant 0 : index
    %945 = vector.load %arg2[%c0_189, %c0_190] : memref<4x1152xf32, #tpu.memory_space<vmem>>, vector<4x144xf32>
    %946 = vector.broadcast %944 : vector<1x1xf32> to vector<4x144xf32>
    %947 = arith.mulf %946, %945 : vector<4x144xf32>
    %c0_191 = arith.constant 0 : index
    %c1_192 = arith.constant 1 : index
    %948 = vector.load %arg15[%c0_191, %c1_192] : memref<8x2xf32, #tpu.memory_space<vmem>>, vector<1x1xf32>
    %c0_193 = arith.constant 0 : index
    %c144 = arith.constant 144 : index
    %949 = vector.load %arg2[%c0_193, %c144] : memref<4x1152xf32, #tpu.memory_space<vmem>>, vector<4x144xf32>
    %950 = vector.broadcast %948 : vector<1x1xf32> to vector<4x144xf32>
    %951 = arith.mulf %950, %949 : vector<4x144xf32>
    %952 = arith.addf %947, %951 : vector<4x144xf32>
    %953 = vector.broadcast %942 : vector<1x1xf32> to vector<4x144xf32>
    %954 = arith.mulf %952, %953 : vector<4x144xf32>
    %955 = vector.broadcast %943 : vector<1x1xf32> to vector<4x144xf32>
    %956 = arith.addf %954, %955 : vector<4x144xf32>
    %cst_194 = arith.constant 0.000000e+00 : f32
    %957 = vector.broadcast %cst_194 : f32 to vector<4x144xf32>
    %958 = arith.maximumf %956, %957 : vector<4x144xf32>
    %c0_195 = arith.constant 0 : index
    %c0_196 = arith.constant 0 : index
    %959 = vector.load %arg15[%c0_195, %c0_196] : memref<8x2xf32, #tpu.memory_space<vmem>>, vector<1x1xf32>
    %c0_197 = arith.constant 0 : index
    %c288 = arith.constant 288 : index
    %960 = vector.load %arg2[%c0_197, %c288] : memref<4x1152xf32, #tpu.memory_space<vmem>>, vector<4x144xf32>
    %961 = vector.broadcast %959 : vector<1x1xf32> to vector<4x144xf32>
    %962 = arith.mulf %961, %960 : vector<4x144xf32>
    %c0_198 = arith.constant 0 : index
    %c1_199 = arith.constant 1 : index
    %963 = vector.load %arg15[%c0_198, %c1_199] : memref<8x2xf32, #tpu.memory_space<vmem>>, vector<1x1xf32>
    %c0_200 = arith.constant 0 : index
    %c432 = arith.constant 432 : index
    %964 = vector.load %arg2[%c0_200, %c432] : memref<4x1152xf32, #tpu.memory_space<vmem>>, vector<4x144xf32>
    %965 = vector.broadcast %963 : vector<1x1xf32> to vector<4x144xf32>
    %966 = arith.mulf %965, %964 : vector<4x144xf32>
    %967 = arith.addf %962, %966 : vector<4x144xf32>
    %968 = vector.broadcast %942 : vector<1x1xf32> to vector<4x144xf32>
    %969 = arith.mulf %967, %968 : vector<4x144xf32>
    %970 = vector.broadcast %943 : vector<1x1xf32> to vector<4x144xf32>
    %971 = arith.addf %969, %970 : vector<4x144xf32>
    %cst_201 = arith.constant 0.000000e+00 : f32
    %972 = vector.broadcast %cst_201 : f32 to vector<4x144xf32>
    %973 = arith.maximumf %971, %972 : vector<4x144xf32>
    %974 = arith.maximumf %958, %973 : vector<4x144xf32>
    %c0_202 = arith.constant 0 : index
    %c0_203 = arith.constant 0 : index
    %975 = vector.load %arg15[%c0_202, %c0_203] : memref<8x2xf32, #tpu.memory_space<vmem>>, vector<1x1xf32>
    %c0_204 = arith.constant 0 : index
    %c576 = arith.constant 576 : index
    %976 = vector.load %arg2[%c0_204, %c576] : memref<4x1152xf32, #tpu.memory_space<vmem>>, vector<4x144xf32>
    %977 = vector.broadcast %975 : vector<1x1xf32> to vector<4x144xf32>
    %978 = arith.mulf %977, %976 : vector<4x144xf32>
    %c0_205 = arith.constant 0 : index
    %c1_206 = arith.constant 1 : index
    %979 = vector.load %arg15[%c0_205, %c1_206] : memref<8x2xf32, #tpu.memory_space<vmem>>, vector<1x1xf32>
    %c0_207 = arith.constant 0 : index
    %c720 = arith.constant 720 : index
    %980 = vector.load %arg2[%c0_207, %c720] : memref<4x1152xf32, #tpu.memory_space<vmem>>, vector<4x144xf32>
    %981 = vector.broadcast %979 : vector<1x1xf32> to vector<4x144xf32>
    %982 = arith.mulf %981, %980 : vector<4x144xf32>
    %983 = arith.addf %978, %982 : vector<4x144xf32>
    %984 = vector.broadcast %942 : vector<1x1xf32> to vector<4x144xf32>
    %985 = arith.mulf %983, %984 : vector<4x144xf32>
    %986 = vector.broadcast %943 : vector<1x1xf32> to vector<4x144xf32>
    %987 = arith.addf %985, %986 : vector<4x144xf32>
    %cst_208 = arith.constant 0.000000e+00 : f32
    %988 = vector.broadcast %cst_208 : f32 to vector<4x144xf32>
    %989 = arith.maximumf %987, %988 : vector<4x144xf32>
    %990 = arith.maximumf %974, %989 : vector<4x144xf32>
    %c0_209 = arith.constant 0 : index
    %c0_210 = arith.constant 0 : index
    %991 = vector.load %arg15[%c0_209, %c0_210] : memref<8x2xf32, #tpu.memory_space<vmem>>, vector<1x1xf32>
    %c0_211 = arith.constant 0 : index
    %c864 = arith.constant 864 : index
    %992 = vector.load %arg2[%c0_211, %c864] : memref<4x1152xf32, #tpu.memory_space<vmem>>, vector<4x144xf32>
    %993 = vector.broadcast %991 : vector<1x1xf32> to vector<4x144xf32>
    %994 = arith.mulf %993, %992 : vector<4x144xf32>
    %c0_212 = arith.constant 0 : index
    %c1_213 = arith.constant 1 : index
    %995 = vector.load %arg15[%c0_212, %c1_213] : memref<8x2xf32, #tpu.memory_space<vmem>>, vector<1x1xf32>
    %c0_214 = arith.constant 0 : index
    %c1008 = arith.constant 1008 : index
    %996 = vector.load %arg2[%c0_214, %c1008] : memref<4x1152xf32, #tpu.memory_space<vmem>>, vector<4x144xf32>
    %997 = vector.broadcast %995 : vector<1x1xf32> to vector<4x144xf32>
    %998 = arith.mulf %997, %996 : vector<4x144xf32>
    %999 = arith.addf %994, %998 : vector<4x144xf32>
    %1000 = vector.broadcast %942 : vector<1x1xf32> to vector<4x144xf32>
    %1001 = arith.mulf %999, %1000 : vector<4x144xf32>
    %1002 = vector.broadcast %943 : vector<1x1xf32> to vector<4x144xf32>
    %1003 = arith.addf %1001, %1002 : vector<4x144xf32>
    %cst_215 = arith.constant 0.000000e+00 : f32
    %1004 = vector.broadcast %cst_215 : f32 to vector<4x144xf32>
    %1005 = arith.maximumf %1003, %1004 : vector<4x144xf32>
    %1006 = arith.maximumf %990, %1005 : vector<4x144xf32>
    %c0_216 = arith.constant 0 : index
    %c1_217 = arith.constant 1 : index
    %1007 = vector.load %arg16[%c0_216, %c1_217] : memref<1x8xf32, #tpu.memory_space<vmem>>, vector<1x1xf32>
    %c0_218 = arith.constant 0 : index
    %c1_219 = arith.constant 1 : index
    %1008 = vector.load %arg17[%c0_218, %c1_219] : memref<1x8xf32, #tpu.memory_space<vmem>>, vector<1x1xf32>
    %c1_220 = arith.constant 1 : index
    %c0_221 = arith.constant 0 : index
    %1009 = vector.load %arg15[%c1_220, %c0_221] : memref<8x2xf32, #tpu.memory_space<vmem>>, vector<1x1xf32>
    %c0_222 = arith.constant 0 : index
    %c0_223 = arith.constant 0 : index
    %1010 = vector.load %arg2[%c0_222, %c0_223] : memref<4x1152xf32, #tpu.memory_space<vmem>>, vector<4x144xf32>
    %1011 = vector.broadcast %1009 : vector<1x1xf32> to vector<4x144xf32>
    %1012 = arith.mulf %1011, %1010 : vector<4x144xf32>
    %c1_224 = arith.constant 1 : index
    %c1_225 = arith.constant 1 : index
    %1013 = vector.load %arg15[%c1_224, %c1_225] : memref<8x2xf32, #tpu.memory_space<vmem>>, vector<1x1xf32>
    %c0_226 = arith.constant 0 : index
    %c144_227 = arith.constant 144 : index
    %1014 = vector.load %arg2[%c0_226, %c144_227] : memref<4x1152xf32, #tpu.memory_space<vmem>>, vector<4x144xf32>
    %1015 = vector.broadcast %1013 : vector<1x1xf32> to vector<4x144xf32>
    %1016 = arith.mulf %1015, %1014 : vector<4x144xf32>
    %1017 = arith.addf %1012, %1016 : vector<4x144xf32>
    %1018 = vector.broadcast %1007 : vector<1x1xf32> to vector<4x144xf32>
    %1019 = arith.mulf %1017, %1018 : vector<4x144xf32>
    %1020 = vector.broadcast %1008 : vector<1x1xf32> to vector<4x144xf32>
    %1021 = arith.addf %1019, %1020 : vector<4x144xf32>
    %cst_228 = arith.constant 0.000000e+00 : f32
    %1022 = vector.broadcast %cst_228 : f32 to vector<4x144xf32>
    %1023 = arith.maximumf %1021, %1022 : vector<4x144xf32>
    %c1_229 = arith.constant 1 : index
    %c0_230 = arith.constant 0 : index
    %1024 = vector.load %arg15[%c1_229, %c0_230] : memref<8x2xf32, #tpu.memory_space<vmem>>, vector<1x1xf32>
    %c0_231 = arith.constant 0 : index
    %c288_232 = arith.constant 288 : index
    %1025 = vector.load %arg2[%c0_231, %c288_232] : memref<4x1152xf32, #tpu.memory_space<vmem>>, vector<4x144xf32>
    %1026 = vector.broadcast %1024 : vector<1x1xf32> to vector<4x144xf32>
    %1027 = arith.mulf %1026, %1025 : vector<4x144xf32>
    %c1_233 = arith.constant 1 : index
    %c1_234 = arith.constant 1 : index
    %1028 = vector.load %arg15[%c1_233, %c1_234] : memref<8x2xf32, #tpu.memory_space<vmem>>, vector<1x1xf32>
    %c0_235 = arith.constant 0 : index
    %c432_236 = arith.constant 432 : index
    %1029 = vector.load %arg2[%c0_235, %c432_236] : memref<4x1152xf32, #tpu.memory_space<vmem>>, vector<4x144xf32>
    %1030 = vector.broadcast %1028 : vector<1x1xf32> to vector<4x144xf32>
    %1031 = arith.mulf %1030, %1029 : vector<4x144xf32>
    %1032 = arith.addf %1027, %1031 : vector<4x144xf32>
    %1033 = vector.broadcast %1007 : vector<1x1xf32> to vector<4x144xf32>
    %1034 = arith.mulf %1032, %1033 : vector<4x144xf32>
    %1035 = vector.broadcast %1008 : vector<1x1xf32> to vector<4x144xf32>
    %1036 = arith.addf %1034, %1035 : vector<4x144xf32>
    %cst_237 = arith.constant 0.000000e+00 : f32
    %1037 = vector.broadcast %cst_237 : f32 to vector<4x144xf32>
    %1038 = arith.maximumf %1036, %1037 : vector<4x144xf32>
    %1039 = arith.maximumf %1023, %1038 : vector<4x144xf32>
    %c1_238 = arith.constant 1 : index
    %c0_239 = arith.constant 0 : index
    %1040 = vector.load %arg15[%c1_238, %c0_239] : memref<8x2xf32, #tpu.memory_space<vmem>>, vector<1x1xf32>
    %c0_240 = arith.constant 0 : index
    %c576_241 = arith.constant 576 : index
    %1041 = vector.load %arg2[%c0_240, %c576_241] : memref<4x1152xf32, #tpu.memory_space<vmem>>, vector<4x144xf32>
    %1042 = vector.broadcast %1040 : vector<1x1xf32> to vector<4x144xf32>
    %1043 = arith.mulf %1042, %1041 : vector<4x144xf32>
    %c1_242 = arith.constant 1 : index
    %c1_243 = arith.constant 1 : index
    %1044 = vector.load %arg15[%c1_242, %c1_243] : memref<8x2xf32, #tpu.memory_space<vmem>>, vector<1x1xf32>
    %c0_244 = arith.constant 0 : index
    %c720_245 = arith.constant 720 : index
    %1045 = vector.load %arg2[%c0_244, %c720_245] : memref<4x1152xf32, #tpu.memory_space<vmem>>, vector<4x144xf32>
    %1046 = vector.broadcast %1044 : vector<1x1xf32> to vector<4x144xf32>
    %1047 = arith.mulf %1046, %1045 : vector<4x144xf32>
    %1048 = arith.addf %1043, %1047 : vector<4x144xf32>
    %1049 = vector.broadcast %1007 : vector<1x1xf32> to vector<4x144xf32>
    %1050 = arith.mulf %1048, %1049 : vector<4x144xf32>
    %1051 = vector.broadcast %1008 : vector<1x1xf32> to vector<4x144xf32>
    %1052 = arith.addf %1050, %1051 : vector<4x144xf32>
    %cst_246 = arith.constant 0.000000e+00 : f32
    %1053 = vector.broadcast %cst_246 : f32 to vector<4x144xf32>
    %1054 = arith.maximumf %1052, %1053 : vector<4x144xf32>
    %1055 = arith.maximumf %1039, %1054 : vector<4x144xf32>
    %c1_247 = arith.constant 1 : index
    %c0_248 = arith.constant 0 : index
    %1056 = vector.load %arg15[%c1_247, %c0_248] : memref<8x2xf32, #tpu.memory_space<vmem>>, vector<1x1xf32>
    %c0_249 = arith.constant 0 : index
    %c864_250 = arith.constant 864 : index
    %1057 = vector.load %arg2[%c0_249, %c864_250] : memref<4x1152xf32, #tpu.memory_space<vmem>>, vector<4x144xf32>
    %1058 = vector.broadcast %1056 : vector<1x1xf32> to vector<4x144xf32>
    %1059 = arith.mulf %1058, %1057 : vector<4x144xf32>
    %c1_251 = arith.constant 1 : index
    %c1_252 = arith.constant 1 : index
    %1060 = vector.load %arg15[%c1_251, %c1_252] : memref<8x2xf32, #tpu.memory_space<vmem>>, vector<1x1xf32>
    %c0_253 = arith.constant 0 : index
    %c1008_254 = arith.constant 1008 : index
    %1061 = vector.load %arg2[%c0_253, %c1008_254] : memref<4x1152xf32, #tpu.memory_space<vmem>>, vector<4x144xf32>
    %1062 = vector.broadcast %1060 : vector<1x1xf32> to vector<4x144xf32>
    %1063 = arith.mulf %1062, %1061 : vector<4x144xf32>
    %1064 = arith.addf %1059, %1063 : vector<4x144xf32>
    %1065 = vector.broadcast %1007 : vector<1x1xf32> to vector<4x144xf32>
    %1066 = arith.mulf %1064, %1065 : vector<4x144xf32>
    %1067 = vector.broadcast %1008 : vector<1x1xf32> to vector<4x144xf32>
    %1068 = arith.addf %1066, %1067 : vector<4x144xf32>
    %cst_255 = arith.constant 0.000000e+00 : f32
    %1069 = vector.broadcast %cst_255 : f32 to vector<4x144xf32>
    %1070 = arith.maximumf %1068, %1069 : vector<4x144xf32>
    %1071 = arith.maximumf %1055, %1070 : vector<4x144xf32>
    %c0_256 = arith.constant 0 : index
    %c2_257 = arith.constant 2 : index
    %1072 = vector.load %arg16[%c0_256, %c2_257] : memref<1x8xf32, #tpu.memory_space<vmem>>, vector<1x1xf32>
    %c0_258 = arith.constant 0 : index
    %c2_259 = arith.constant 2 : index
    %1073 = vector.load %arg17[%c0_258, %c2_259] : memref<1x8xf32, #tpu.memory_space<vmem>>, vector<1x1xf32>
    %c2_260 = arith.constant 2 : index
    %c0_261 = arith.constant 0 : index
    %1074 = vector.load %arg15[%c2_260, %c0_261] : memref<8x2xf32, #tpu.memory_space<vmem>>, vector<1x1xf32>
    %c0_262 = arith.constant 0 : index
    %c0_263 = arith.constant 0 : index
    %1075 = vector.load %arg2[%c0_262, %c0_263] : memref<4x1152xf32, #tpu.memory_space<vmem>>, vector<4x144xf32>
    %1076 = vector.broadcast %1074 : vector<1x1xf32> to vector<4x144xf32>
    %1077 = arith.mulf %1076, %1075 : vector<4x144xf32>
    %c2_264 = arith.constant 2 : index
    %c1_265 = arith.constant 1 : index
    %1078 = vector.load %arg15[%c2_264, %c1_265] : memref<8x2xf32, #tpu.memory_space<vmem>>, vector<1x1xf32>
    %c0_266 = arith.constant 0 : index
    %c144_267 = arith.constant 144 : index
    %1079 = vector.load %arg2[%c0_266, %c144_267] : memref<4x1152xf32, #tpu.memory_space<vmem>>, vector<4x144xf32>
    %1080 = vector.broadcast %1078 : vector<1x1xf32> to vector<4x144xf32>
    %1081 = arith.mulf %1080, %1079 : vector<4x144xf32>
    %1082 = arith.addf %1077, %1081 : vector<4x144xf32>
    %1083 = vector.broadcast %1072 : vector<1x1xf32> to vector<4x144xf32>
    %1084 = arith.mulf %1082, %1083 : vector<4x144xf32>
    %1085 = vector.broadcast %1073 : vector<1x1xf32> to vector<4x144xf32>
    %1086 = arith.addf %1084, %1085 : vector<4x144xf32>
    %cst_268 = arith.constant 0.000000e+00 : f32
    %1087 = vector.broadcast %cst_268 : f32 to vector<4x144xf32>
    %1088 = arith.maximumf %1086, %1087 : vector<4x144xf32>
    %c2_269 = arith.constant 2 : index
    %c0_270 = arith.constant 0 : index
    %1089 = vector.load %arg15[%c2_269, %c0_270] : memref<8x2xf32, #tpu.memory_space<vmem>>, vector<1x1xf32>
    %c0_271 = arith.constant 0 : index
    %c288_272 = arith.constant 288 : index
    %1090 = vector.load %arg2[%c0_271, %c288_272] : memref<4x1152xf32, #tpu.memory_space<vmem>>, vector<4x144xf32>
    %1091 = vector.broadcast %1089 : vector<1x1xf32> to vector<4x144xf32>
    %1092 = arith.mulf %1091, %1090 : vector<4x144xf32>
    %c2_273 = arith.constant 2 : index
    %c1_274 = arith.constant 1 : index
    %1093 = vector.load %arg15[%c2_273, %c1_274] : memref<8x2xf32, #tpu.memory_space<vmem>>, vector<1x1xf32>
    %c0_275 = arith.constant 0 : index
    %c432_276 = arith.constant 432 : index
    %1094 = vector.load %arg2[%c0_275, %c432_276] : memref<4x1152xf32, #tpu.memory_space<vmem>>, vector<4x144xf32>
    %1095 = vector.broadcast %1093 : vector<1x1xf32> to vector<4x144xf32>
    %1096 = arith.mulf %1095, %1094 : vector<4x144xf32>
    %1097 = arith.addf %1092, %1096 : vector<4x144xf32>
    %1098 = vector.broadcast %1072 : vector<1x1xf32> to vector<4x144xf32>
    %1099 = arith.mulf %1097, %1098 : vector<4x144xf32>
    %1100 = vector.broadcast %1073 : vector<1x1xf32> to vector<4x144xf32>
    %1101 = arith.addf %1099, %1100 : vector<4x144xf32>
    %cst_277 = arith.constant 0.000000e+00 : f32
    %1102 = vector.broadcast %cst_277 : f32 to vector<4x144xf32>
    %1103 = arith.maximumf %1101, %1102 : vector<4x144xf32>
    %1104 = arith.maximumf %1088, %1103 : vector<4x144xf32>
    %c2_278 = arith.constant 2 : index
    %c0_279 = arith.constant 0 : index
    %1105 = vector.load %arg15[%c2_278, %c0_279] : memref<8x2xf32, #tpu.memory_space<vmem>>, vector<1x1xf32>
    %c0_280 = arith.constant 0 : index
    %c576_281 = arith.constant 576 : index
    %1106 = vector.load %arg2[%c0_280, %c576_281] : memref<4x1152xf32, #tpu.memory_space<vmem>>, vector<4x144xf32>
    %1107 = vector.broadcast %1105 : vector<1x1xf32> to vector<4x144xf32>
    %1108 = arith.mulf %1107, %1106 : vector<4x144xf32>
    %c2_282 = arith.constant 2 : index
    %c1_283 = arith.constant 1 : index
    %1109 = vector.load %arg15[%c2_282, %c1_283] : memref<8x2xf32, #tpu.memory_space<vmem>>, vector<1x1xf32>
    %c0_284 = arith.constant 0 : index
    %c720_285 = arith.constant 720 : index
    %1110 = vector.load %arg2[%c0_284, %c720_285] : memref<4x1152xf32, #tpu.memory_space<vmem>>, vector<4x144xf32>
    %1111 = vector.broadcast %1109 : vector<1x1xf32> to vector<4x144xf32>
    %1112 = arith.mulf %1111, %1110 : vector<4x144xf32>
    %1113 = arith.addf %1108, %1112 : vector<4x144xf32>
    %1114 = vector.broadcast %1072 : vector<1x1xf32> to vector<4x144xf32>
    %1115 = arith.mulf %1113, %1114 : vector<4x144xf32>
    %1116 = vector.broadcast %1073 : vector<1x1xf32> to vector<4x144xf32>
    %1117 = arith.addf %1115, %1116 : vector<4x144xf32>
    %cst_286 = arith.constant 0.000000e+00 : f32
    %1118 = vector.broadcast %cst_286 : f32 to vector<4x144xf32>
    %1119 = arith.maximumf %1117, %1118 : vector<4x144xf32>
    %1120 = arith.maximumf %1104, %1119 : vector<4x144xf32>
    %c2_287 = arith.constant 2 : index
    %c0_288 = arith.constant 0 : index
    %1121 = vector.load %arg15[%c2_287, %c0_288] : memref<8x2xf32, #tpu.memory_space<vmem>>, vector<1x1xf32>
    %c0_289 = arith.constant 0 : index
    %c864_290 = arith.constant 864 : index
    %1122 = vector.load %arg2[%c0_289, %c864_290] : memref<4x1152xf32, #tpu.memory_space<vmem>>, vector<4x144xf32>
    %1123 = vector.broadcast %1121 : vector<1x1xf32> to vector<4x144xf32>
    %1124 = arith.mulf %1123, %1122 : vector<4x144xf32>
    %c2_291 = arith.constant 2 : index
    %c1_292 = arith.constant 1 : index
    %1125 = vector.load %arg15[%c2_291, %c1_292] : memref<8x2xf32, #tpu.memory_space<vmem>>, vector<1x1xf32>
    %c0_293 = arith.constant 0 : index
    %c1008_294 = arith.constant 1008 : index
    %1126 = vector.load %arg2[%c0_293, %c1008_294] : memref<4x1152xf32, #tpu.memory_space<vmem>>, vector<4x144xf32>
    %1127 = vector.broadcast %1125 : vector<1x1xf32> to vector<4x144xf32>
    %1128 = arith.mulf %1127, %1126 : vector<4x144xf32>
    %1129 = arith.addf %1124, %1128 : vector<4x144xf32>
    %1130 = vector.broadcast %1072 : vector<1x1xf32> to vector<4x144xf32>
    %1131 = arith.mulf %1129, %1130 : vector<4x144xf32>
    %1132 = vector.broadcast %1073 : vector<1x1xf32> to vector<4x144xf32>
    %1133 = arith.addf %1131, %1132 : vector<4x144xf32>
    %cst_295 = arith.constant 0.000000e+00 : f32
    %1134 = vector.broadcast %cst_295 : f32 to vector<4x144xf32>
    %1135 = arith.maximumf %1133, %1134 : vector<4x144xf32>
    %1136 = arith.maximumf %1120, %1135 : vector<4x144xf32>
    %c0_296 = arith.constant 0 : index
    %c3_297 = arith.constant 3 : index
    %1137 = vector.load %arg16[%c0_296, %c3_297] : memref<1x8xf32, #tpu.memory_space<vmem>>, vector<1x1xf32>
    %c0_298 = arith.constant 0 : index
    %c3_299 = arith.constant 3 : index
    %1138 = vector.load %arg17[%c0_298, %c3_299] : memref<1x8xf32, #tpu.memory_space<vmem>>, vector<1x1xf32>
    %c3_300 = arith.constant 3 : index
    %c0_301 = arith.constant 0 : index
    %1139 = vector.load %arg15[%c3_300, %c0_301] : memref<8x2xf32, #tpu.memory_space<vmem>>, vector<1x1xf32>
    %c0_302 = arith.constant 0 : index
    %c0_303 = arith.constant 0 : index
    %1140 = vector.load %arg2[%c0_302, %c0_303] : memref<4x1152xf32, #tpu.memory_space<vmem>>, vector<4x144xf32>
    %1141 = vector.broadcast %1139 : vector<1x1xf32> to vector<4x144xf32>
    %1142 = arith.mulf %1141, %1140 : vector<4x144xf32>
    %c3_304 = arith.constant 3 : index
    %c1_305 = arith.constant 1 : index
    %1143 = vector.load %arg15[%c3_304, %c1_305] : memref<8x2xf32, #tpu.memory_space<vmem>>, vector<1x1xf32>
    %c0_306 = arith.constant 0 : index
    %c144_307 = arith.constant 144 : index
    %1144 = vector.load %arg2[%c0_306, %c144_307] : memref<4x1152xf32, #tpu.memory_space<vmem>>, vector<4x144xf32>
    %1145 = vector.broadcast %1143 : vector<1x1xf32> to vector<4x144xf32>
    %1146 = arith.mulf %1145, %1144 : vector<4x144xf32>
    %1147 = arith.addf %1142, %1146 : vector<4x144xf32>
    %1148 = vector.broadcast %1137 : vector<1x1xf32> to vector<4x144xf32>
    %1149 = arith.mulf %1147, %1148 : vector<4x144xf32>
    %1150 = vector.broadcast %1138 : vector<1x1xf32> to vector<4x144xf32>
    %1151 = arith.addf %1149, %1150 : vector<4x144xf32>
    %cst_308 = arith.constant 0.000000e+00 : f32
    %1152 = vector.broadcast %cst_308 : f32 to vector<4x144xf32>
    %1153 = arith.maximumf %1151, %1152 : vector<4x144xf32>
    %c3_309 = arith.constant 3 : index
    %c0_310 = arith.constant 0 : index
    %1154 = vector.load %arg15[%c3_309, %c0_310] : memref<8x2xf32, #tpu.memory_space<vmem>>, vector<1x1xf32>
    %c0_311 = arith.constant 0 : index
    %c288_312 = arith.constant 288 : index
    %1155 = vector.load %arg2[%c0_311, %c288_312] : memref<4x1152xf32, #tpu.memory_space<vmem>>, vector<4x144xf32>
    %1156 = vector.broadcast %1154 : vector<1x1xf32> to vector<4x144xf32>
    %1157 = arith.mulf %1156, %1155 : vector<4x144xf32>
    %c3_313 = arith.constant 3 : index
    %c1_314 = arith.constant 1 : index
    %1158 = vector.load %arg15[%c3_313, %c1_314] : memref<8x2xf32, #tpu.memory_space<vmem>>, vector<1x1xf32>
    %c0_315 = arith.constant 0 : index
    %c432_316 = arith.constant 432 : index
    %1159 = vector.load %arg2[%c0_315, %c432_316] : memref<4x1152xf32, #tpu.memory_space<vmem>>, vector<4x144xf32>
    %1160 = vector.broadcast %1158 : vector<1x1xf32> to vector<4x144xf32>
    %1161 = arith.mulf %1160, %1159 : vector<4x144xf32>
    %1162 = arith.addf %1157, %1161 : vector<4x144xf32>
    %1163 = vector.broadcast %1137 : vector<1x1xf32> to vector<4x144xf32>
    %1164 = arith.mulf %1162, %1163 : vector<4x144xf32>
    %1165 = vector.broadcast %1138 : vector<1x1xf32> to vector<4x144xf32>
    %1166 = arith.addf %1164, %1165 : vector<4x144xf32>
    %cst_317 = arith.constant 0.000000e+00 : f32
    %1167 = vector.broadcast %cst_317 : f32 to vector<4x144xf32>
    %1168 = arith.maximumf %1166, %1167 : vector<4x144xf32>
    %1169 = arith.maximumf %1153, %1168 : vector<4x144xf32>
    %c3_318 = arith.constant 3 : index
    %c0_319 = arith.constant 0 : index
    %1170 = vector.load %arg15[%c3_318, %c0_319] : memref<8x2xf32, #tpu.memory_space<vmem>>, vector<1x1xf32>
    %c0_320 = arith.constant 0 : index
    %c576_321 = arith.constant 576 : index
    %1171 = vector.load %arg2[%c0_320, %c576_321] : memref<4x1152xf32, #tpu.memory_space<vmem>>, vector<4x144xf32>
    %1172 = vector.broadcast %1170 : vector<1x1xf32> to vector<4x144xf32>
    %1173 = arith.mulf %1172, %1171 : vector<4x144xf32>
    %c3_322 = arith.constant 3 : index
    %c1_323 = arith.constant 1 : index
    %1174 = vector.load %arg15[%c3_322, %c1_323] : memref<8x2xf32, #tpu.memory_space<vmem>>, vector<1x1xf32>
    %c0_324 = arith.constant 0 : index
    %c720_325 = arith.constant 720 : index
    %1175 = vector.load %arg2[%c0_324, %c720_325] : memref<4x1152xf32, #tpu.memory_space<vmem>>, vector<4x144xf32>
    %1176 = vector.broadcast %1174 : vector<1x1xf32> to vector<4x144xf32>
    %1177 = arith.mulf %1176, %1175 : vector<4x144xf32>
    %1178 = arith.addf %1173, %1177 : vector<4x144xf32>
    %1179 = vector.broadcast %1137 : vector<1x1xf32> to vector<4x144xf32>
    %1180 = arith.mulf %1178, %1179 : vector<4x144xf32>
    %1181 = vector.broadcast %1138 : vector<1x1xf32> to vector<4x144xf32>
    %1182 = arith.addf %1180, %1181 : vector<4x144xf32>
    %cst_326 = arith.constant 0.000000e+00 : f32
    %1183 = vector.broadcast %cst_326 : f32 to vector<4x144xf32>
    %1184 = arith.maximumf %1182, %1183 : vector<4x144xf32>
    %1185 = arith.maximumf %1169, %1184 : vector<4x144xf32>
    %c3_327 = arith.constant 3 : index
    %c0_328 = arith.constant 0 : index
    %1186 = vector.load %arg15[%c3_327, %c0_328] : memref<8x2xf32, #tpu.memory_space<vmem>>, vector<1x1xf32>
    %c0_329 = arith.constant 0 : index
    %c864_330 = arith.constant 864 : index
    %1187 = vector.load %arg2[%c0_329, %c864_330] : memref<4x1152xf32, #tpu.memory_space<vmem>>, vector<4x144xf32>
    %1188 = vector.broadcast %1186 : vector<1x1xf32> to vector<4x144xf32>
    %1189 = arith.mulf %1188, %1187 : vector<4x144xf32>
    %c3_331 = arith.constant 3 : index
    %c1_332 = arith.constant 1 : index
    %1190 = vector.load %arg15[%c3_331, %c1_332] : memref<8x2xf32, #tpu.memory_space<vmem>>, vector<1x1xf32>
    %c0_333 = arith.constant 0 : index
    %c1008_334 = arith.constant 1008 : index
    %1191 = vector.load %arg2[%c0_333, %c1008_334] : memref<4x1152xf32, #tpu.memory_space<vmem>>, vector<4x144xf32>
    %1192 = vector.broadcast %1190 : vector<1x1xf32> to vector<4x144xf32>
    %1193 = arith.mulf %1192, %1191 : vector<4x144xf32>
    %1194 = arith.addf %1189, %1193 : vector<4x144xf32>
    %1195 = vector.broadcast %1137 : vector<1x1xf32> to vector<4x144xf32>
    %1196 = arith.mulf %1194, %1195 : vector<4x144xf32>
    %1197 = vector.broadcast %1138 : vector<1x1xf32> to vector<4x144xf32>
    %1198 = arith.addf %1196, %1197 : vector<4x144xf32>
    %cst_335 = arith.constant 0.000000e+00 : f32
    %1199 = vector.broadcast %cst_335 : f32 to vector<4x144xf32>
    %1200 = arith.maximumf %1198, %1199 : vector<4x144xf32>
    %1201 = arith.maximumf %1185, %1200 : vector<4x144xf32>
    %c0_336 = arith.constant 0 : index
    %c4_337 = arith.constant 4 : index
    %1202 = vector.load %arg16[%c0_336, %c4_337] : memref<1x8xf32, #tpu.memory_space<vmem>>, vector<1x1xf32>
    %c0_338 = arith.constant 0 : index
    %c4_339 = arith.constant 4 : index
    %1203 = vector.load %arg17[%c0_338, %c4_339] : memref<1x8xf32, #tpu.memory_space<vmem>>, vector<1x1xf32>
    %c4_340 = arith.constant 4 : index
    %c0_341 = arith.constant 0 : index
    %1204 = vector.load %arg15[%c4_340, %c0_341] : memref<8x2xf32, #tpu.memory_space<vmem>>, vector<1x1xf32>
    %c0_342 = arith.constant 0 : index
    %c0_343 = arith.constant 0 : index
    %1205 = vector.load %arg2[%c0_342, %c0_343] : memref<4x1152xf32, #tpu.memory_space<vmem>>, vector<4x144xf32>
    %1206 = vector.broadcast %1204 : vector<1x1xf32> to vector<4x144xf32>
    %1207 = arith.mulf %1206, %1205 : vector<4x144xf32>
    %c4_344 = arith.constant 4 : index
    %c1_345 = arith.constant 1 : index
    %1208 = vector.load %arg15[%c4_344, %c1_345] : memref<8x2xf32, #tpu.memory_space<vmem>>, vector<1x1xf32>
    %c0_346 = arith.constant 0 : index
    %c144_347 = arith.constant 144 : index
    %1209 = vector.load %arg2[%c0_346, %c144_347] : memref<4x1152xf32, #tpu.memory_space<vmem>>, vector<4x144xf32>
    %1210 = vector.broadcast %1208 : vector<1x1xf32> to vector<4x144xf32>
    %1211 = arith.mulf %1210, %1209 : vector<4x144xf32>
    %1212 = arith.addf %1207, %1211 : vector<4x144xf32>
    %1213 = vector.broadcast %1202 : vector<1x1xf32> to vector<4x144xf32>
    %1214 = arith.mulf %1212, %1213 : vector<4x144xf32>
    %1215 = vector.broadcast %1203 : vector<1x1xf32> to vector<4x144xf32>
    %1216 = arith.addf %1214, %1215 : vector<4x144xf32>
    %cst_348 = arith.constant 0.000000e+00 : f32
    %1217 = vector.broadcast %cst_348 : f32 to vector<4x144xf32>
    %1218 = arith.maximumf %1216, %1217 : vector<4x144xf32>
    %c4_349 = arith.constant 4 : index
    %c0_350 = arith.constant 0 : index
    %1219 = vector.load %arg15[%c4_349, %c0_350] : memref<8x2xf32, #tpu.memory_space<vmem>>, vector<1x1xf32>
    %c0_351 = arith.constant 0 : index
    %c288_352 = arith.constant 288 : index
    %1220 = vector.load %arg2[%c0_351, %c288_352] : memref<4x1152xf32, #tpu.memory_space<vmem>>, vector<4x144xf32>
    %1221 = vector.broadcast %1219 : vector<1x1xf32> to vector<4x144xf32>
    %1222 = arith.mulf %1221, %1220 : vector<4x144xf32>
    %c4_353 = arith.constant 4 : index
    %c1_354 = arith.constant 1 : index
    %1223 = vector.load %arg15[%c4_353, %c1_354] : memref<8x2xf32, #tpu.memory_space<vmem>>, vector<1x1xf32>
    %c0_355 = arith.constant 0 : index
    %c432_356 = arith.constant 432 : index
    %1224 = vector.load %arg2[%c0_355, %c432_356] : memref<4x1152xf32, #tpu.memory_space<vmem>>, vector<4x144xf32>
    %1225 = vector.broadcast %1223 : vector<1x1xf32> to vector<4x144xf32>
    %1226 = arith.mulf %1225, %1224 : vector<4x144xf32>
    %1227 = arith.addf %1222, %1226 : vector<4x144xf32>
    %1228 = vector.broadcast %1202 : vector<1x1xf32> to vector<4x144xf32>
    %1229 = arith.mulf %1227, %1228 : vector<4x144xf32>
    %1230 = vector.broadcast %1203 : vector<1x1xf32> to vector<4x144xf32>
    %1231 = arith.addf %1229, %1230 : vector<4x144xf32>
    %cst_357 = arith.constant 0.000000e+00 : f32
    %1232 = vector.broadcast %cst_357 : f32 to vector<4x144xf32>
    %1233 = arith.maximumf %1231, %1232 : vector<4x144xf32>
    %1234 = arith.maximumf %1218, %1233 : vector<4x144xf32>
    %c4_358 = arith.constant 4 : index
    %c0_359 = arith.constant 0 : index
    %1235 = vector.load %arg15[%c4_358, %c0_359] : memref<8x2xf32, #tpu.memory_space<vmem>>, vector<1x1xf32>
    %c0_360 = arith.constant 0 : index
    %c576_361 = arith.constant 576 : index
    %1236 = vector.load %arg2[%c0_360, %c576_361] : memref<4x1152xf32, #tpu.memory_space<vmem>>, vector<4x144xf32>
    %1237 = vector.broadcast %1235 : vector<1x1xf32> to vector<4x144xf32>
    %1238 = arith.mulf %1237, %1236 : vector<4x144xf32>
    %c4_362 = arith.constant 4 : index
    %c1_363 = arith.constant 1 : index
    %1239 = vector.load %arg15[%c4_362, %c1_363] : memref<8x2xf32, #tpu.memory_space<vmem>>, vector<1x1xf32>
    %c0_364 = arith.constant 0 : index
    %c720_365 = arith.constant 720 : index
    %1240 = vector.load %arg2[%c0_364, %c720_365] : memref<4x1152xf32, #tpu.memory_space<vmem>>, vector<4x144xf32>
    %1241 = vector.broadcast %1239 : vector<1x1xf32> to vector<4x144xf32>
    %1242 = arith.mulf %1241, %1240 : vector<4x144xf32>
    %1243 = arith.addf %1238, %1242 : vector<4x144xf32>
    %1244 = vector.broadcast %1202 : vector<1x1xf32> to vector<4x144xf32>
    %1245 = arith.mulf %1243, %1244 : vector<4x144xf32>
    %1246 = vector.broadcast %1203 : vector<1x1xf32> to vector<4x144xf32>
    %1247 = arith.addf %1245, %1246 : vector<4x144xf32>
    %cst_366 = arith.constant 0.000000e+00 : f32
    %1248 = vector.broadcast %cst_366 : f32 to vector<4x144xf32>
    %1249 = arith.maximumf %1247, %1248 : vector<4x144xf32>
    %1250 = arith.maximumf %1234, %1249 : vector<4x144xf32>
    %c4_367 = arith.constant 4 : index
    %c0_368 = arith.constant 0 : index
    %1251 = vector.load %arg15[%c4_367, %c0_368] : memref<8x2xf32, #tpu.memory_space<vmem>>, vector<1x1xf32>
    %c0_369 = arith.constant 0 : index
    %c864_370 = arith.constant 864 : index
    %1252 = vector.load %arg2[%c0_369, %c864_370] : memref<4x1152xf32, #tpu.memory_space<vmem>>, vector<4x144xf32>
    %1253 = vector.broadcast %1251 : vector<1x1xf32> to vector<4x144xf32>
    %1254 = arith.mulf %1253, %1252 : vector<4x144xf32>
    %c4_371 = arith.constant 4 : index
    %c1_372 = arith.constant 1 : index
    %1255 = vector.load %arg15[%c4_371, %c1_372] : memref<8x2xf32, #tpu.memory_space<vmem>>, vector<1x1xf32>
    %c0_373 = arith.constant 0 : index
    %c1008_374 = arith.constant 1008 : index
    %1256 = vector.load %arg2[%c0_373, %c1008_374] : memref<4x1152xf32, #tpu.memory_space<vmem>>, vector<4x144xf32>
    %1257 = vector.broadcast %1255 : vector<1x1xf32> to vector<4x144xf32>
    %1258 = arith.mulf %1257, %1256 : vector<4x144xf32>
    %1259 = arith.addf %1254, %1258 : vector<4x144xf32>
    %1260 = vector.broadcast %1202 : vector<1x1xf32> to vector<4x144xf32>
    %1261 = arith.mulf %1259, %1260 : vector<4x144xf32>
    %1262 = vector.broadcast %1203 : vector<1x1xf32> to vector<4x144xf32>
    %1263 = arith.addf %1261, %1262 : vector<4x144xf32>
    %cst_375 = arith.constant 0.000000e+00 : f32
    %1264 = vector.broadcast %cst_375 : f32 to vector<4x144xf32>
    %1265 = arith.maximumf %1263, %1264 : vector<4x144xf32>
    %1266 = arith.maximumf %1250, %1265 : vector<4x144xf32>
    %c0_376 = arith.constant 0 : index
    %c5_377 = arith.constant 5 : index
    %1267 = vector.load %arg16[%c0_376, %c5_377] : memref<1x8xf32, #tpu.memory_space<vmem>>, vector<1x1xf32>
    %c0_378 = arith.constant 0 : index
    %c5_379 = arith.constant 5 : index
    %1268 = vector.load %arg17[%c0_378, %c5_379] : memref<1x8xf32, #tpu.memory_space<vmem>>, vector<1x1xf32>
    %c5_380 = arith.constant 5 : index
    %c0_381 = arith.constant 0 : index
    %1269 = vector.load %arg15[%c5_380, %c0_381] : memref<8x2xf32, #tpu.memory_space<vmem>>, vector<1x1xf32>
    %c0_382 = arith.constant 0 : index
    %c0_383 = arith.constant 0 : index
    %1270 = vector.load %arg2[%c0_382, %c0_383] : memref<4x1152xf32, #tpu.memory_space<vmem>>, vector<4x144xf32>
    %1271 = vector.broadcast %1269 : vector<1x1xf32> to vector<4x144xf32>
    %1272 = arith.mulf %1271, %1270 : vector<4x144xf32>
    %c5_384 = arith.constant 5 : index
    %c1_385 = arith.constant 1 : index
    %1273 = vector.load %arg15[%c5_384, %c1_385] : memref<8x2xf32, #tpu.memory_space<vmem>>, vector<1x1xf32>
    %c0_386 = arith.constant 0 : index
    %c144_387 = arith.constant 144 : index
    %1274 = vector.load %arg2[%c0_386, %c144_387] : memref<4x1152xf32, #tpu.memory_space<vmem>>, vector<4x144xf32>
    %1275 = vector.broadcast %1273 : vector<1x1xf32> to vector<4x144xf32>
    %1276 = arith.mulf %1275, %1274 : vector<4x144xf32>
    %1277 = arith.addf %1272, %1276 : vector<4x144xf32>
    %1278 = vector.broadcast %1267 : vector<1x1xf32> to vector<4x144xf32>
    %1279 = arith.mulf %1277, %1278 : vector<4x144xf32>
    %1280 = vector.broadcast %1268 : vector<1x1xf32> to vector<4x144xf32>
    %1281 = arith.addf %1279, %1280 : vector<4x144xf32>
    %cst_388 = arith.constant 0.000000e+00 : f32
    %1282 = vector.broadcast %cst_388 : f32 to vector<4x144xf32>
    %1283 = arith.maximumf %1281, %1282 : vector<4x144xf32>
    %c5_389 = arith.constant 5 : index
    %c0_390 = arith.constant 0 : index
    %1284 = vector.load %arg15[%c5_389, %c0_390] : memref<8x2xf32, #tpu.memory_space<vmem>>, vector<1x1xf32>
    %c0_391 = arith.constant 0 : index
    %c288_392 = arith.constant 288 : index
    %1285 = vector.load %arg2[%c0_391, %c288_392] : memref<4x1152xf32, #tpu.memory_space<vmem>>, vector<4x144xf32>
    %1286 = vector.broadcast %1284 : vector<1x1xf32> to vector<4x144xf32>
    %1287 = arith.mulf %1286, %1285 : vector<4x144xf32>
    %c5_393 = arith.constant 5 : index
    %c1_394 = arith.constant 1 : index
    %1288 = vector.load %arg15[%c5_393, %c1_394] : memref<8x2xf32, #tpu.memory_space<vmem>>, vector<1x1xf32>
    %c0_395 = arith.constant 0 : index
    %c432_396 = arith.constant 432 : index
    %1289 = vector.load %arg2[%c0_395, %c432_396] : memref<4x1152xf32, #tpu.memory_space<vmem>>, vector<4x144xf32>
    %1290 = vector.broadcast %1288 : vector<1x1xf32> to vector<4x144xf32>
    %1291 = arith.mulf %1290, %1289 : vector<4x144xf32>
    %1292 = arith.addf %1287, %1291 : vector<4x144xf32>
    %1293 = vector.broadcast %1267 : vector<1x1xf32> to vector<4x144xf32>
    %1294 = arith.mulf %1292, %1293 : vector<4x144xf32>
    %1295 = vector.broadcast %1268 : vector<1x1xf32> to vector<4x144xf32>
    %1296 = arith.addf %1294, %1295 : vector<4x144xf32>
    %cst_397 = arith.constant 0.000000e+00 : f32
    %1297 = vector.broadcast %cst_397 : f32 to vector<4x144xf32>
    %1298 = arith.maximumf %1296, %1297 : vector<4x144xf32>
    %1299 = arith.maximumf %1283, %1298 : vector<4x144xf32>
    %c5_398 = arith.constant 5 : index
    %c0_399 = arith.constant 0 : index
    %1300 = vector.load %arg15[%c5_398, %c0_399] : memref<8x2xf32, #tpu.memory_space<vmem>>, vector<1x1xf32>
    %c0_400 = arith.constant 0 : index
    %c576_401 = arith.constant 576 : index
    %1301 = vector.load %arg2[%c0_400, %c576_401] : memref<4x1152xf32, #tpu.memory_space<vmem>>, vector<4x144xf32>
    %1302 = vector.broadcast %1300 : vector<1x1xf32> to vector<4x144xf32>
    %1303 = arith.mulf %1302, %1301 : vector<4x144xf32>
    %c5_402 = arith.constant 5 : index
    %c1_403 = arith.constant 1 : index
    %1304 = vector.load %arg15[%c5_402, %c1_403] : memref<8x2xf32, #tpu.memory_space<vmem>>, vector<1x1xf32>
    %c0_404 = arith.constant 0 : index
    %c720_405 = arith.constant 720 : index
    %1305 = vector.load %arg2[%c0_404, %c720_405] : memref<4x1152xf32, #tpu.memory_space<vmem>>, vector<4x144xf32>
    %1306 = vector.broadcast %1304 : vector<1x1xf32> to vector<4x144xf32>
    %1307 = arith.mulf %1306, %1305 : vector<4x144xf32>
    %1308 = arith.addf %1303, %1307 : vector<4x144xf32>
    %1309 = vector.broadcast %1267 : vector<1x1xf32> to vector<4x144xf32>
    %1310 = arith.mulf %1308, %1309 : vector<4x144xf32>
    %1311 = vector.broadcast %1268 : vector<1x1xf32> to vector<4x144xf32>
    %1312 = arith.addf %1310, %1311 : vector<4x144xf32>
    %cst_406 = arith.constant 0.000000e+00 : f32
    %1313 = vector.broadcast %cst_406 : f32 to vector<4x144xf32>
    %1314 = arith.maximumf %1312, %1313 : vector<4x144xf32>
    %1315 = arith.maximumf %1299, %1314 : vector<4x144xf32>
    %c5_407 = arith.constant 5 : index
    %c0_408 = arith.constant 0 : index
    %1316 = vector.load %arg15[%c5_407, %c0_408] : memref<8x2xf32, #tpu.memory_space<vmem>>, vector<1x1xf32>
    %c0_409 = arith.constant 0 : index
    %c864_410 = arith.constant 864 : index
    %1317 = vector.load %arg2[%c0_409, %c864_410] : memref<4x1152xf32, #tpu.memory_space<vmem>>, vector<4x144xf32>
    %1318 = vector.broadcast %1316 : vector<1x1xf32> to vector<4x144xf32>
    %1319 = arith.mulf %1318, %1317 : vector<4x144xf32>
    %c5_411 = arith.constant 5 : index
    %c1_412 = arith.constant 1 : index
    %1320 = vector.load %arg15[%c5_411, %c1_412] : memref<8x2xf32, #tpu.memory_space<vmem>>, vector<1x1xf32>
    %c0_413 = arith.constant 0 : index
    %c1008_414 = arith.constant 1008 : index
    %1321 = vector.load %arg2[%c0_413, %c1008_414] : memref<4x1152xf32, #tpu.memory_space<vmem>>, vector<4x144xf32>
    %1322 = vector.broadcast %1320 : vector<1x1xf32> to vector<4x144xf32>
    %1323 = arith.mulf %1322, %1321 : vector<4x144xf32>
    %1324 = arith.addf %1319, %1323 : vector<4x144xf32>
    %1325 = vector.broadcast %1267 : vector<1x1xf32> to vector<4x144xf32>
    %1326 = arith.mulf %1324, %1325 : vector<4x144xf32>
    %1327 = vector.broadcast %1268 : vector<1x1xf32> to vector<4x144xf32>
    %1328 = arith.addf %1326, %1327 : vector<4x144xf32>
    %cst_415 = arith.constant 0.000000e+00 : f32
    %1329 = vector.broadcast %cst_415 : f32 to vector<4x144xf32>
    %1330 = arith.maximumf %1328, %1329 : vector<4x144xf32>
    %1331 = arith.maximumf %1315, %1330 : vector<4x144xf32>
    %c0_416 = arith.constant 0 : index
    %c6_417 = arith.constant 6 : index
    %1332 = vector.load %arg16[%c0_416, %c6_417] : memref<1x8xf32, #tpu.memory_space<vmem>>, vector<1x1xf32>
    %c0_418 = arith.constant 0 : index
    %c6_419 = arith.constant 6 : index
    %1333 = vector.load %arg17[%c0_418, %c6_419] : memref<1x8xf32, #tpu.memory_space<vmem>>, vector<1x1xf32>
    %c6_420 = arith.constant 6 : index
    %c0_421 = arith.constant 0 : index
    %1334 = vector.load %arg15[%c6_420, %c0_421] : memref<8x2xf32, #tpu.memory_space<vmem>>, vector<1x1xf32>
    %c0_422 = arith.constant 0 : index
    %c0_423 = arith.constant 0 : index
    %1335 = vector.load %arg2[%c0_422, %c0_423] : memref<4x1152xf32, #tpu.memory_space<vmem>>, vector<4x144xf32>
    %1336 = vector.broadcast %1334 : vector<1x1xf32> to vector<4x144xf32>
    %1337 = arith.mulf %1336, %1335 : vector<4x144xf32>
    %c6_424 = arith.constant 6 : index
    %c1_425 = arith.constant 1 : index
    %1338 = vector.load %arg15[%c6_424, %c1_425] : memref<8x2xf32, #tpu.memory_space<vmem>>, vector<1x1xf32>
    %c0_426 = arith.constant 0 : index
    %c144_427 = arith.constant 144 : index
    %1339 = vector.load %arg2[%c0_426, %c144_427] : memref<4x1152xf32, #tpu.memory_space<vmem>>, vector<4x144xf32>
    %1340 = vector.broadcast %1338 : vector<1x1xf32> to vector<4x144xf32>
    %1341 = arith.mulf %1340, %1339 : vector<4x144xf32>
    %1342 = arith.addf %1337, %1341 : vector<4x144xf32>
    %1343 = vector.broadcast %1332 : vector<1x1xf32> to vector<4x144xf32>
    %1344 = arith.mulf %1342, %1343 : vector<4x144xf32>
    %1345 = vector.broadcast %1333 : vector<1x1xf32> to vector<4x144xf32>
    %1346 = arith.addf %1344, %1345 : vector<4x144xf32>
    %cst_428 = arith.constant 0.000000e+00 : f32
    %1347 = vector.broadcast %cst_428 : f32 to vector<4x144xf32>
    %1348 = arith.maximumf %1346, %1347 : vector<4x144xf32>
    %c6_429 = arith.constant 6 : index
    %c0_430 = arith.constant 0 : index
    %1349 = vector.load %arg15[%c6_429, %c0_430] : memref<8x2xf32, #tpu.memory_space<vmem>>, vector<1x1xf32>
    %c0_431 = arith.constant 0 : index
    %c288_432 = arith.constant 288 : index
    %1350 = vector.load %arg2[%c0_431, %c288_432] : memref<4x1152xf32, #tpu.memory_space<vmem>>, vector<4x144xf32>
    %1351 = vector.broadcast %1349 : vector<1x1xf32> to vector<4x144xf32>
    %1352 = arith.mulf %1351, %1350 : vector<4x144xf32>
    %c6_433 = arith.constant 6 : index
    %c1_434 = arith.constant 1 : index
    %1353 = vector.load %arg15[%c6_433, %c1_434] : memref<8x2xf32, #tpu.memory_space<vmem>>, vector<1x1xf32>
    %c0_435 = arith.constant 0 : index
    %c432_436 = arith.constant 432 : index
    %1354 = vector.load %arg2[%c0_435, %c432_436] : memref<4x1152xf32, #tpu.memory_space<vmem>>, vector<4x144xf32>
    %1355 = vector.broadcast %1353 : vector<1x1xf32> to vector<4x144xf32>
    %1356 = arith.mulf %1355, %1354 : vector<4x144xf32>
    %1357 = arith.addf %1352, %1356 : vector<4x144xf32>
    %1358 = vector.broadcast %1332 : vector<1x1xf32> to vector<4x144xf32>
    %1359 = arith.mulf %1357, %1358 : vector<4x144xf32>
    %1360 = vector.broadcast %1333 : vector<1x1xf32> to vector<4x144xf32>
    %1361 = arith.addf %1359, %1360 : vector<4x144xf32>
    %cst_437 = arith.constant 0.000000e+00 : f32
    %1362 = vector.broadcast %cst_437 : f32 to vector<4x144xf32>
    %1363 = arith.maximumf %1361, %1362 : vector<4x144xf32>
    %1364 = arith.maximumf %1348, %1363 : vector<4x144xf32>
    %c6_438 = arith.constant 6 : index
    %c0_439 = arith.constant 0 : index
    %1365 = vector.load %arg15[%c6_438, %c0_439] : memref<8x2xf32, #tpu.memory_space<vmem>>, vector<1x1xf32>
    %c0_440 = arith.constant 0 : index
    %c576_441 = arith.constant 576 : index
    %1366 = vector.load %arg2[%c0_440, %c576_441] : memref<4x1152xf32, #tpu.memory_space<vmem>>, vector<4x144xf32>
    %1367 = vector.broadcast %1365 : vector<1x1xf32> to vector<4x144xf32>
    %1368 = arith.mulf %1367, %1366 : vector<4x144xf32>
    %c6_442 = arith.constant 6 : index
    %c1_443 = arith.constant 1 : index
    %1369 = vector.load %arg15[%c6_442, %c1_443] : memref<8x2xf32, #tpu.memory_space<vmem>>, vector<1x1xf32>
    %c0_444 = arith.constant 0 : index
    %c720_445 = arith.constant 720 : index
    %1370 = vector.load %arg2[%c0_444, %c720_445] : memref<4x1152xf32, #tpu.memory_space<vmem>>, vector<4x144xf32>
    %1371 = vector.broadcast %1369 : vector<1x1xf32> to vector<4x144xf32>
    %1372 = arith.mulf %1371, %1370 : vector<4x144xf32>
    %1373 = arith.addf %1368, %1372 : vector<4x144xf32>
    %1374 = vector.broadcast %1332 : vector<1x1xf32> to vector<4x144xf32>
    %1375 = arith.mulf %1373, %1374 : vector<4x144xf32>
    %1376 = vector.broadcast %1333 : vector<1x1xf32> to vector<4x144xf32>
    %1377 = arith.addf %1375, %1376 : vector<4x144xf32>
    %cst_446 = arith.constant 0.000000e+00 : f32
    %1378 = vector.broadcast %cst_446 : f32 to vector<4x144xf32>
    %1379 = arith.maximumf %1377, %1378 : vector<4x144xf32>
    %1380 = arith.maximumf %1364, %1379 : vector<4x144xf32>
    %c6_447 = arith.constant 6 : index
    %c0_448 = arith.constant 0 : index
    %1381 = vector.load %arg15[%c6_447, %c0_448] : memref<8x2xf32, #tpu.memory_space<vmem>>, vector<1x1xf32>
    %c0_449 = arith.constant 0 : index
    %c864_450 = arith.constant 864 : index
    %1382 = vector.load %arg2[%c0_449, %c864_450] : memref<4x1152xf32, #tpu.memory_space<vmem>>, vector<4x144xf32>
    %1383 = vector.broadcast %1381 : vector<1x1xf32> to vector<4x144xf32>
    %1384 = arith.mulf %1383, %1382 : vector<4x144xf32>
    %c6_451 = arith.constant 6 : index
    %c1_452 = arith.constant 1 : index
    %1385 = vector.load %arg15[%c6_451, %c1_452] : memref<8x2xf32, #tpu.memory_space<vmem>>, vector<1x1xf32>
    %c0_453 = arith.constant 0 : index
    %c1008_454 = arith.constant 1008 : index
    %1386 = vector.load %arg2[%c0_453, %c1008_454] : memref<4x1152xf32, #tpu.memory_space<vmem>>, vector<4x144xf32>
    %1387 = vector.broadcast %1385 : vector<1x1xf32> to vector<4x144xf32>
    %1388 = arith.mulf %1387, %1386 : vector<4x144xf32>
    %1389 = arith.addf %1384, %1388 : vector<4x144xf32>
    %1390 = vector.broadcast %1332 : vector<1x1xf32> to vector<4x144xf32>
    %1391 = arith.mulf %1389, %1390 : vector<4x144xf32>
    %1392 = vector.broadcast %1333 : vector<1x1xf32> to vector<4x144xf32>
    %1393 = arith.addf %1391, %1392 : vector<4x144xf32>
    %cst_455 = arith.constant 0.000000e+00 : f32
    %1394 = vector.broadcast %cst_455 : f32 to vector<4x144xf32>
    %1395 = arith.maximumf %1393, %1394 : vector<4x144xf32>
    %1396 = arith.maximumf %1380, %1395 : vector<4x144xf32>
    %c0_456 = arith.constant 0 : index
    %c7_457 = arith.constant 7 : index
    %1397 = vector.load %arg16[%c0_456, %c7_457] : memref<1x8xf32, #tpu.memory_space<vmem>>, vector<1x1xf32>
    %c0_458 = arith.constant 0 : index
    %c7_459 = arith.constant 7 : index
    %1398 = vector.load %arg17[%c0_458, %c7_459] : memref<1x8xf32, #tpu.memory_space<vmem>>, vector<1x1xf32>
    %c7_460 = arith.constant 7 : index
    %c0_461 = arith.constant 0 : index
    %1399 = vector.load %arg15[%c7_460, %c0_461] : memref<8x2xf32, #tpu.memory_space<vmem>>, vector<1x1xf32>
    %c0_462 = arith.constant 0 : index
    %c0_463 = arith.constant 0 : index
    %1400 = vector.load %arg2[%c0_462, %c0_463] : memref<4x1152xf32, #tpu.memory_space<vmem>>, vector<4x144xf32>
    %1401 = vector.broadcast %1399 : vector<1x1xf32> to vector<4x144xf32>
    %1402 = arith.mulf %1401, %1400 : vector<4x144xf32>
    %c7_464 = arith.constant 7 : index
    %c1_465 = arith.constant 1 : index
    %1403 = vector.load %arg15[%c7_464, %c1_465] : memref<8x2xf32, #tpu.memory_space<vmem>>, vector<1x1xf32>
    %c0_466 = arith.constant 0 : index
    %c144_467 = arith.constant 144 : index
    %1404 = vector.load %arg2[%c0_466, %c144_467] : memref<4x1152xf32, #tpu.memory_space<vmem>>, vector<4x144xf32>
    %1405 = vector.broadcast %1403 : vector<1x1xf32> to vector<4x144xf32>
    %1406 = arith.mulf %1405, %1404 : vector<4x144xf32>
    %1407 = arith.addf %1402, %1406 : vector<4x144xf32>
    %1408 = vector.broadcast %1397 : vector<1x1xf32> to vector<4x144xf32>
    %1409 = arith.mulf %1407, %1408 : vector<4x144xf32>
    %1410 = vector.broadcast %1398 : vector<1x1xf32> to vector<4x144xf32>
    %1411 = arith.addf %1409, %1410 : vector<4x144xf32>
    %cst_468 = arith.constant 0.000000e+00 : f32
    %1412 = vector.broadcast %cst_468 : f32 to vector<4x144xf32>
    %1413 = arith.maximumf %1411, %1412 : vector<4x144xf32>
    %c7_469 = arith.constant 7 : index
    %c0_470 = arith.constant 0 : index
    %1414 = vector.load %arg15[%c7_469, %c0_470] : memref<8x2xf32, #tpu.memory_space<vmem>>, vector<1x1xf32>
    %c0_471 = arith.constant 0 : index
    %c288_472 = arith.constant 288 : index
    %1415 = vector.load %arg2[%c0_471, %c288_472] : memref<4x1152xf32, #tpu.memory_space<vmem>>, vector<4x144xf32>
    %1416 = vector.broadcast %1414 : vector<1x1xf32> to vector<4x144xf32>
    %1417 = arith.mulf %1416, %1415 : vector<4x144xf32>
    %c7_473 = arith.constant 7 : index
    %c1_474 = arith.constant 1 : index
    %1418 = vector.load %arg15[%c7_473, %c1_474] : memref<8x2xf32, #tpu.memory_space<vmem>>, vector<1x1xf32>
    %c0_475 = arith.constant 0 : index
    %c432_476 = arith.constant 432 : index
    %1419 = vector.load %arg2[%c0_475, %c432_476] : memref<4x1152xf32, #tpu.memory_space<vmem>>, vector<4x144xf32>
    %1420 = vector.broadcast %1418 : vector<1x1xf32> to vector<4x144xf32>
    %1421 = arith.mulf %1420, %1419 : vector<4x144xf32>
    %1422 = arith.addf %1417, %1421 : vector<4x144xf32>
    %1423 = vector.broadcast %1397 : vector<1x1xf32> to vector<4x144xf32>
    %1424 = arith.mulf %1422, %1423 : vector<4x144xf32>
    %1425 = vector.broadcast %1398 : vector<1x1xf32> to vector<4x144xf32>
    %1426 = arith.addf %1424, %1425 : vector<4x144xf32>
    %cst_477 = arith.constant 0.000000e+00 : f32
    %1427 = vector.broadcast %cst_477 : f32 to vector<4x144xf32>
    %1428 = arith.maximumf %1426, %1427 : vector<4x144xf32>
    %1429 = arith.maximumf %1413, %1428 : vector<4x144xf32>
    %c7_478 = arith.constant 7 : index
    %c0_479 = arith.constant 0 : index
    %1430 = vector.load %arg15[%c7_478, %c0_479] : memref<8x2xf32, #tpu.memory_space<vmem>>, vector<1x1xf32>
    %c0_480 = arith.constant 0 : index
    %c576_481 = arith.constant 576 : index
    %1431 = vector.load %arg2[%c0_480, %c576_481] : memref<4x1152xf32, #tpu.memory_space<vmem>>, vector<4x144xf32>
    %1432 = vector.broadcast %1430 : vector<1x1xf32> to vector<4x144xf32>
    %1433 = arith.mulf %1432, %1431 : vector<4x144xf32>
    %c7_482 = arith.constant 7 : index
    %c1_483 = arith.constant 1 : index
    %1434 = vector.load %arg15[%c7_482, %c1_483] : memref<8x2xf32, #tpu.memory_space<vmem>>, vector<1x1xf32>
    %c0_484 = arith.constant 0 : index
    %c720_485 = arith.constant 720 : index
    %1435 = vector.load %arg2[%c0_484, %c720_485] : memref<4x1152xf32, #tpu.memory_space<vmem>>, vector<4x144xf32>
    %1436 = vector.broadcast %1434 : vector<1x1xf32> to vector<4x144xf32>
    %1437 = arith.mulf %1436, %1435 : vector<4x144xf32>
    %1438 = arith.addf %1433, %1437 : vector<4x144xf32>
    %1439 = vector.broadcast %1397 : vector<1x1xf32> to vector<4x144xf32>
    %1440 = arith.mulf %1438, %1439 : vector<4x144xf32>
    %1441 = vector.broadcast %1398 : vector<1x1xf32> to vector<4x144xf32>
    %1442 = arith.addf %1440, %1441 : vector<4x144xf32>
    %cst_486 = arith.constant 0.000000e+00 : f32
    %1443 = vector.broadcast %cst_486 : f32 to vector<4x144xf32>
    %1444 = arith.maximumf %1442, %1443 : vector<4x144xf32>
    %1445 = arith.maximumf %1429, %1444 : vector<4x144xf32>
    %c7_487 = arith.constant 7 : index
    %c0_488 = arith.constant 0 : index
    %1446 = vector.load %arg15[%c7_487, %c0_488] : memref<8x2xf32, #tpu.memory_space<vmem>>, vector<1x1xf32>
    %c0_489 = arith.constant 0 : index
    %c864_490 = arith.constant 864 : index
    %1447 = vector.load %arg2[%c0_489, %c864_490] : memref<4x1152xf32, #tpu.memory_space<vmem>>, vector<4x144xf32>
    %1448 = vector.broadcast %1446 : vector<1x1xf32> to vector<4x144xf32>
    %1449 = arith.mulf %1448, %1447 : vector<4x144xf32>
    %c7_491 = arith.constant 7 : index
    %c1_492 = arith.constant 1 : index
    %1450 = vector.load %arg15[%c7_491, %c1_492] : memref<8x2xf32, #tpu.memory_space<vmem>>, vector<1x1xf32>
    %c0_493 = arith.constant 0 : index
    %c1008_494 = arith.constant 1008 : index
    %1451 = vector.load %arg2[%c0_493, %c1008_494] : memref<4x1152xf32, #tpu.memory_space<vmem>>, vector<4x144xf32>
    %1452 = vector.broadcast %1450 : vector<1x1xf32> to vector<4x144xf32>
    %1453 = arith.mulf %1452, %1451 : vector<4x144xf32>
    %1454 = arith.addf %1449, %1453 : vector<4x144xf32>
    %1455 = vector.broadcast %1397 : vector<1x1xf32> to vector<4x144xf32>
    %1456 = arith.mulf %1454, %1455 : vector<4x144xf32>
    %1457 = vector.broadcast %1398 : vector<1x1xf32> to vector<4x144xf32>
    %1458 = arith.addf %1456, %1457 : vector<4x144xf32>
    %cst_495 = arith.constant 0.000000e+00 : f32
    %1459 = vector.broadcast %cst_495 : f32 to vector<4x144xf32>
    %1460 = arith.maximumf %1458, %1459 : vector<4x144xf32>
    %1461 = arith.maximumf %1445, %1460 : vector<4x144xf32>
    %c0_496 = arith.constant 0 : index
    %c0_497 = arith.constant 0 : index
    %1462 = vector.load %arg24[%c0_496, %c0_497] : memref<4x1600xf32, #tpu.memory_space<vmem>>, vector<4x32xf32>
    tpu.vector_store %arg24[%c0_496, %c0_497], %139 {strides = array<i32>} : memref<4x1600xf32, #tpu.memory_space<vmem>>, vector<4x32xf32>,
    %c0_498 = arith.constant 0 : index
    %c32_499 = arith.constant 32 : index
    %1463 = vector.load %arg24[%c0_498, %c32_499] : memref<4x1600xf32, #tpu.memory_space<vmem>>, vector<4x32xf32>
    tpu.vector_store %arg24[%c0_498, %c32_499], %140 {strides = array<i32>} : memref<4x1600xf32, #tpu.memory_space<vmem>>, vector<4x32xf32>,
    %c0_500 = arith.constant 0 : index
    %c64_501 = arith.constant 64 : index
    %1464 = vector.load %arg24[%c0_500, %c64_501] : memref<4x1600xf32, #tpu.memory_space<vmem>>, vector<4x32xf32>
    tpu.vector_store %arg24[%c0_500, %c64_501], %141 {strides = array<i32>} : memref<4x1600xf32, #tpu.memory_space<vmem>>, vector<4x32xf32>,
    %c0_502 = arith.constant 0 : index
    %c96_503 = arith.constant 96 : index
    %1465 = vector.load %arg24[%c0_502, %c96_503] : memref<4x1600xf32, #tpu.memory_space<vmem>>, vector<4x32xf32>
    tpu.vector_store %arg24[%c0_502, %c96_503], %142 {strides = array<i32>} : memref<4x1600xf32, #tpu.memory_space<vmem>>, vector<4x32xf32>,
    %c0_504 = arith.constant 0 : index
    %c128 = arith.constant 128 : index
    %1466 = vector.load %arg24[%c0_504, %c128] : memref<4x1600xf32, #tpu.memory_space<vmem>>, vector<4x64xf32>
    tpu.vector_store %arg24[%c0_504, %c128], %282 {strides = array<i32>} : memref<4x1600xf32, #tpu.memory_space<vmem>>, vector<4x64xf32>,
    %c0_505 = arith.constant 0 : index
    %c192 = arith.constant 192 : index
    %1467 = vector.load %arg24[%c0_505, %c192] : memref<4x1600xf32, #tpu.memory_space<vmem>>, vector<4x64xf32>
    tpu.vector_store %arg24[%c0_505, %c192], %283 {strides = array<i32>} : memref<4x1600xf32, #tpu.memory_space<vmem>>, vector<4x64xf32>,
    %c0_506 = arith.constant 0 : index
    %c256 = arith.constant 256 : index
    %1468 = vector.load %arg24[%c0_506, %c256] : memref<4x1600xf32, #tpu.memory_space<vmem>>, vector<4x64xf32>
    tpu.vector_store %arg24[%c0_506, %c256], %284 {strides = array<i32>} : memref<4x1600xf32, #tpu.memory_space<vmem>>, vector<4x64xf32>,
    %c0_507 = arith.constant 0 : index
    %c320 = arith.constant 320 : index
    %1469 = vector.load %arg24[%c0_507, %c320] : memref<4x1600xf32, #tpu.memory_space<vmem>>, vector<4x64xf32>
    tpu.vector_store %arg24[%c0_507, %c320], %285 {strides = array<i32>} : memref<4x1600xf32, #tpu.memory_space<vmem>>, vector<4x64xf32>,
    %c0_508 = arith.constant 0 : index
    %c384 = arith.constant 384 : index
    %1470 = vector.load %arg24[%c0_508, %c384] : memref<4x1600xf32, #tpu.memory_space<vmem>>, vector<4x32xf32>
    tpu.vector_store %arg24[%c0_508, %c384], %940 {strides = array<i32>} : memref<4x1600xf32, #tpu.memory_space<vmem>>, vector<4x32xf32>,
    %c0_509 = arith.constant 0 : index
    %c416 = arith.constant 416 : index
    %1471 = vector.load %arg24[%c0_509, %c416] : memref<4x1600xf32, #tpu.memory_space<vmem>>, vector<4x32xf32>
    tpu.vector_store %arg24[%c0_509, %c416], %941 {strides = array<i32>} : memref<4x1600xf32, #tpu.memory_space<vmem>>, vector<4x32xf32>,
    %c0_510 = arith.constant 0 : index
    %c448 = arith.constant 448 : index
    %1472 = vector.load %arg24[%c0_510, %c448] : memref<4x1600xf32, #tpu.memory_space<vmem>>, vector<4x144xf32>
    tpu.vector_store %arg24[%c0_510, %c448], %1006 {strides = array<i32>} : memref<4x1600xf32, #tpu.memory_space<vmem>>, vector<4x144xf32>,
    %c0_511 = arith.constant 0 : index
    %c592 = arith.constant 592 : index
    %1473 = vector.load %arg24[%c0_511, %c592] : memref<4x1600xf32, #tpu.memory_space<vmem>>, vector<4x144xf32>
    tpu.vector_store %arg24[%c0_511, %c592], %1071 {strides = array<i32>} : memref<4x1600xf32, #tpu.memory_space<vmem>>, vector<4x144xf32>,
    %c0_512 = arith.constant 0 : index
    %c736 = arith.constant 736 : index
    %1474 = vector.load %arg24[%c0_512, %c736] : memref<4x1600xf32, #tpu.memory_space<vmem>>, vector<4x144xf32>
    tpu.vector_store %arg24[%c0_512, %c736], %1136 {strides = array<i32>} : memref<4x1600xf32, #tpu.memory_space<vmem>>, vector<4x144xf32>,
    %c0_513 = arith.constant 0 : index
    %c880 = arith.constant 880 : index
    %1475 = vector.load %arg24[%c0_513, %c880] : memref<4x1600xf32, #tpu.memory_space<vmem>>, vector<4x144xf32>
    tpu.vector_store %arg24[%c0_513, %c880], %1201 {strides = array<i32>} : memref<4x1600xf32, #tpu.memory_space<vmem>>, vector<4x144xf32>,
    %c0_514 = arith.constant 0 : index
    %c1024 = arith.constant 1024 : index
    %1476 = vector.load %arg24[%c0_514, %c1024] : memref<4x1600xf32, #tpu.memory_space<vmem>>, vector<4x144xf32>
    tpu.vector_store %arg24[%c0_514, %c1024], %1266 {strides = array<i32>} : memref<4x1600xf32, #tpu.memory_space<vmem>>, vector<4x144xf32>,
    %c0_515 = arith.constant 0 : index
    %c1168 = arith.constant 1168 : index
    %1477 = vector.load %arg24[%c0_515, %c1168] : memref<4x1600xf32, #tpu.memory_space<vmem>>, vector<4x144xf32>
    tpu.vector_store %arg24[%c0_515, %c1168], %1331 {strides = array<i32>} : memref<4x1600xf32, #tpu.memory_space<vmem>>, vector<4x144xf32>,
    %c0_516 = arith.constant 0 : index
    %c1312 = arith.constant 1312 : index
    %1478 = vector.load %arg24[%c0_516, %c1312] : memref<4x1600xf32, #tpu.memory_space<vmem>>, vector<4x144xf32>
    tpu.vector_store %arg24[%c0_516, %c1312], %1396 {strides = array<i32>} : memref<4x1600xf32, #tpu.memory_space<vmem>>, vector<4x144xf32>,
    %c0_517 = arith.constant 0 : index
    %c1456 = arith.constant 1456 : index
    %1479 = vector.load %arg24[%c0_517, %c1456] : memref<4x1600xf32, #tpu.memory_space<vmem>>, vector<4x144xf32>
    tpu.vector_store %arg24[%c0_517, %c1456], %1461 {strides = array<i32>} : memref<4x1600xf32, #tpu.memory_space<vmem>>, vector<4x144xf32>,
    %c0_518 = arith.constant 0 : index
    %c0_519 = arith.constant 0 : index
    %1480 = vector.load %arg24[%c0_518, %c0_519] : memref<4x1600xf32, #tpu.memory_space<vmem>>, vector<4x1600xf32>
    %c0_520 = arith.constant 0 : index
    %c0_521 = arith.constant 0 : index
    %1481 = vector.load %arg18[%c0_520, %c0_521] : memref<1600x128xf32, #tpu.memory_space<vmem>>, vector<1600x128xf32>
    %cst_522 = arith.constant dense<0.000000e+00> : vector<4x128xf32>
    %1482 = tpu.matmul %1480, %1481, %cst_522 {dimension_numbers = #tpu.dot_dimension_numbers<[1], [0], [0], [1], [0, 0, 1, 1], [], []>} : vector<4x1600xf32>, vector<1600x128xf32>, vector<4x128xf32> -> vector<4x128xf32>
    %c0_523 = arith.constant 0 : index
    %c0_524 = arith.constant 0 : index
    %1483 = vector.load %arg19[%c0_523, %c0_524] : memref<1x128xf32, #tpu.memory_space<vmem>>, vector<1x128xf32>
    %1484 = vector.broadcast %1483 : vector<1x128xf32> to vector<4x128xf32>
    %1485 = arith.mulf %1482, %1484 : vector<4x128xf32>
    %c0_525 = arith.constant 0 : index
    %c0_526 = arith.constant 0 : index
    %1486 = vector.load %arg20[%c0_525, %c0_526] : memref<1x128xf32, #tpu.memory_space<vmem>>, vector<1x128xf32>
    %1487 = vector.broadcast %1486 : vector<1x128xf32> to vector<4x128xf32>
    %1488 = arith.addf %1485, %1487 : vector<4x128xf32>
    %cst_527 = arith.constant 0.000000e+00 : f32
    %1489 = vector.broadcast %cst_527 : f32 to vector<4x128xf32>
    %1490 = arith.maximumf %1488, %1489 : vector<4x128xf32>
    %c0_528 = arith.constant 0 : index
    %c0_529 = arith.constant 0 : index
    %1491 = vector.load %arg21[%c0_528, %c0_529] : memref<128x2xf32, #tpu.memory_space<vmem>>, vector<128x2xf32>
    %cst_530 = arith.constant dense<0.000000e+00> : vector<4x2xf32>
    %1492 = tpu.matmul %1490, %1491, %cst_530 {dimension_numbers = #tpu.dot_dimension_numbers<[1], [0], [0], [1], [0, 0, 1, 1], [], []>} : vector<4x128xf32>, vector<128x2xf32>, vector<4x2xf32> -> vector<4x2xf32>
    %c0_531 = arith.constant 0 : index
    %c0_532 = arith.constant 0 : index
    %1493 = vector.load %arg22[%c0_531, %c0_532] : memref<1x2xf32, #tpu.memory_space<vmem>>, vector<1x2xf32>
    %1494 = vector.broadcast %1493 : vector<1x2xf32> to vector<4x2xf32>
    %1495 = arith.addf %1492, %1494 : vector<4x2xf32>
    %c0_533 = arith.constant 0 : index
    %c0_534 = arith.constant 0 : index
    %1496 = vector.load %arg23[%c0_533, %c0_534] : memref<4x2xf32, #tpu.memory_space<vmem>>, vector<4x2xf32>
    tpu.vector_store %arg23[%c0_533, %c0_534], %1495 {strides = array<i32>} : memref<4x2xf32, #tpu.memory_space<vmem>>, vector<4x2xf32>,
    return
  }
  func.func @transform_0(%arg0: i32) -> (i32, i32) {
    %c0_i32 = arith.constant 0 : i32
    %c0_i32_0 = arith.constant 0 : i32
    %c0_i32_1 = arith.constant 0 : i32
    return %c0_i32, %c0_i32_0 : i32, i32
  }
  func.func @transform_1(%arg0: i32) -> (i32, i32) {
    %c0_i32 = arith.constant 0 : i32
    %c0_i32_0 = arith.constant 0 : i32
    %c0_i32_1 = arith.constant 0 : i32
    return %c0_i32, %c0_i32_0 : i32, i32
  }
  func.func @transform_2(%arg0: i32) -> (i32, i32) {
    %c0_i32 = arith.constant 0 : i32
    %c0_i32_0 = arith.constant 0 : i32
    %c0_i32_1 = arith.constant 0 : i32
    return %c0_i32, %c0_i32_0 : i32, i32
  }
  func.func @transform_3(%arg0: i32) -> (i32, i32) {
    %c0_i32 = arith.constant 0 : i32
    %c0_i32_0 = arith.constant 0 : i32
    %c0_i32_1 = arith.constant 0 : i32
    return %c0_i32, %c0_i32_0 : i32, i32
  }
  func.func @transform_4(%arg0: i32) -> (i32, i32) {
    %c0_i32 = arith.constant 0 : i32
    %c0_i32_0 = arith.constant 0 : i32
    %c0_i32_1 = arith.constant 0 : i32
    return %c0_i32, %c0_i32_0 : i32, i32
  }
  func.func @transform_5(%arg0: i32) -> (i32, i32) {
    %c0_i32 = arith.constant 0 : i32
    %c0_i32_0 = arith.constant 0 : i32
    %c0_i32_1 = arith.constant 0 : i32
    return %c0_i32, %c0_i32_0 : i32, i32
  }
  func.func @transform_6(%arg0: i32) -> (i32, i32) {
    %c0_i32 = arith.constant 0 : i32
    %c0_i32_0 = arith.constant 0 : i32
    %c0_i32_1 = arith.constant 0 : i32
    return %c0_i32, %c0_i32_0 : i32, i32
  }
  func.func @transform_7(%arg0: i32) -> (i32, i32) {
    %c0_i32 = arith.constant 0 : i32
    %c0_i32_0 = arith.constant 0 : i32
    %c0_i32_1 = arith.constant 0 : i32
    return %c0_i32, %c0_i32_0 : i32, i32
  }
  func.func @transform_8(%arg0: i32) -> (i32, i32) {
    %c0_i32 = arith.constant 0 : i32
    %c0_i32_0 = arith.constant 0 : i32
    %c0_i32_1 = arith.constant 0 : i32
    return %c0_i32, %c0_i32_0 : i32, i32
  }
  func.func @transform_9(%arg0: i32) -> (i32, i32) {
    %c0_i32 = arith.constant 0 : i32
    %c0_i32_0 = arith.constant 0 : i32
    %c0_i32_1 = arith.constant 0 : i32
    return %c0_i32, %c0_i32_0 : i32, i32
  }
  func.func @transform_10(%arg0: i32) -> (i32, i32) {
    %c0_i32 = arith.constant 0 : i32
    %c0_i32_0 = arith.constant 0 : i32
    %c0_i32_1 = arith.constant 0 : i32
    return %c0_i32, %c0_i32_0 : i32, i32
  }
  func.func @transform_11(%arg0: i32) -> (i32, i32) {
    %c0_i32 = arith.constant 0 : i32
    %c0_i32_0 = arith.constant 0 : i32
    %c0_i32_1 = arith.constant 0 : i32
    return %c0_i32, %c0_i32_0 : i32, i32
  }
  func.func @transform_12(%arg0: i32) -> (i32, i32) {
    %c0_i32 = arith.constant 0 : i32
    %c0_i32_0 = arith.constant 0 : i32
    %c0_i32_1 = arith.constant 0 : i32
    return %c0_i32, %c0_i32_0 : i32, i32
  }
  func.func @transform_13(%arg0: i32) -> (i32, i32) {
    %c0_i32 = arith.constant 0 : i32
    %c0_i32_0 = arith.constant 0 : i32
    %c0_i32_1 = arith.constant 0 : i32
    return %c0_i32, %c0_i32_0 : i32, i32
  }
  func.func @transform_14(%arg0: i32) -> (i32, i32) {
    %c0_i32 = arith.constant 0 : i32
    %c0_i32_0 = arith.constant 0 : i32
    %c0_i32_1 = arith.constant 0 : i32
    return %c0_i32, %c0_i32_0 : i32, i32
  }
  func.func @transform_15(%arg0: i32) -> (i32, i32) {
    %c0_i32 = arith.constant 0 : i32
    %c0_i32_0 = arith.constant 0 : i32
    %c0_i32_1 = arith.constant 0 : i32
    return %c0_i32, %c0_i32_0 : i32, i32
  }
  func.func @transform_16(%arg0: i32) -> (i32, i32) {
    %c0_i32 = arith.constant 0 : i32
    %c0_i32_0 = arith.constant 0 : i32
    %c0_i32_1 = arith.constant 0 : i32
    return %c0_i32, %c0_i32_0 : i32, i32
  }
  func.func @transform_17(%arg0: i32) -> (i32, i32) {
    %c0_i32 = arith.constant 0 : i32
    %c0_i32_0 = arith.constant 0 : i32
    %c0_i32_1 = arith.constant 0 : i32
    return %c0_i32, %c0_i32_0 : i32, i32
  }
  func.func @transform_18(%arg0: i32) -> (i32, i32) {
    %c0_i32 = arith.constant 0 : i32
    %c0_i32_0 = arith.constant 0 : i32
    %c0_i32_1 = arith.constant 0 : i32
    return %c0_i32, %c0_i32_0 : i32, i32
  }
  func.func @transform_19(%arg0: i32) -> (i32, i32) {
    %c0_i32 = arith.constant 0 : i32
    %c0_i32_0 = arith.constant 0 : i32
    %c0_i32_1 = arith.constant 0 : i32
    return %c0_i32, %c0_i32_0 : i32, i32
  }
  func.func @transform_20(%arg0: i32) -> (i32, i32) {
    %c0_i32 = arith.constant 0 : i32
    %c0_i32_0 = arith.constant 0 : i32
    %c0_i32_1 = arith.constant 0 : i32
    return %c0_i32, %c0_i32_0 : i32, i32
  }
  func.func @transform_21(%arg0: i32) -> (i32, i32) {
    %c0_i32 = arith.constant 0 : i32
    %c0_i32_0 = arith.constant 0 : i32
    %c0_i32_1 = arith.constant 0 : i32
    return %c0_i32, %c0_i32_0 : i32, i32
  }
  func.func @transform_22(%arg0: i32) -> (i32, i32) {
    %c0_i32 = arith.constant 0 : i32
    %c0_i32_0 = arith.constant 0 : i32
    %c0_i32_1 = arith.constant 0 : i32
    return %c0_i32, %c0_i32_0 : i32, i32
  }
}

</mosaic_0001>

<llo_original>
// kernel: a_call__.1
$region0: #{a_call__.1}
  #allocation0 [shape = 'u32[]', space=smem, size = 0x4, offset = 0x4, fixed_abs, tag = 'smem constant byte address 0x4 - core index']
  #allocation1 [shape = 'u32[144,128]{1,0:T(1,128)}', space=vmem, size = 0x12000, scoped, tag = 'internal scratch']
  #allocation2 [shape = 'f32[4,1600]{1,0:T(4,128)}', space=vmem, size = 0x6800, scoped, tag = 'scratch operand']
  %s0 = inlined_call_operand.vmem [shape: f32[4,128], index: 0, kind: input, shape index: {}]
  %s1 = inlined_call_operand.vmem [shape: f32[4,1152], index: 1, kind: input, shape index: {}]
  %s2 = inlined_call_operand.vmem [shape: f32[2,32], index: 2, kind: input, shape index: {}]
  %s3 = inlined_call_operand.vmem [shape: f32[1,32], index: 3, kind: input, shape index: {}]
  %s4 = inlined_call_operand.vmem [shape: f32[1,32], index: 4, kind: input, shape index: {}]
  %s5 = inlined_call_operand.vmem [shape: f32[2,64], index: 5, kind: input, shape index: {}]
  %s6 = inlined_call_operand.vmem [shape: f32[1,64], index: 6, kind: input, shape index: {}]
  %s7 = inlined_call_operand.vmem [shape: f32[1,64], index: 7, kind: input, shape index: {}]
  %s8 = inlined_call_operand.vmem [shape: f32[12,64], index: 8, kind: input, shape index: {}]
  %s9 = inlined_call_operand.vmem [shape: f32[1,64], index: 9, kind: input, shape index: {}]
  %s10 = inlined_call_operand.vmem [shape: f32[1,64], index: 10, kind: input, shape index: {}]
  %s11 = inlined_call_operand.vmem [shape: f32[64,32], index: 11, kind: input, shape index: {}]
  %s12 = inlined_call_operand.vmem [shape: f32[1,32], index: 12, kind: input, shape index: {}]
  %s13 = inlined_call_operand.vmem [shape: f32[1,32], index: 13, kind: input, shape index: {}]
  %s14 = inlined_call_operand.vmem [shape: f32[8,2], index: 14, kind: input, shape index: {}]
  %s15 = inlined_call_operand.vmem [shape: f32[1,8], index: 15, kind: input, shape index: {}]
  %s16 = inlined_call_operand.vmem [shape: f32[1,8], index: 16, kind: input, shape index: {}]
  %s17 = inlined_call_operand.vmem [shape: f32[1600,128], index: 17, kind: input, shape index: {}]
  %s18 = inlined_call_operand.vmem [shape: f32[1,128], index: 18, kind: input, shape index: {}]
  %s19 = inlined_call_operand.vmem [shape: f32[1,128], index: 19, kind: input, shape index: {}]
  %s20 = inlined_call_operand.vmem [shape: f32[128,2], index: 20, kind: input, shape index: {}]
  %s21 = inlined_call_operand.vmem [shape: f32[1,2], index: 21, kind: input, shape index: {}]
  %s22 = inlined_call_operand.vmem [shape: f32[4,2], index: 22, kind: output, shape index: {}]
  %s23 = sld [smem:[#allocation0]]
  $region98: #{a_call__.1} parent=0
    _
  %s25 = ssub.s32 1, %s23
  %s26 = scalar_select 0, %s25, %s23
  // Predicated region
  $region2: #{a_call__.1} parent=0 // pred_check
    _
  $region3: #{a_call__.1} parent=0 // pred_check_branch
    %28 = sbr.rel (0) target = $region5
  $region4: #{a_call__.1} parent=0 // pred_region
    _
  $region5: #{a_call__.1} parent=0 // pred_fallthru
    _
  // Predicated region
  $region6: #{a_call__.1} parent=0 // pred_check
    _
  $region7: #{a_call__.1} parent=0 // pred_check_branch
    %30 = sbr.rel (0) target = $region9
  $region8: #{a_call__.1} parent=0 // pred_region
    _
  $region9: #{a_call__.1} parent=0 // pred_fallthru
    _
  // Predicated region
  $region10: #{a_call__.1} parent=0 // pred_check
    _
  $region11: #{a_call__.1} parent=0 // pred_check_branch
    %32 = sbr.rel (0) target = $region13
  $region12: #{a_call__.1} parent=0 // pred_region
    _
  $region13: #{a_call__.1} parent=0 // pred_fallthru
    _
  // Predicated region
  $region14: #{a_call__.1} parent=0 // pred_check
    _
  $region15: #{a_call__.1} parent=0 // pred_check_branch
    %34 = sbr.rel (0) target = $region17
  $region16: #{a_call__.1} parent=0 // pred_region
    _
  $region17: #{a_call__.1} parent=0 // pred_fallthru
    _
  // Predicated region
  $region18: #{a_call__.1} parent=0 // pred_check
    _
  $region19: #{a_call__.1} parent=0 // pred_check_branch
    %36 = sbr.rel (0) target = $region21
  $region20: #{a_call__.1} parent=0 // pred_region
    _
  $region21: #{a_call__.1} parent=0 // pred_fallthru
    _
  // Predicated region
  $region22: #{a_call__.1} parent=0 // pred_check
    _
  $region23: #{a_call__.1} parent=0 // pred_check_branch
    %38 = sbr.rel (0) target = $region25
  $region24: #{a_call__.1} parent=0 // pred_region
    _
  $region25: #{a_call__.1} parent=0 // pred_fallthru
    _
  // Predicated region
  $region26: #{a_call__.1} parent=0 // pred_check
    _
  $region27: #{a_call__.1} parent=0 // pred_check_branch
    %40 = sbr.rel (0) target = $region29
  $region28: #{a_call__.1} parent=0 // pred_region
    _
  $region29: #{a_call__.1} parent=0 // pred_fallthru
    _
  // Predicated region
  $region30: #{a_call__.1} parent=0 // pred_check
    _
  $region31: #{a_call__.1} parent=0 // pred_check_branch
    %42 = sbr.rel (0) target = $region33
  $region32: #{a_call__.1} parent=0 // pred_region
    _
  $region33: #{a_call__.1} parent=0 // pred_fallthru
    _
  // Predicated region
  $region34: #{a_call__.1} parent=0 // pred_check
    _
  $region35: #{a_call__.1} parent=0 // pred_check_branch
    %44 = sbr.rel (0) target = $region37
  $region36: #{a_call__.1} parent=0 // pred_region
    _
  $region37: #{a_call__.1} parent=0 // pred_fallthru
    _
  // Predicated region
  $region38: #{a_call__.1} parent=0 // pred_check
    _
  $region39: #{a_call__.1} parent=0 // pred_check_branch
    %46 = sbr.rel (0) target = $region41
  $region40: #{a_call__.1} parent=0 // pred_region
    _
  $region41: #{a_call__.1} parent=0 // pred_fallthru
    _
  // Predicated region
  $region42: #{a_call__.1} parent=0 // pred_check
    _
  $region43: #{a_call__.1} parent=0 // pred_check_branch
    %48 = sbr.rel (0) target = $region45
  $region44: #{a_call__.1} parent=0 // pred_region
    _
  $region45: #{a_call__.1} parent=0 // pred_fallthru
    _
  // Predicated region
  $region46: #{a_call__.1} parent=0 // pred_check
    _
  $region47: #{a_call__.1} parent=0 // pred_check_branch
    %50 = sbr.rel (0) target = $region49
  $region48: #{a_call__.1} parent=0 // pred_region
    _
  $region49: #{a_call__.1} parent=0 // pred_fallthru
    _
  // Predicated region
  $region50: #{a_call__.1} parent=0 // pred_check
    _
  $region51: #{a_call__.1} parent=0 // pred_check_branch
    %52 = sbr.rel (0) target = $region53
  $region52: #{a_call__.1} parent=0 // pred_region
    _
  $region53: #{a_call__.1} parent=0 // pred_fallthru
    _
  // Predicated region
  $region54: #{a_call__.1} parent=0 // pred_check
    _
  $region55: #{a_call__.1} parent=0 // pred_check_branch
    %54 = sbr.rel (0) target = $region57
  $region56: #{a_call__.1} parent=0 // pred_region
    _
  $region57: #{a_call__.1} parent=0 // pred_fallthru
    _
  // Predicated region
  $region58: #{a_call__.1} parent=0 // pred_check
    _
  $region59: #{a_call__.1} parent=0 // pred_check_branch
    %56 = sbr.rel (0) target = $region61
  $region60: #{a_call__.1} parent=0 // pred_region
    _
  $region61: #{a_call__.1} parent=0 // pred_fallthru
    _
  // Predicated region
  $region62: #{a_call__.1} parent=0 // pred_check
    _
  $region63: #{a_call__.1} parent=0 // pred_check_branch
    %58 = sbr.rel (0) target = $region65
  $region64: #{a_call__.1} parent=0 // pred_region
    _
  $region65: #{a_call__.1} parent=0 // pred_fallthru
    _
  // Predicated region
  $region66: #{a_call__.1} parent=0 // pred_check
    _
  $region67: #{a_call__.1} parent=0 // pred_check_branch
    %60 = sbr.rel (0) target = $region69
  $region68: #{a_call__.1} parent=0 // pred_region
    _
  $region69: #{a_call__.1} parent=0 // pred_fallthru
    _
  // Predicated region
  $region70: #{a_call__.1} parent=0 // pred_check
    _
  $region71: #{a_call__.1} parent=0 // pred_check_branch
    %62 = sbr.rel (0) target = $region73
  $region72: #{a_call__.1} parent=0 // pred_region
    _
  $region73: #{a_call__.1} parent=0 // pred_fallthru
    _
  // Predicated region
  $region74: #{a_call__.1} parent=0 // pred_check
    _
  $region75: #{a_call__.1} parent=0 // pred_check_branch
    %64 = sbr.rel (0) target = $region77
  $region76: #{a_call__.1} parent=0 // pred_region
    _
  $region77: #{a_call__.1} parent=0 // pred_fallthru
    _
  // Predicated region
  $region78: #{a_call__.1} parent=0 // pred_check
    _
  $region79: #{a_call__.1} parent=0 // pred_check_branch
    %66 = sbr.rel (0) target = $region81
  $region80: #{a_call__.1} parent=0 // pred_region
    _
  $region81: #{a_call__.1} parent=0 // pred_fallthru
    _
  // Predicated region
  $region82: #{a_call__.1} parent=0 // pred_check
    _
  $region83: #{a_call__.1} parent=0 // pred_check_branch
    %68 = sbr.rel (0) target = $region85
  $region84: #{a_call__.1} parent=0 // pred_region
    _
  $region85: #{a_call__.1} parent=0 // pred_fallthru
    _
  // Predicated region
  $region86: #{a_call__.1} parent=0 // pred_check
    _
  $region87: #{a_call__.1} parent=0 // pred_check_branch
    %70 = sbr.rel (0) target = $region89
  $region88: #{a_call__.1} parent=0 // pred_region
    _
  $region89: #{a_call__.1} parent=0 // pred_fallthru
    _
  %v71 = vld [vmem:[%s2] sm:$0x3]
  %v72 = vld [vmem:[%s3] sm:$0x1]
  %v73 = vld [vmem:[%s4] sm:$0x1]
  %v74 = vld [vmem:[%s0] sm:$0xf]
  %76 = vset.pattern.permute.xlu0 0
  %77 = vperm.xlu0 %76, %v74
  %v78 = vpop.permute.xlu0 %77
  %v80 = vlaneseq
  %v81 = vshrl.u32 %v80, 7
  %v82 = vsub.s32 0, %v81
  %v83 = vrot.slane %v71, %v82
  %v84 = vmul.f32 %v78, %v83
  %85 = vset.pattern.permute.xlu0 1
  %86 = vperm.xlu0 %85, %v74
  %v87 = vpop.permute.xlu0 %86
  %v89 = vlaneseq
  %v90 = vshrl.u32 %v89, 7
  %v91 = vsub.s32 1, %v90
  %v92 = vrot.slane %v71, %v91
  %v93 = vmul.f32 %v87, %v92
  %v94 = vadd.f32 %v84, %v93
  %v96 = vlaneseq
  %v97 = vshrl.u32 %v96, 7
  %v98 = vsub.s32 0, %v97
  %v99 = vrot.slane %v72, %v98
  %v101 = vmul.f32 %v94, %v99
  %v103 = vlaneseq
  %v104 = vshrl.u32 %v103, 7
  %v105 = vsub.s32 0, %v104
  %v106 = vrot.slane %v73, %v105
  %v108 = vadd.f32 %v101, %v106
  %v109 = vmax.f32 %v108, 0.0
  %110 = vset.pattern.permute.xlu0 2
  %111 = vperm.xlu0 %110, %v74
  %v112 = vpop.permute.xlu0 %111
  %v114 = vmul.f32 %v112, %v83
  %115 = vset.pattern.permute.xlu0 3
  %116 = vperm.xlu0 %115, %v74
  %v117 = vpop.permute.xlu0 %116
  %v119 = vmul.f32 %v117, %v92
  %v120 = vadd.f32 %v114, %v119
  %v121 = vmul.f32 %v120, %v99
  %v122 = vadd.f32 %v121, %v106
  %v123 = vmax.f32 %v122, 0.0
  %124 = vset.pattern.permute.xlu0 4
  %125 = vperm.xlu0 %124, %v74
  %v126 = vpop.permute.xlu0 %125
  %v128 = vmul.f32 %v126, %v83
  %129 = vset.pattern.permute.xlu0 5
  %130 = vperm.xlu0 %129, %v74
  %v131 = vpop.permute.xlu0 %130
  %v133 = vmul.f32 %v131, %v92
  %v134 = vadd.f32 %v128, %v133
  %v135 = vmul.f32 %v134, %v99
  %v136 = vadd.f32 %v135, %v106
  %v137 = vmax.f32 %v136, 0.0
  %138 = vset.pattern.permute.xlu0 6
  %139 = vperm.xlu0 %138, %v74
  %v140 = vpop.permute.xlu0 %139
  %v142 = vmul.f32 %v140, %v83
  %143 = vset.pattern.permute.xlu0 7
  %144 = vperm.xlu0 %143, %v74
  %v145 = vpop.permute.xlu0 %144
  %v147 = vmul.f32 %v145, %v92
  %v148 = vadd.f32 %v142, %v147
  %v149 = vmul.f32 %v148, %v99
  %v150 = vadd.f32 %v149, %v106
  %v151 = vmax.f32 %v150, 0.0
  %152 = vset.pattern.permute.xlu0 8
  %153 = vperm.xlu0 %152, %v74
  %v154 = vpop.permute.xlu0 %153
  %v156 = vmul.f32 %v154, %v83
  %157 = vset.pattern.permute.xlu0 9
  %158 = vperm.xlu0 %157, %v74
  %v159 = vpop.permute.xlu0 %158
  %v161 = vmul.f32 %v159, %v92
  %v162 = vadd.f32 %v156, %v161
  %v163 = vmul.f32 %v162, %v99
  %v164 = vadd.f32 %v163, %v106
  %v165 = vmax.f32 %v164, 0.0
  %166 = vset.pattern.permute.xlu0 10
  %167 = vperm.xlu0 %166, %v74
  %v168 = vpop.permute.xlu0 %167
  %v170 = vmul.f32 %v168, %v83
  %171 = vset.pattern.permute.xlu0 11
  %172 = vperm.xlu0 %171, %v74
  %v173 = vpop.permute.xlu0 %172
  %v175 = vmul.f32 %v173, %v92
  %v176 = vadd.f32 %v170, %v175
  %v177 = vmul.f32 %v176, %v99
  %v178 = vadd.f32 %v177, %v106
  %v179 = vmax.f32 %v178, 0.0
  %180 = vset.pattern.permute.xlu0 12
  %181 = vperm.xlu0 %180, %v74
  %v182 = vpop.permute.xlu0 %181
  %v184 = vmul.f32 %v182, %v83
  %185 = vset.pattern.permute.xlu0 13
  %186 = vperm.xlu0 %185, %v74
  %v187 = vpop.permute.xlu0 %186
  %v189 = vmul.f32 %v187, %v92
  %v190 = vadd.f32 %v184, %v189
  %v191 = vmul.f32 %v190, %v99
  %v192 = vadd.f32 %v191, %v106
  %v193 = vmax.f32 %v192, 0.0
  %194 = vset.pattern.permute.xlu0 14
  %195 = vperm.xlu0 %194, %v74
  %v196 = vpop.permute.xlu0 %195
  %v198 = vmul.f32 %v196, %v83
  %199 = vset.pattern.permute.xlu0 15
  %200 = vperm.xlu0 %199, %v74
  %v201 = vpop.permute.xlu0 %200
  %v203 = vmul.f32 %v201, %v92
  %v204 = vadd.f32 %v198, %v203
  %v205 = vmul.f32 %v204, %v99
  %v206 = vadd.f32 %v205, %v106
  %v207 = vmax.f32 %v206, 0.0
  %v208 = vmax.f32 %v109, %v123
  %v209 = vmax.f32 %v137, %v151
  %v210 = vmax.f32 %v165, %v179
  %v211 = vmax.f32 %v193, %v207
  %v212 = vld [vmem:[%s5] sm:$0x3]
  %v213 = vld [vmem:[%s6] sm:$0x1]
  %v214 = vld [vmem:[%s7] sm:$0x1]
  %215 = vset.pattern.permute.xlu0 16
  %216 = vperm.xlu0 %215, %v74
  %v217 = vpop.permute.xlu0 %216
  %v219 = vlaneseq
  %v220 = vshrl.u32 %v219, 7
  %v221 = vsub.s32 0, %v220
  %v222 = vrot.slane %v212, %v221
  %v223 = vmul.f32 %v217, %v222
  %224 = vset.pattern.permute.xlu0 17
  %225 = vperm.xlu0 %224, %v74
  %v226 = vpop.permute.xlu0 %225
  %v228 = vlaneseq
  %v229 = vshrl.u32 %v228, 7
  %v230 = vsub.s32 1, %v229
  %v231 = vrot.slane %v212, %v230
  %v232 = vmul.f32 %v226, %v231
  %v233 = vadd.f32 %v223, %v232
  %v235 = vlaneseq
  %v236 = vshrl.u32 %v235, 7
  %v237 = vsub.s32 0, %v236
  %v238 = vrot.slane %v213, %v237
  %v240 = vmul.f32 %v233, %v238
  %v242 = vlaneseq
  %v243 = vshrl.u32 %v242, 7
  %v244 = vsub.s32 0, %v243
  %v245 = vrot.slane %v214, %v244
  %v247 = vadd.f32 %v240, %v245
  %v248 = vmax.f32 %v247, 0.0
  %249 = vset.pattern.permute.xlu0 18
  %250 = vperm.xlu0 %249, %v74
  %v251 = vpop.permute.xlu0 %250
  %v253 = vmul.f32 %v251, %v222
  %254 = vset.pattern.permute.xlu0 19
  %255 = vperm.xlu0 %254, %v74
  %v256 = vpop.permute.xlu0 %255
  %v258 = vmul.f32 %v256, %v231
  %v259 = vadd.f32 %v253, %v258
  %v260 = vmul.f32 %v259, %v238
  %v261 = vadd.f32 %v260, %v245
  %v262 = vmax.f32 %v261, 0.0
  %263 = vset.pattern.permute.xlu0 20
  %264 = vperm.xlu0 %263, %v74
  %v265 = vpop.permute.xlu0 %264
  %v267 = vmul.f32 %v265, %v222
  %268 = vset.pattern.permute.xlu0 21
  %269 = vperm.xlu0 %268, %v74
  %v270 = vpop.permute.xlu0 %269
  %v272 = vmul.f32 %v270, %v231
  %v273 = vadd.f32 %v267, %v272
  %v274 = vmul.f32 %v273, %v238
  %v275 = vadd.f32 %v274, %v245
  %v276 = vmax.f32 %v275, 0.0
  %277 = vset.pattern.permute.xlu0 22
  %278 = vperm.xlu0 %277, %v74
  %v279 = vpop.permute.xlu0 %278
  %v281 = vmul.f32 %v279, %v222
  %282 = vset.pattern.permute.xlu0 23
  %283 = vperm.xlu0 %282, %v74
  %v284 = vpop.permute.xlu0 %283
  %v286 = vmul.f32 %v284, %v231
  %v287 = vadd.f32 %v281, %v286
  %v288 = vmul.f32 %v287, %v238
  %v289 = vadd.f32 %v288, %v245
  %v290 = vmax.f32 %v289, 0.0
  %291 = vset.pattern.permute.xlu0 24
  %292 = vperm.xlu0 %291, %v74
  %v293 = vpop.permute.xlu0 %292
  %v295 = vmul.f32 %v293, %v222
  %296 = vset.pattern.permute.xlu0 25
  %297 = vperm.xlu0 %296, %v74
  %v298 = vpop.permute.xlu0 %297
  %v300 = vmul.f32 %v298, %v231
  %v301 = vadd.f32 %v295, %v300
  %v302 = vmul.f32 %v301, %v238
  %v303 = vadd.f32 %v302, %v245
  %v304 = vmax.f32 %v303, 0.0
  %305 = vset.pattern.permute.xlu0 26
  %306 = vperm.xlu0 %305, %v74
  %v307 = vpop.permute.xlu0 %306
  %v309 = vmul.f32 %v307, %v222
  %310 = vset.pattern.permute.xlu0 27
  %311 = vperm.xlu0 %310, %v74
  %v312 = vpop.permute.xlu0 %311
  %v314 = vmul.f32 %v312, %v231
  %v315 = vadd.f32 %v309, %v314
  %v316 = vmul.f32 %v315, %v238
  %v317 = vadd.f32 %v316, %v245
  %v318 = vmax.f32 %v317, 0.0
  %319 = vset.pattern.permute.xlu0 28
  %320 = vperm.xlu0 %319, %v74
  %v321 = vpop.permute.xlu0 %320
  %v323 = vmul.f32 %v321, %v222
  %324 = vset.pattern.permute.xlu0 29
  %325 = vperm.xlu0 %324, %v74
  %v326 = vpop.permute.xlu0 %325
  %v328 = vmul.f32 %v326, %v231
  %v329 = vadd.f32 %v323, %v328
  %v330 = vmul.f32 %v329, %v238
  %v331 = vadd.f32 %v330, %v245
  %v332 = vmax.f32 %v331, 0.0
  %333 = vset.pattern.permute.xlu0 30
  %334 = vperm.xlu0 %333, %v74
  %v335 = vpop.permute.xlu0 %334
  %v337 = vmul.f32 %v335, %v222
  %338 = vset.pattern.permute.xlu0 31
  %339 = vperm.xlu0 %338, %v74
  %v340 = vpop.permute.xlu0 %339
  %v342 = vmul.f32 %v340, %v231
  %v343 = vadd.f32 %v337, %v342
  %v344 = vmul.f32 %v343, %v238
  %v345 = vadd.f32 %v344, %v245
  %v346 = vmax.f32 %v345, 0.0
  %v347 = vmax.f32 %v248, %v262
  %v348 = vmax.f32 %v276, %v290
  %v349 = vmax.f32 %v304, %v318
  %v350 = vmax.f32 %v332, %v346
  %v351 = vld [vmem:[%s8] sm:$0xff]
  %v352 = vld [vmem:[%s8 + $0x8] sm:$0xf]
  %v353 = vld [vmem:[%s9] sm:$0x1]
  %v354 = vld [vmem:[%s10] sm:$0x1]
  %355 = vset.pattern.permute.xlu0 32
  %356 = vperm.xlu0 %355, %v74
  %v357 = vpop.permute.xlu0 %356
  %v359 = vlaneseq
  %v360 = vshrl.u32 %v359, 7
  %v361 = vsub.s32 0, %v360
  %v362 = vrot.slane %v351, %v361
  %v363 = vmul.f32 %v357, %v362
  %364 = vset.pattern.permute.xlu0 33
  %365 = vperm.xlu0 %364, %v74
  %v366 = vpop.permute.xlu0 %365
  %v368 = vlaneseq
  %v369 = vshrl.u32 %v368, 7
  %v370 = vsub.s32 1, %v369
  %v371 = vrot.slane %v351, %v370
  %v372 = vmul.f32 %v366, %v371
  %v373 = vadd.f32 %v363, %v372
  %374 = vset.pattern.permute.xlu0 34
  %375 = vperm.xlu0 %374, %v74
  %v376 = vpop.permute.xlu0 %375
  %v378 = vlaneseq
  %v379 = vshrl.u32 %v378, 7
  %v380 = vsub.s32 2, %v379
  %v381 = vrot.slane %v351, %v380
  %v382 = vmul.f32 %v376, %v381
  %v383 = vadd.f32 %v373, %v382
  %384 = vset.pattern.permute.xlu0 35
  %385 = vperm.xlu0 %384, %v74
  %v386 = vpop.permute.xlu0 %385
  %v388 = vlaneseq
  %v389 = vshrl.u32 %v388, 7
  %v390 = vsub.s32 3, %v389
  %v391 = vrot.slane %v351, %v390
  %v392 = vmul.f32 %v386, %v391
  %v393 = vadd.f32 %v383, %v392
  %394 = vset.pattern.permute.xlu0 36
  %395 = vperm.xlu0 %394, %v74
  %v396 = vpop.permute.xlu0 %395
  %v398 = vlaneseq
  %v399 = vshrl.u32 %v398, 7
  %v400 = vsub.s32 4, %v399
  %v401 = vrot.slane %v351, %v400
  %v402 = vmul.f32 %v396, %v401
  %v403 = vadd.f32 %v393, %v402
  %404 = vset.pattern.permute.xlu0 37
  %405 = vperm.xlu0 %404, %v74
  %v406 = vpop.permute.xlu0 %405
  %v408 = vlaneseq
  %v409 = vshrl.u32 %v408, 7
  %v410 = vsub.s32 5, %v409
  %v411 = vrot.slane %v351, %v410
  %v412 = vmul.f32 %v406, %v411
  %v413 = vadd.f32 %v403, %v412
  %414 = vset.pattern.permute.xlu0 38
  %415 = vperm.xlu0 %414, %v74
  %v416 = vpop.permute.xlu0 %415
  %v418 = vlaneseq
  %v419 = vshrl.u32 %v418, 7
  %v420 = vsub.s32 6, %v419
  %v421 = vrot.slane %v351, %v420
  %v422 = vmul.f32 %v416, %v421
  %v423 = vadd.f32 %v413, %v422
  %424 = vset.pattern.permute.xlu0 39
  %425 = vperm.xlu0 %424, %v74
  %v426 = vpop.permute.xlu0 %425
  %v428 = vlaneseq
  %v429 = vshrl.u32 %v428, 7
  %v430 = vsub.s32 7, %v429
  %v431 = vrot.slane %v351, %v430
  %v432 = vmul.f32 %v426, %v431
  %v433 = vadd.f32 %v423, %v432
  %434 = vset.pattern.permute.xlu0 40
  %435 = vperm.xlu0 %434, %v74
  %v436 = vpop.permute.xlu0 %435
  %v438 = vlaneseq
  %v439 = vshrl.u32 %v438, 7
  %v440 = vsub.s32 0, %v439
  %v441 = vrot.slane %v352, %v440
  %v442 = vmul.f32 %v436, %v441
  %v443 = vadd.f32 %v433, %v442
  %444 = vset.pattern.permute.xlu0 41
  %445 = vperm.xlu0 %444, %v74
  %v446 = vpop.permute.xlu0 %445
  %v448 = vlaneseq
  %v449 = vshrl.u32 %v448, 7
  %v450 = vsub.s32 1, %v449
  %v451 = vrot.slane %v352, %v450
  %v452 = vmul.f32 %v446, %v451
  %v453 = vadd.f32 %v443, %v452
  %454 = vset.pattern.permute.xlu0 42
  %455 = vperm.xlu0 %454, %v74
  %v456 = vpop.permute.xlu0 %455
  %v458 = vlaneseq
  %v459 = vshrl.u32 %v458, 7
  %v460 = vsub.s32 2, %v459
  %v461 = vrot.slane %v352, %v460
  %v462 = vmul.f32 %v456, %v461
  %v463 = vadd.f32 %v453, %v462
  %464 = vset.pattern.permute.xlu0 43
  %465 = vperm.xlu0 %464, %v74
  %v466 = vpop.permute.xlu0 %465
  %v468 = vlaneseq
  %v469 = vshrl.u32 %v468, 7
  %v470 = vsub.s32 3, %v469
  %v471 = vrot.slane %v352, %v470
  %v472 = vmul.f32 %v466, %v471
  %v473 = vadd.f32 %v463, %v472
  %v475 = vlaneseq
  %v476 = vshrl.u32 %v475, 7
  %v477 = vsub.s32 0, %v476
  %v478 = vrot.slane %v353, %v477
  %v480 = vmul.f32 %v473, %v478
  %v482 = vlaneseq
  %v483 = vshrl.u32 %v482, 7
  %v484 = vsub.s32 0, %v483
  %v485 = vrot.slane %v354, %v484
  %v487 = vadd.f32 %v480, %v485
  %v488 = vmax.f32 %v487, 0.0
  %489 = vset.pattern.permute.xlu0 44
  %490 = vperm.xlu0 %489, %v74
  %v491 = vpop.permute.xlu0 %490
  %v493 = vmul.f32 %v491, %v362
  %494 = vset.pattern.permute.xlu0 45
  %495 = vperm.xlu0 %494, %v74
  %v496 = vpop.permute.xlu0 %495
  %v498 = vmul.f32 %v496, %v371
  %v499 = vadd.f32 %v493, %v498
  %500 = vset.pattern.permute.xlu0 46
  %501 = vperm.xlu0 %500, %v74
  %v502 = vpop.permute.xlu0 %501
  %v504 = vmul.f32 %v502, %v381
  %v505 = vadd.f32 %v499, %v504
  %506 = vset.pattern.permute.xlu0 47
  %507 = vperm.xlu0 %506, %v74
  %v508 = vpop.permute.xlu0 %507
  %v510 = vmul.f32 %v508, %v391
  %v511 = vadd.f32 %v505, %v510
  %512 = vset.pattern.permute.xlu0 48
  %513 = vperm.xlu0 %512, %v74
  %v514 = vpop.permute.xlu0 %513
  %v516 = vmul.f32 %v514, %v401
  %v517 = vadd.f32 %v511, %v516
  %518 = vset.pattern.permute.xlu0 49
  %519 = vperm.xlu0 %518, %v74
  %v520 = vpop.permute.xlu0 %519
  %v522 = vmul.f32 %v520, %v411
  %v523 = vadd.f32 %v517, %v522
  %524 = vset.pattern.permute.xlu0 50
  %525 = vperm.xlu0 %524, %v74
  %v526 = vpop.permute.xlu0 %525
  %v528 = vmul.f32 %v526, %v421
  %v529 = vadd.f32 %v523, %v528
  %530 = vset.pattern.permute.xlu0 51
  %531 = vperm.xlu0 %530, %v74
  %v532 = vpop.permute.xlu0 %531
  %v534 = vmul.f32 %v532, %v431
  %v535 = vadd.f32 %v529, %v534
  %536 = vset.pattern.permute.xlu0 52
  %537 = vperm.xlu0 %536, %v74
  %v538 = vpop.permute.xlu0 %537
  %v540 = vmul.f32 %v538, %v441
  %v541 = vadd.f32 %v535, %v540
  %542 = vset.pattern.permute.xlu0 53
  %543 = vperm.xlu0 %542, %v74
  %v544 = vpop.permute.xlu0 %543
  %v546 = vmul.f32 %v544, %v451
  %v547 = vadd.f32 %v541, %v546
  %548 = vset.pattern.permute.xlu0 54
  %549 = vperm.xlu0 %548, %v74
  %v550 = vpop.permute.xlu0 %549
  %v552 = vmul.f32 %v550, %v461
  %v553 = vadd.f32 %v547, %v552
  %554 = vset.pattern.permute.xlu0 55
  %555 = vperm.xlu0 %554, %v74
  %v556 = vpop.permute.xlu0 %555
  %v558 = vmul.f32 %v556, %v471
  %v559 = vadd.f32 %v553, %v558
  %v560 = vmul.f32 %v559, %v478
  %v561 = vadd.f32 %v560, %v485
  %v562 = vmax.f32 %v561, 0.0
  %563 = vset.pattern.permute.xlu0 56
  %564 = vperm.xlu0 %563, %v74
  %v565 = vpop.permute.xlu0 %564
  %v567 = vmul.f32 %v565, %v362
  %568 = vset.pattern.permute.xlu0 57
  %569 = vperm.xlu0 %568, %v74
  %v570 = vpop.permute.xlu0 %569
  %v572 = vmul.f32 %v570, %v371
  %v573 = vadd.f32 %v567, %v572
  %574 = vset.pattern.permute.xlu0 58
  %575 = vperm.xlu0 %574, %v74
  %v576 = vpop.permute.xlu0 %575
  %v578 = vmul.f32 %v576, %v381
  %v579 = vadd.f32 %v573, %v578
  %580 = vset.pattern.permute.xlu0 59
  %581 = vperm.xlu0 %580, %v74
  %v582 = vpop.permute.xlu0 %581
  %v584 = vmul.f32 %v582, %v391
  %v585 = vadd.f32 %v579, %v584
  %586 = vset.pattern.permute.xlu0 60
  %587 = vperm.xlu0 %586, %v74
  %v588 = vpop.permute.xlu0 %587
  %v590 = vmul.f32 %v588, %v401
  %v591 = vadd.f32 %v585, %v590
  %592 = vset.pattern.permute.xlu0 61
  %593 = vperm.xlu0 %592, %v74
  %v594 = vpop.permute.xlu0 %593
  %v596 = vmul.f32 %v594, %v411
  %v597 = vadd.f32 %v591, %v596
  %598 = vset.pattern.permute.xlu0 62
  %599 = vperm.xlu0 %598, %v74
  %v600 = vpop.permute.xlu0 %599
  %v602 = vmul.f32 %v600, %v421
  %v603 = vadd.f32 %v597, %v602
  %604 = vset.pattern.permute.xlu0 63
  %605 = vperm.xlu0 %604, %v74
  %v606 = vpop.permute.xlu0 %605
  %v608 = vmul.f32 %v606, %v431
  %v609 = vadd.f32 %v603, %v608
  %610 = vset.pattern.permute.xlu0 64
  %611 = vperm.xlu0 %610, %v74
  %v612 = vpop.permute.xlu0 %611
  %v614 = vmul.f32 %v612, %v441
  %v615 = vadd.f32 %v609, %v614
  %616 = vset.pattern.permute.xlu0 65
  %617 = vperm.xlu0 %616, %v74
  %v618 = vpop.permute.xlu0 %617
  %v620 = vmul.f32 %v618, %v451
  %v621 = vadd.f32 %v615, %v620
  %622 = vset.pattern.permute.xlu0 66
  %623 = vperm.xlu0 %622, %v74
  %v624 = vpop.permute.xlu0 %623
  %v626 = vmul.f32 %v624, %v461
  %v627 = vadd.f32 %v621, %v626
  %628 = vset.pattern.permute.xlu0 67
  %629 = vperm.xlu0 %628, %v74
  %v630 = vpop.permute.xlu0 %629
  %v632 = vmul.f32 %v630, %v471
  %v633 = vadd.f32 %v627, %v632
  %v634 = vmul.f32 %v633, %v478
  %v635 = vadd.f32 %v634, %v485
  %v636 = vmax.f32 %v635, 0.0
  %637 = vset.pattern.permute.xlu0 68
  %638 = vperm.xlu0 %637, %v74
  %v639 = vpop.permute.xlu0 %638
  %v641 = vmul.f32 %v639, %v362
  %642 = vset.pattern.permute.xlu0 69
  %643 = vperm.xlu0 %642, %v74
  %v644 = vpop.permute.xlu0 %643
  %v646 = vmul.f32 %v644, %v371
  %v647 = vadd.f32 %v641, %v646
  %648 = vset.pattern.permute.xlu0 70
  %649 = vperm.xlu0 %648, %v74
  %v650 = vpop.permute.xlu0 %649
  %v652 = vmul.f32 %v650, %v381
  %v653 = vadd.f32 %v647, %v652
  %654 = vset.pattern.permute.xlu0 71
  %655 = vperm.xlu0 %654, %v74
  %v656 = vpop.permute.xlu0 %655
  %v658 = vmul.f32 %v656, %v391
  %v659 = vadd.f32 %v653, %v658
  %660 = vset.pattern.permute.xlu0 72
  %661 = vperm.xlu0 %660, %v74
  %v662 = vpop.permute.xlu0 %661
  %v664 = vmul.f32 %v662, %v401
  %v665 = vadd.f32 %v659, %v664
  %666 = vset.pattern.permute.xlu0 73
  %667 = vperm.xlu0 %666, %v74
  %v668 = vpop.permute.xlu0 %667
  %v670 = vmul.f32 %v668, %v411
  %v671 = vadd.f32 %v665, %v670
  %672 = vset.pattern.permute.xlu0 74
  %673 = vperm.xlu0 %672, %v74
  %v674 = vpop.permute.xlu0 %673
  %v676 = vmul.f32 %v674, %v421
  %v677 = vadd.f32 %v671, %v676
  %678 = vset.pattern.permute.xlu0 75
  %679 = vperm.xlu0 %678, %v74
  %v680 = vpop.permute.xlu0 %679
  %v682 = vmul.f32 %v680, %v431
  %v683 = vadd.f32 %v677, %v682
  %684 = vset.pattern.permute.xlu0 76
  %685 = vperm.xlu0 %684, %v74
  %v686 = vpop.permute.xlu0 %685
  %v688 = vmul.f32 %v686, %v441
  %v689 = vadd.f32 %v683, %v688
  %690 = vset.pattern.permute.xlu0 77
  %691 = vperm.xlu0 %690, %v74
  %v692 = vpop.permute.xlu0 %691
  %v694 = vmul.f32 %v692, %v451
  %v695 = vadd.f32 %v689, %v694
  %696 = vset.pattern.permute.xlu0 78
  %697 = vperm.xlu0 %696, %v74
  %v698 = vpop.permute.xlu0 %697
  %v700 = vmul.f32 %v698, %v461
  %v701 = vadd.f32 %v695, %v700
  %702 = vset.pattern.permute.xlu0 79
  %703 = vperm.xlu0 %702, %v74
  %v704 = vpop.permute.xlu0 %703
  %v706 = vmul.f32 %v704, %v471
  %v707 = vadd.f32 %v701, %v706
  %v708 = vmul.f32 %v707, %v478
  %v709 = vadd.f32 %v708, %v485
  %v710 = vmax.f32 %v709, 0.0
  %711 = vset.pattern.permute.xlu0 80
  %712 = vperm.xlu0 %711, %v74
  %v713 = vpop.permute.xlu0 %712
  %v715 = vmul.f32 %v713, %v362
  %716 = vset.pattern.permute.xlu0 81
  %717 = vperm.xlu0 %716, %v74
  %v718 = vpop.permute.xlu0 %717
  %v720 = vmul.f32 %v718, %v371
  %v721 = vadd.f32 %v715, %v720
  %722 = vset.pattern.permute.xlu0 82
  %723 = vperm.xlu0 %722, %v74
  %v724 = vpop.permute.xlu0 %723
  %v726 = vmul.f32 %v724, %v381
  %v727 = vadd.f32 %v721, %v726
  %728 = vset.pattern.permute.xlu0 83
  %729 = vperm.xlu0 %728, %v74
  %v730 = vpop.permute.xlu0 %729
  %v732 = vmul.f32 %v730, %v391
  %v733 = vadd.f32 %v727, %v732
  %734 = vset.pattern.permute.xlu0 84
  %735 = vperm.xlu0 %734, %v74
  %v736 = vpop.permute.xlu0 %735
  %v738 = vmul.f32 %v736, %v401
  %v739 = vadd.f32 %v733, %v738
  %740 = vset.pattern.permute.xlu0 85
  %741 = vperm.xlu0 %740, %v74
  %v742 = vpop.permute.xlu0 %741
  %v744 = vmul.f32 %v742, %v411
  %v745 = vadd.f32 %v739, %v744
  %746 = vset.pattern.permute.xlu0 86
  %747 = vperm.xlu0 %746, %v74
  %v748 = vpop.permute.xlu0 %747
  %v750 = vmul.f32 %v748, %v421
  %v751 = vadd.f32 %v745, %v750
  %752 = vset.pattern.permute.xlu0 87
  %753 = vperm.xlu0 %752, %v74
  %v754 = vpop.permute.xlu0 %753
  %v756 = vmul.f32 %v754, %v431
  %v757 = vadd.f32 %v751, %v756
  %758 = vset.pattern.permute.xlu0 88
  %759 = vperm.xlu0 %758, %v74
  %v760 = vpop.permute.xlu0 %759
  %v762 = vmul.f32 %v760, %v441
  %v763 = vadd.f32 %v757, %v762
  %764 = vset.pattern.permute.xlu0 89
  %765 = vperm.xlu0 %764, %v74
  %v766 = vpop.permute.xlu0 %765
  %v768 = vmul.f32 %v766, %v451
  %v769 = vadd.f32 %v763, %v768
  %770 = vset.pattern.permute.xlu0 90
  %771 = vperm.xlu0 %770, %v74
  %v772 = vpop.permute.xlu0 %771
  %v774 = vmul.f32 %v772, %v461
  %v775 = vadd.f32 %v769, %v774
  %776 = vset.pattern.permute.xlu0 91
  %777 = vperm.xlu0 %776, %v74
  %v778 = vpop.permute.xlu0 %777
  %v780 = vmul.f32 %v778, %v471
  %v781 = vadd.f32 %v775, %v780
  %v782 = vmul.f32 %v781, %v478
  %v783 = vadd.f32 %v782, %v485
  %v784 = vmax.f32 %v783, 0.0
  %785 = vset.pattern.permute.xlu0 92
  %786 = vperm.xlu0 %785, %v74
  %v787 = vpop.permute.xlu0 %786
  %v789 = vmul.f32 %v787, %v362
  %790 = vset.pattern.permute.xlu0 93
  %791 = vperm.xlu0 %790, %v74
  %v792 = vpop.permute.xlu0 %791
  %v794 = vmul.f32 %v792, %v371
  %v795 = vadd.f32 %v789, %v794
  %796 = vset.pattern.permute.xlu0 94
  %797 = vperm.xlu0 %796, %v74
  %v798 = vpop.permute.xlu0 %797
  %v800 = vmul.f32 %v798, %v381
  %v801 = vadd.f32 %v795, %v800
  %802 = vset.pattern.permute.xlu0 95
  %803 = vperm.xlu0 %802, %v74
  %v804 = vpop.permute.xlu0 %803
  %v806 = vmul.f32 %v804, %v391
  %v807 = vadd.f32 %v801, %v806
  %808 = vset.pattern.permute.xlu0 96
  %809 = vperm.xlu0 %808, %v74
  %v810 = vpop.permute.xlu0 %809
  %v812 = vmul.f32 %v810, %v401
  %v813 = vadd.f32 %v807, %v812
  %814 = vset.pattern.permute.xlu0 97
  %815 = vperm.xlu0 %814, %v74
  %v816 = vpop.permute.xlu0 %815
  %v818 = vmul.f32 %v816, %v411
  %v819 = vadd.f32 %v813, %v818
  %820 = vset.pattern.permute.xlu0 98
  %821 = vperm.xlu0 %820, %v74
  %v822 = vpop.permute.xlu0 %821
  %v824 = vmul.f32 %v822, %v421
  %v825 = vadd.f32 %v819, %v824
  %826 = vset.pattern.permute.xlu0 99
  %827 = vperm.xlu0 %826, %v74
  %v828 = vpop.permute.xlu0 %827
  %v830 = vmul.f32 %v828, %v431
  %v831 = vadd.f32 %v825, %v830
  %832 = vset.pattern.permute.xlu0 100
  %833 = vperm.xlu0 %832, %v74
  %v834 = vpop.permute.xlu0 %833
  %v836 = vmul.f32 %v834, %v441
  %v837 = vadd.f32 %v831, %v836
  %838 = vset.pattern.permute.xlu0 101
  %839 = vperm.xlu0 %838, %v74
  %v840 = vpop.permute.xlu0 %839
  %v842 = vmul.f32 %v840, %v451
  %v843 = vadd.f32 %v837, %v842
  %844 = vset.pattern.permute.xlu0 102
  %845 = vperm.xlu0 %844, %v74
  %v846 = vpop.permute.xlu0 %845
  %v848 = vmul.f32 %v846, %v461
  %v849 = vadd.f32 %v843, %v848
  %850 = vset.pattern.permute.xlu0 103
  %851 = vperm.xlu0 %850, %v74
  %v852 = vpop.permute.xlu0 %851
  %v854 = vmul.f32 %v852, %v471
  %v855 = vadd.f32 %v849, %v854
  %v856 = vmul.f32 %v855, %v478
  %v857 = vadd.f32 %v856, %v485
  %v858 = vmax.f32 %v857, 0.0
  %859 = vset.pattern.permute.xlu0 104
  %860 = vperm.xlu0 %859, %v74
  %v861 = vpop.permute.xlu0 %860
  %v863 = vmul.f32 %v861, %v362
  %864 = vset.pattern.permute.xlu0 105
  %865 = vperm.xlu0 %864, %v74
  %v866 = vpop.permute.xlu0 %865
  %v868 = vmul.f32 %v866, %v371
  %v869 = vadd.f32 %v863, %v868
  %870 = vset.pattern.permute.xlu0 106
  %871 = vperm.xlu0 %870, %v74
  %v872 = vpop.permute.xlu0 %871
  %v874 = vmul.f32 %v872, %v381
  %v875 = vadd.f32 %v869, %v874
  %876 = vset.pattern.permute.xlu0 107
  %877 = vperm.xlu0 %876, %v74
  %v878 = vpop.permute.xlu0 %877
  %v880 = vmul.f32 %v878, %v391
  %v881 = vadd.f32 %v875, %v880
  %882 = vset.pattern.permute.xlu0 108
  %883 = vperm.xlu0 %882, %v74
  %v884 = vpop.permute.xlu0 %883
  %v886 = vmul.f32 %v884, %v401
  %v887 = vadd.f32 %v881, %v886
  %888 = vset.pattern.permute.xlu0 109
  %889 = vperm.xlu0 %888, %v74
  %v890 = vpop.permute.xlu0 %889
  %v892 = vmul.f32 %v890, %v411
  %v893 = vadd.f32 %v887, %v892
  %894 = vset.pattern.permute.xlu0 110
  %895 = vperm.xlu0 %894, %v74
  %v896 = vpop.permute.xlu0 %895
  %v898 = vmul.f32 %v896, %v421
  %v899 = vadd.f32 %v893, %v898
  %900 = vset.pattern.permute.xlu0 111
  %901 = vperm.xlu0 %900, %v74
  %v902 = vpop.permute.xlu0 %901
  %v904 = vmul.f32 %v902, %v431
  %v905 = vadd.f32 %v899, %v904
  %906 = vset.pattern.permute.xlu0 112
  %907 = vperm.xlu0 %906, %v74
  %v908 = vpop.permute.xlu0 %907
  %v910 = vmul.f32 %v908, %v441
  %v911 = vadd.f32 %v905, %v910
  %912 = vset.pattern.permute.xlu0 113
  %913 = vperm.xlu0 %912, %v74
  %v914 = vpop.permute.xlu0 %913
  %v916 = vmul.f32 %v914, %v451
  %v917 = vadd.f32 %v911, %v916
  %918 = vset.pattern.permute.xlu0 114
  %919 = vperm.xlu0 %918, %v74
  %v920 = vpop.permute.xlu0 %919
  %v922 = vmul.f32 %v920, %v461
  %v923 = vadd.f32 %v917, %v922
  %924 = vset.pattern.permute.xlu0 115
  %925 = vperm.xlu0 %924, %v74
  %v926 = vpop.permute.xlu0 %925
  %v928 = vmul.f32 %v926, %v471
  %v929 = vadd.f32 %v923, %v928
  %v930 = vmul.f32 %v929, %v478
  %v931 = vadd.f32 %v930, %v485
  %v932 = vmax.f32 %v931, 0.0
  %933 = vset.pattern.permute.xlu0 116
  %934 = vperm.xlu0 %933, %v74
  %v935 = vpop.permute.xlu0 %934
  %v937 = vmul.f32 %v935, %v362
  %938 = vset.pattern.permute.xlu0 117
  %939 = vperm.xlu0 %938, %v74
  %v940 = vpop.permute.xlu0 %939
  %v942 = vmul.f32 %v940, %v371
  %v943 = vadd.f32 %v937, %v942
  %944 = vset.pattern.permute.xlu0 118
  %945 = vperm.xlu0 %944, %v74
  %v946 = vpop.permute.xlu0 %945
  %v948 = vmul.f32 %v946, %v381
  %v949 = vadd.f32 %v943, %v948
  %950 = vset.pattern.permute.xlu0 119
  %951 = vperm.xlu0 %950, %v74
  %v952 = vpop.permute.xlu0 %951
  %v954 = vmul.f32 %v952, %v391
  %v955 = vadd.f32 %v949, %v954
  %956 = vset.pattern.permute.xlu0 120
  %957 = vperm.xlu0 %956, %v74
  %v958 = vpop.permute.xlu0 %957
  %v960 = vmul.f32 %v958, %v401
  %v961 = vadd.f32 %v955, %v960
  %962 = vset.pattern.permute.xlu0 121
  %963 = vperm.xlu0 %962, %v74
  %v964 = vpop.permute.xlu0 %963
  %v966 = vmul.f32 %v964, %v411
  %v967 = vadd.f32 %v961, %v966
  %968 = vset.pattern.permute.xlu0 122
  %969 = vperm.xlu0 %968, %v74
  %v970 = vpop.permute.xlu0 %969
  %v972 = vmul.f32 %v970, %v421
  %v973 = vadd.f32 %v967, %v972
  %974 = vset.pattern.permute.xlu0 123
  %975 = vperm.xlu0 %974, %v74
  %v976 = vpop.permute.xlu0 %975
  %v978 = vmul.f32 %v976, %v431
  %v979 = vadd.f32 %v973, %v978
  %980 = vset.pattern.permute.xlu0 124
  %981 = vperm.xlu0 %980, %v74
  %v982 = vpop.permute.xlu0 %981
  %v984 = vmul.f32 %v982, %v441
  %v985 = vadd.f32 %v979, %v984
  %986 = vset.pattern.permute.xlu0 125
  %987 = vperm.xlu0 %986, %v74
  %v988 = vpop.permute.xlu0 %987
  %v990 = vmul.f32 %v988, %v451
  %v991 = vadd.f32 %v985, %v990
  %992 = vset.pattern.permute.xlu0 126
  %993 = vperm.xlu0 %992, %v74
  %v994 = vpop.permute.xlu0 %993
  %v996 = vmul.f32 %v994, %v461
  %v997 = vadd.f32 %v991, %v996
  %998 = vset.pattern.permute.xlu0 127
  %999 = vperm.xlu0 %998, %v74
  %v1000 = vpop.permute.xlu0 %999
  %v1002 = vmul.f32 %v1000, %v471
  %v1003 = vadd.f32 %v997, %v1002
  %v1004 = vmul.f32 %v1003, %v478
  %v1005 = vadd.f32 %v1004, %v485
  %v1006 = vmax.f32 %v1005, 0.0
  %v1007 = vmax.f32 %v488, %v562
  %v1008 = vmax.f32 %v636, %v710
  %v1009 = vmax.f32 %v784, %v858
  %v1010 = vmax.f32 %v932, %v1006
  %v1011 = vld [vmem:[%s11] sm:$0xff]
  %v1012 = vld [vmem:[%s11 + $0x8] sm:$0xff]
  %v1013 = vld [vmem:[%s11 + $0x10] sm:$0xff]
  %v1014 = vld [vmem:[%s11 + $0x18] sm:$0xff]
  %v1015 = vld [vmem:[%s11 + $0x20] sm:$0xff]
  %v1016 = vld [vmem:[%s11 + $0x28] sm:$0xff]
  %v1017 = vld [vmem:[%s11 + $0x30] sm:$0xff]
  %v1018 = vld [vmem:[%s11 + $0x38] sm:$0xff]
  %v1019 = vld [vmem:[%s12] sm:$0x1]
  %v1020 = vld [vmem:[%s13] sm:$0x1]
  %vm1021 = vcmask 523264
  %v1023 = vsel %vm1021, %v1007, 0
  %1025 = vmatprep.subr.mxu0 0.0
  %1026 = vmatpush1.msra.mxu0 %v1011
  %1027 = vmatprep.subr.mxu0 0.0
  %1028 = vmatpush1.msra.mxu0 %v1012
  %1029 = vmatprep.subr.mxu0 0.0
  %1030 = vmatpush1.msra.mxu0 %v1013
  %1031 = vmatprep.subr.mxu0 0.0
  %1032 = vmatpush1.msra.mxu0 %v1014
  %1033 = vmatprep.subr.mxu0 0.0
  %1034 = vmatpush1.msra.mxu0 %v1015
  %1035 = vmatprep.subr.mxu0 0.0
  %1036 = vmatpush1.msra.mxu0 %v1016
  %1037 = vmatprep.subr.mxu0 0.0
  %1038 = vmatpush1.msra.mxu0 %v1017
  %1039 = vmatprep.subr.mxu0 0.0
  %1040 = vmatpush1.msra.mxu0 %v1018
  %1041 = vmatprep.subr.mxu0 0.0
  %1042 = vmatpush1.msra.mxu0 0.0
  %1043 = vmatprep.subr.mxu0 0.0
  %1044 = vmatpush1.msra.mxu0 0.0
  %1045 = vmatprep.subr.mxu0 0.0
  %1046 = vmatpush1.msra.mxu0 0.0
  %1047 = vmatprep.subr.mxu0 0.0
  %1048 = vmatpush1.msra.mxu0 0.0
  %1049 = vmatprep.subr.mxu0 0.0
  %1050 = vmatpush1.msra.mxu0 0.0
  %1051 = vmatprep.subr.mxu0 0.0
  %1052 = vmatpush1.msra.mxu0 0.0
  %1053 = vmatprep.subr.mxu0 0.0
  %1054 = vmatpush1.msra.mxu0 0.0
  %1055 = vmatprep.subr.mxu0 0.0
  %1056 = vmatpush1.msra.mxu0 0.0
  %1057 = vmatprep.subr.mxu0 0.0
  %1058 = vmatpush1.msra.mxu0 0.0
  %1059 = vmatprep.subr.mxu0 0.0
  %1060 = vmatpush1.msra.mxu0 0.0
  %1061 = vmatprep.subr.mxu0 0.0
  %1062 = vmatpush1.msra.mxu0 0.0
  %1063 = vmatprep.subr.mxu0 0.0
  %1064 = vmatpush1.msra.mxu0 0.0
  %1065 = vmatprep.subr.mxu0 0.0
  %1066 = vmatpush1.msra.mxu0 0.0
  %1067 = vmatprep.subr.mxu0 0.0
  %1068 = vmatpush1.msra.mxu0 0.0
  %1069 = vmatprep.subr.mxu0 0.0
  %1070 = vmatpush1.msra.mxu0 0.0
  %1071 = vmatprep.subr.mxu0 0.0
  %1072 = vmatpush1.msra.mxu0 0.0
  %1073 = vmatprep.subr.mxu0 0.0
  %1074 = vmatpush1.msra.mxu0 0.0
  %1075 = vmatprep.subr.mxu0 0.0
  %1076 = vmatpush1.msra.mxu0 0.0
  %1077 = vmatprep.subr.mxu0 0.0
  %1078 = vmatpush1.msra.mxu0 0.0
  %1079 = vmatprep.subr.mxu0 0.0
  %1080 = vmatpush1.msra.mxu0 0.0
  %1081 = vmatprep.subr.mxu0 0.0
  %1082 = vmatpush1.msra.mxu0 0.0
  %1083 = vmatprep.subr.mxu0 0.0
  %1084 = vmatpush1.msra.mxu0 0.0
  %1085 = vmatprep.subr.mxu0 0.0
  %1086 = vmatpush1.msra.mxu0 0.0
  %1087 = vmatprep.subr.mxu0 0.0
  %1088 = vmatpush1.msra.mxu0 0.0
  %1089 = vmatprep.mubr.f32.mxu0 0.0
  %1090 = vmatmul.mubr.f32.gmra.mrb[0].mxu0 %v1023
  %v1091 = vpop.f32.mrb[0].mxu0
  %v1092 = vadd.f32 0.0, %v1091
  %v1093 = vpop.f32.mrb[0].mxu0
  %1094 = vdwg.mxu0
  %v1096 = vlaneseq
  %v1097 = vshrl.u32 %v1096, 7
  %v1098 = vsub.s32 0, %v1097
  %v1099 = vrot.slane %v1019, %v1098
  %v1101 = vmul.f32 %v1092, %v1099
  %v1103 = vlaneseq
  %v1104 = vshrl.u32 %v1103, 7
  %v1105 = vsub.s32 0, %v1104
  %v1106 = vrot.slane %v1020, %v1105
  %v1108 = vadd.f32 %v1101, %v1106
  %v1109 = vmax.f32 %v1108, 0.0
  %v1111 = vsel %vm1021, %v1008, 0
  %1113 = vmatprep.subr.mxu0 0.0
  %1114 = vmatpush1.msra.mxu0 %v1011
  %1115 = vmatprep.subr.mxu0 0.0
  %1116 = vmatpush1.msra.mxu0 %v1012
  %1117 = vmatprep.subr.mxu0 0.0
  %1118 = vmatpush1.msra.mxu0 %v1013
  %1119 = vmatprep.subr.mxu0 0.0
  %1120 = vmatpush1.msra.mxu0 %v1014
  %1121 = vmatprep.subr.mxu0 0.0
  %1122 = vmatpush1.msra.mxu0 %v1015
  %1123 = vmatprep.subr.mxu0 0.0
  %1124 = vmatpush1.msra.mxu0 %v1016
  %1125 = vmatprep.subr.mxu0 0.0
  %1126 = vmatpush1.msra.mxu0 %v1017
  %1127 = vmatprep.subr.mxu0 0.0
  %1128 = vmatpush1.msra.mxu0 %v1018
  %1129 = vmatprep.subr.mxu0 0.0
  %1130 = vmatpush1.msra.mxu0 0.0
  %1131 = vmatprep.subr.mxu0 0.0
  %1132 = vmatpush1.msra.mxu0 0.0
  %1133 = vmatprep.subr.mxu0 0.0
  %1134 = vmatpush1.msra.mxu0 0.0
  %1135 = vmatprep.subr.mxu0 0.0
  %1136 = vmatpush1.msra.mxu0 0.0
  %1137 = vmatprep.subr.mxu0 0.0
  %1138 = vmatpush1.msra.mxu0 0.0
  %1139 = vmatprep.subr.mxu0 0.0
  %1140 = vmatpush1.msra.mxu0 0.0
  %1141 = vmatprep.subr.mxu0 0.0
  %1142 = vmatpush1.msra.mxu0 0.0
  %1143 = vmatprep.subr.mxu0 0.0
  %1144 = vmatpush1.msra.mxu0 0.0
  %1145 = vmatprep.subr.mxu0 0.0
  %1146 = vmatpush1.msra.mxu0 0.0
  %1147 = vmatprep.subr.mxu0 0.0
  %1148 = vmatpush1.msra.mxu0 0.0
  %1149 = vmatprep.subr.mxu0 0.0
  %1150 = vmatpush1.msra.mxu0 0.0
  %1151 = vmatprep.subr.mxu0 0.0
  %1152 = vmatpush1.msra.mxu0 0.0
  %1153 = vmatprep.subr.mxu0 0.0
  %1154 = vmatpush1.msra.mxu0 0.0
  %1155 = vmatprep.subr.mxu0 0.0
  %1156 = vmatpush1.msra.mxu0 0.0
  %1157 = vmatprep.subr.mxu0 0.0
  %1158 = vmatpush1.msra.mxu0 0.0
  %1159 = vmatprep.subr.mxu0 0.0
  %1160 = vmatpush1.msra.mxu0 0.0
  %1161 = vmatprep.subr.mxu0 0.0
  %1162 = vmatpush1.msra.mxu0 0.0
  %1163 = vmatprep.subr.mxu0 0.0
  %1164 = vmatpush1.msra.mxu0 0.0
  %1165 = vmatprep.subr.mxu0 0.0
  %1166 = vmatpush1.msra.mxu0 0.0
  %1167 = vmatprep.subr.mxu0 0.0
  %1168 = vmatpush1.msra.mxu0 0.0
  %1169 = vmatprep.subr.mxu0 0.0
  %1170 = vmatpush1.msra.mxu0 0.0
  %1171 = vmatprep.subr.mxu0 0.0
  %1172 = vmatpush1.msra.mxu0 0.0
  %1173 = vmatprep.subr.mxu0 0.0
  %1174 = vmatpush1.msra.mxu0 0.0
  %1175 = vmatprep.subr.mxu0 0.0
  %1176 = vmatpush1.msra.mxu0 0.0
  %1177 = vmatprep.mubr.f32.mxu0 0.0
  %1178 = vmatmul.mubr.f32.gmra.mrb[0].mxu0 %v1111
  %v1179 = vpop.f32.mrb[0].mxu0
  %v1180 = vadd.f32 0.0, %v1179
  %v1181 = vpop.f32.mrb[0].mxu0
  %1182 = vdwg.mxu0
  %v1183 = vmul.f32 %v1180, %v1099
  %v1184 = vadd.f32 %v1183, %v1106
  %v1185 = vmax.f32 %v1184, 0.0
  %v1187 = vsel %vm1021, %v1009, 0
  %1189 = vmatprep.subr.mxu0 0.0
  %1190 = vmatpush1.msra.mxu0 %v1011
  %1191 = vmatprep.subr.mxu0 0.0
  %1192 = vmatpush1.msra.mxu0 %v1012
  %1193 = vmatprep.subr.mxu0 0.0
  %1194 = vmatpush1.msra.mxu0 %v1013
  %1195 = vmatprep.subr.mxu0 0.0
  %1196 = vmatpush1.msra.mxu0 %v1014
  %1197 = vmatprep.subr.mxu0 0.0
  %1198 = vmatpush1.msra.mxu0 %v1015
  %1199 = vmatprep.subr.mxu0 0.0
  %1200 = vmatpush1.msra.mxu0 %v1016
  %1201 = vmatprep.subr.mxu0 0.0
  %1202 = vmatpush1.msra.mxu0 %v1017
  %1203 = vmatprep.subr.mxu0 0.0
  %1204 = vmatpush1.msra.mxu0 %v1018
  %1205 = vmatprep.subr.mxu0 0.0
  %1206 = vmatpush1.msra.mxu0 0.0
  %1207 = vmatprep.subr.mxu0 0.0
  %1208 = vmatpush1.msra.mxu0 0.0
  %1209 = vmatprep.subr.mxu0 0.0
  %1210 = vmatpush1.msra.mxu0 0.0
  %1211 = vmatprep.subr.mxu0 0.0
  %1212 = vmatpush1.msra.mxu0 0.0
  %1213 = vmatprep.subr.mxu0 0.0
  %1214 = vmatpush1.msra.mxu0 0.0
  %1215 = vmatprep.subr.mxu0 0.0
  %1216 = vmatpush1.msra.mxu0 0.0
  %1217 = vmatprep.subr.mxu0 0.0
  %1218 = vmatpush1.msra.mxu0 0.0
  %1219 = vmatprep.subr.mxu0 0.0
  %1220 = vmatpush1.msra.mxu0 0.0
  %1221 = vmatprep.subr.mxu0 0.0
  %1222 = vmatpush1.msra.mxu0 0.0
  %1223 = vmatprep.subr.mxu0 0.0
  %1224 = vmatpush1.msra.mxu0 0.0
  %1225 = vmatprep.subr.mxu0 0.0
  %1226 = vmatpush1.msra.mxu0 0.0
  %1227 = vmatprep.subr.mxu0 0.0
  %1228 = vmatpush1.msra.mxu0 0.0
  %1229 = vmatprep.subr.mxu0 0.0
  %1230 = vmatpush1.msra.mxu0 0.0
  %1231 = vmatprep.subr.mxu0 0.0
  %1232 = vmatpush1.msra.mxu0 0.0
  %1233 = vmatprep.subr.mxu0 0.0
  %1234 = vmatpush1.msra.mxu0 0.0
  %1235 = vmatprep.subr.mxu0 0.0
  %1236 = vmatpush1.msra.mxu0 0.0
  %1237 = vmatprep.subr.mxu0 0.0
  %1238 = vmatpush1.msra.mxu0 0.0
  %1239 = vmatprep.subr.mxu0 0.0
  %1240 = vmatpush1.msra.mxu0 0.0
  %1241 = vmatprep.subr.mxu0 0.0
  %1242 = vmatpush1.msra.mxu0 0.0
  %1243 = vmatprep.subr.mxu0 0.0
  %1244 = vmatpush1.msra.mxu0 0.0
  %1245 = vmatprep.subr.mxu0 0.0
  %1246 = vmatpush1.msra.mxu0 0.0
  %1247 = vmatprep.subr.mxu0 0.0
  %1248 = vmatpush1.msra.mxu0 0.0
  %1249 = vmatprep.subr.mxu0 0.0
  %1250 = vmatpush1.msra.mxu0 0.0
  %1251 = vmatprep.subr.mxu0 0.0
  %1252 = vmatpush1.msra.mxu0 0.0
  %1253 = vmatprep.mubr.f32.mxu0 0.0
  %1254 = vmatmul.mubr.f32.gmra.mrb[0].mxu0 %v1187
  %v1255 = vpop.f32.mrb[0].mxu0
  %v1256 = vadd.f32 0.0, %v1255
  %v1257 = vpop.f32.mrb[0].mxu0
  %1258 = vdwg.mxu0
  %v1259 = vmul.f32 %v1256, %v1099
  %v1260 = vadd.f32 %v1259, %v1106
  %v1261 = vmax.f32 %v1260, 0.0
  %v1263 = vsel %vm1021, %v1010, 0
  %1265 = vmatprep.subr.mxu0 0.0
  %1266 = vmatpush1.msra.mxu0 %v1011
  %1267 = vmatprep.subr.mxu0 0.0
  %1268 = vmatpush1.msra.mxu0 %v1012
  %1269 = vmatprep.subr.mxu0 0.0
  %1270 = vmatpush1.msra.mxu0 %v1013
  %1271 = vmatprep.subr.mxu0 0.0
  %1272 = vmatpush1.msra.mxu0 %v1014
  %1273 = vmatprep.subr.mxu0 0.0
  %1274 = vmatpush1.msra.mxu0 %v1015
  %1275 = vmatprep.subr.mxu0 0.0
  %1276 = vmatpush1.msra.mxu0 %v1016
  %1277 = vmatprep.subr.mxu0 0.0
  %1278 = vmatpush1.msra.mxu0 %v1017
  %1279 = vmatprep.subr.mxu0 0.0
  %1280 = vmatpush1.msra.mxu0 %v1018
  %1281 = vmatprep.subr.mxu0 0.0
  %1282 = vmatpush1.msra.mxu0 0.0
  %1283 = vmatprep.subr.mxu0 0.0
  %1284 = vmatpush1.msra.mxu0 0.0
  %1285 = vmatprep.subr.mxu0 0.0
  %1286 = vmatpush1.msra.mxu0 0.0
  %1287 = vmatprep.subr.mxu0 0.0
  %1288 = vmatpush1.msra.mxu0 0.0
  %1289 = vmatprep.subr.mxu0 0.0
  %1290 = vmatpush1.msra.mxu0 0.0
  %1291 = vmatprep.subr.mxu0 0.0
  %1292 = vmatpush1.msra.mxu0 0.0
  %1293 = vmatprep.subr.mxu0 0.0
  %1294 = vmatpush1.msra.mxu0 0.0
  %1295 = vmatprep.subr.mxu0 0.0
  %1296 = vmatpush1.msra.mxu0 0.0
  %1297 = vmatprep.subr.mxu0 0.0
  %1298 = vmatpush1.msra.mxu0 0.0
  %1299 = vmatprep.subr.mxu0 0.0
  %1300 = vmatpush1.msra.mxu0 0.0
  %1301 = vmatprep.subr.mxu0 0.0
  %1302 = vmatpush1.msra.mxu0 0.0
  %1303 = vmatprep.subr.mxu0 0.0
  %1304 = vmatpush1.msra.mxu0 0.0
  %1305 = vmatprep.subr.mxu0 0.0
  %1306 = vmatpush1.msra.mxu0 0.0
  %1307 = vmatprep.subr.mxu0 0.0
  %1308 = vmatpush1.msra.mxu0 0.0
  %1309 = vmatprep.subr.mxu0 0.0
  %1310 = vmatpush1.msra.mxu0 0.0
  %1311 = vmatprep.subr.mxu0 0.0
  %1312 = vmatpush1.msra.mxu0 0.0
  %1313 = vmatprep.subr.mxu0 0.0
  %1314 = vmatpush1.msra.mxu0 0.0
  %1315 = vmatprep.subr.mxu0 0.0
  %1316 = vmatpush1.msra.mxu0 0.0
  %1317 = vmatprep.subr.mxu0 0.0
  %1318 = vmatpush1.msra.mxu0 0.0
  %1319 = vmatprep.subr.mxu0 0.0
  %1320 = vmatpush1.msra.mxu0 0.0
  %1321 = vmatprep.subr.mxu0 0.0
  %1322 = vmatpush1.msra.mxu0 0.0
  %1323 = vmatprep.subr.mxu0 0.0
  %1324 = vmatpush1.msra.mxu0 0.0
  %1325 = vmatprep.subr.mxu0 0.0
  %1326 = vmatpush1.msra.mxu0 0.0
  %1327 = vmatprep.subr.mxu0 0.0
  %1328 = vmatpush1.msra.mxu0 0.0
  %1329 = vmatprep.mubr.f32.mxu0 0.0
  %1330 = vmatmul.mubr.f32.gmra.mrb[0].mxu0 %v1263
  %v1331 = vpop.f32.mrb[0].mxu0
  %v1332 = vadd.f32 0.0, %v1331
  %v1333 = vpop.f32.mrb[0].mxu0
  %1334 = vdwg.mxu0
  %v1335 = vmul.f32 %v1332, %v1099
  %v1336 = vadd.f32 %v1335, %v1106
  %v1337 = vmax.f32 %v1336, 0.0
  %v1338 = vmax.f32 %v1109, %v1185
  %v1339 = vmax.f32 %v1261, %v1337
  %v1340 = vld [vmem:[%s15] sm:$0x1]
  %v1341 = vld [vmem:[%s16] sm:$0x1]
  %v1342 = vld [vmem:[%s14] sm:$0x1]
  %v1343 = vld [vmem:[%s1] sm:$0xff]
  %s1345 = vtos %v1342
  %v1346 = vstv %s1345
  %v1348 = vmul.f32 %v1346, %v1343
  %v1349 = vld [vmem:[%s1 + $0x4] sm:$0xff]
  %1350 = vrot.lane.b32.xlu0 %v1342, 127
  %v1351 = vpop.permute.xlu0 %1350
  %s1352 = vtos %v1351
  %v1353 = vstv %s1352
  %v1355 = vmul.f32 %v1353, %v1349
  %1357 = vrot.lane.b32.xlu0 %v1355, 112
  %v1358 = vpop.permute.xlu0 %1357
  %v1359 = vrot.slane %v1358, 4
  %vm1360 = vcmask 916480
  %v1361 = vsel %vm1360, %v1358, %v1359
  %v1363 = vadd.f32 %v1348, %v1361
  %v1365 = vlaneseq
  %v1366 = vshrl.u32 %v1365, 7
  %v1367 = vsub.s32 0, %v1366
  %v1368 = vrot.slane %v1340, %v1367
  %1369 = vset.pattern.permute.xlu0 0
  %1370 = vperm.xlu0 %1369, %v1368
  %v1371 = vpop.permute.xlu0 %1370
  %v1373 = vmul.f32 %v1363, %v1371
  %v1375 = vlaneseq
  %v1376 = vshrl.u32 %v1375, 7
  %v1377 = vsub.s32 0, %v1376
  %v1378 = vrot.slane %v1341, %v1377
  %1379 = vset.pattern.permute.xlu0 0
  %1380 = vperm.xlu0 %1379, %v1378
  %v1381 = vpop.permute.xlu0 %1380
  %v1383 = vadd.f32 %v1373, %v1381
  %v1384 = vmax.f32 %v1383, 0.0
  %v1385 = vld [vmem:[%s1 + $0x8] sm:$0xff]
  %v1386 = vmul.f32 %v1346, %v1385
  %v1387 = vld [vmem:[%s1 + $0xc] sm:$0xff]
  %v1388 = vmul.f32 %v1353, %v1387
  %1390 = vrot.lane.b32.xlu0 %v1388, 112
  %v1391 = vpop.permute.xlu0 %1390
  %v1392 = vrot.slane %v1391, 4
  %v1393 = vsel %vm1360, %v1391, %v1392
  %v1395 = vadd.f32 %v1386, %v1393
  %v1396 = vmul.f32 %v1395, %v1371
  %v1397 = vadd.f32 %v1396, %v1381
  %v1398 = vmax.f32 %v1397, 0.0
  %1400 = vrot.lane.b32.xlu0 %v1398, 96
  %v1401 = vpop.permute.xlu0 %1400
  %v1402 = vrot.slane %v1401, 4
  %vm1403 = vcmask 785408
  %v1404 = vsel %vm1403, %v1401, %v1402
  %v1406 = vmax.f32 %v1384, %v1404
  %v1407 = vld [vmem:[%s1 + $0x10] sm:$0xff]
  %v1408 = vmul.f32 %v1346, %v1407
  %v1409 = vld [vmem:[%s1 + $0x14] sm:$0xff]
  %v1410 = vmul.f32 %v1353, %v1409
  %1412 = vrot.lane.b32.xlu0 %v1410, 112
  %v1413 = vpop.permute.xlu0 %1412
  %v1414 = vrot.slane %v1413, 4
  %v1415 = vsel %vm1360, %v1413, %v1414
  %v1417 = vadd.f32 %v1408, %v1415
  %v1418 = vmul.f32 %v1417, %v1371
  %v1419 = vadd.f32 %v1418, %v1381
  %v1420 = vmax.f32 %v1419, 0.0
  %1422 = vrot.lane.b32.xlu0 %v1420, 64
  %v1423 = vpop.permute.xlu0 %1422
  %v1424 = vrot.slane %v1423, 4
  %v1425 = vsel %vm1021, %v1423, %v1424
  %v1427 = vmax.f32 %v1406, %v1425
  %v1428 = vld [vmem:[%s1 + $0x18] sm:$0xff]
  %v1429 = vmul.f32 %v1346, %v1428
  %v1430 = vld [vmem:[%s1 + $0x1c] sm:$0xff]
  %v1431 = vmul.f32 %v1353, %v1430
  %1433 = vrot.lane.b32.xlu0 %v1431, 112
  %v1434 = vpop.permute.xlu0 %1433
  %v1435 = vrot.slane %v1434, 4
  %v1436 = vsel %vm1360, %v1434, %v1435
  %v1438 = vadd.f32 %v1429, %v1436
  %v1439 = vmul.f32 %v1438, %v1371
  %v1440 = vadd.f32 %v1439, %v1381
  %v1441 = vmax.f32 %v1440, 0.0
  %1443 = vrot.lane.b32.xlu0 %v1441, 32
  %v1444 = vpop.permute.xlu0 %1443
  %v1445 = vrot.slane %v1444, 4
  %vm1446 = vcmask 261120
  %v1447 = vsel %vm1446, %v1444, %v1445
  %v1449 = vmax.f32 %v1427, %v1447
  %v1450 = vld [vmem:[%s14 + $0x1] sm:$0x1]
  %s1452 = vtos %v1450
  %v1453 = vstv %s1452
  %v1455 = vmul.f32 %v1453, %v1343
  %1456 = vrot.lane.b32.xlu0 %v1450, 127
  %v1457 = vpop.permute.xlu0 %1456
  %s1458 = vtos %v1457
  %v1459 = vstv %s1458
  %v1461 = vmul.f32 %v1459, %v1349
  %1463 = vrot.lane.b32.xlu0 %v1461, 112
  %v1464 = vpop.permute.xlu0 %1463
  %v1465 = vrot.slane %v1464, 4
  %v1466 = vsel %vm1360, %v1464, %v1465
  %v1468 = vadd.f32 %v1455, %v1466
  %1469 = vset.pattern.permute.xlu0 1
  %1470 = vperm.xlu0 %1469, %v1368
  %v1471 = vpop.permute.xlu0 %1470
  %v1473 = vmul.f32 %v1468, %v1471
  %1474 = vset.pattern.permute.xlu0 1
  %1475 = vperm.xlu0 %1474, %v1378
  %v1476 = vpop.permute.xlu0 %1475
  %v1478 = vadd.f32 %v1473, %v1476
  %v1479 = vmax.f32 %v1478, 0.0
  %v1480 = vmul.f32 %v1453, %v1385
  %v1481 = vmul.f32 %v1459, %v1387
  %1483 = vrot.lane.b32.xlu0 %v1481, 112
  %v1484 = vpop.permute.xlu0 %1483
  %v1485 = vrot.slane %v1484, 4
  %v1486 = vsel %vm1360, %v1484, %v1485
  %v1488 = vadd.f32 %v1480, %v1486
  %v1489 = vmul.f32 %v1488, %v1471
  %v1490 = vadd.f32 %v1489, %v1476
  %v1491 = vmax.f32 %v1490, 0.0
  %1493 = vrot.lane.b32.xlu0 %v1491, 96
  %v1494 = vpop.permute.xlu0 %1493
  %v1495 = vrot.slane %v1494, 4
  %v1496 = vsel %vm1403, %v1494, %v1495
  %v1498 = vmax.f32 %v1479, %v1496
  %v1499 = vmul.f32 %v1453, %v1407
  %v1500 = vmul.f32 %v1459, %v1409
  %1502 = vrot.lane.b32.xlu0 %v1500, 112
  %v1503 = vpop.permute.xlu0 %1502
  %v1504 = vrot.slane %v1503, 4
  %v1505 = vsel %vm1360, %v1503, %v1504
  %v1507 = vadd.f32 %v1499, %v1505
  %v1508 = vmul.f32 %v1507, %v1471
  %v1509 = vadd.f32 %v1508, %v1476
  %v1510 = vmax.f32 %v1509, 0.0
  %1512 = vrot.lane.b32.xlu0 %v1510, 64
  %v1513 = vpop.permute.xlu0 %1512
  %v1514 = vrot.slane %v1513, 4
  %v1515 = vsel %vm1021, %v1513, %v1514
  %v1517 = vmax.f32 %v1498, %v1515
  %v1518 = vmul.f32 %v1453, %v1428
  %v1519 = vmul.f32 %v1459, %v1430
  %1521 = vrot.lane.b32.xlu0 %v1519, 112
  %v1522 = vpop.permute.xlu0 %1521
  %v1523 = vrot.slane %v1522, 4
  %v1524 = vsel %vm1360, %v1522, %v1523
  %v1526 = vadd.f32 %v1518, %v1524
  %v1527 = vmul.f32 %v1526, %v1471
  %v1528 = vadd.f32 %v1527, %v1476
  %v1529 = vmax.f32 %v1528, 0.0
  %1531 = vrot.lane.b32.xlu0 %v1529, 32
  %v1532 = vpop.permute.xlu0 %1531
  %v1533 = vrot.slane %v1532, 4
  %v1534 = vsel %vm1446, %v1532, %v1533
  %v1536 = vmax.f32 %v1517, %v1534
  %v1537 = vld [vmem:[%s14 + $0x2] sm:$0x1]
  %s1539 = vtos %v1537
  %v1540 = vstv %s1539
  %v1542 = vmul.f32 %v1540, %v1343
  %1543 = vrot.lane.b32.xlu0 %v1537, 127
  %v1544 = vpop.permute.xlu0 %1543
  %s1545 = vtos %v1544
  %v1546 = vstv %s1545
  %v1548 = vmul.f32 %v1546, %v1349
  %1550 = vrot.lane.b32.xlu0 %v1548, 112
  %v1551 = vpop.permute.xlu0 %1550
  %v1552 = vrot.slane %v1551, 4
  %v1553 = vsel %vm1360, %v1551, %v1552
  %v1555 = vadd.f32 %v1542, %v1553
  %1556 = vset.pattern.permute.xlu0 2
  %1557 = vperm.xlu0 %1556, %v1368
  %v1558 = vpop.permute.xlu0 %1557
  %v1560 = vmul.f32 %v1555, %v1558
  %1561 = vset.pattern.permute.xlu0 2
  %1562 = vperm.xlu0 %1561, %v1378
  %v1563 = vpop.permute.xlu0 %1562
  %v1565 = vadd.f32 %v1560, %v1563
  %v1566 = vmax.f32 %v1565, 0.0
  %v1567 = vmul.f32 %v1540, %v1385
  %v1568 = vmul.f32 %v1546, %v1387
  %1570 = vrot.lane.b32.xlu0 %v1568, 112
  %v1571 = vpop.permute.xlu0 %1570
  %v1572 = vrot.slane %v1571, 4
  %v1573 = vsel %vm1360, %v1571, %v1572
  %v1575 = vadd.f32 %v1567, %v1573
  %v1576 = vmul.f32 %v1575, %v1558
  %v1577 = vadd.f32 %v1576, %v1563
  %v1578 = vmax.f32 %v1577, 0.0
  %1580 = vrot.lane.b32.xlu0 %v1578, 96
  %v1581 = vpop.permute.xlu0 %1580
  %v1582 = vrot.slane %v1581, 4
  %v1583 = vsel %vm1403, %v1581, %v1582
  %v1585 = vmax.f32 %v1566, %v1583
  %v1586 = vmul.f32 %v1540, %v1407
  %v1587 = vmul.f32 %v1546, %v1409
  %1589 = vrot.lane.b32.xlu0 %v1587, 112
  %v1590 = vpop.permute.xlu0 %1589
  %v1591 = vrot.slane %v1590, 4
  %v1592 = vsel %vm1360, %v1590, %v1591
  %v1594 = vadd.f32 %v1586, %v1592
  %v1595 = vmul.f32 %v1594, %v1558
  %v1596 = vadd.f32 %v1595, %v1563
  %v1597 = vmax.f32 %v1596, 0.0
  %1599 = vrot.lane.b32.xlu0 %v1597, 64
  %v1600 = vpop.permute.xlu0 %1599
  %v1601 = vrot.slane %v1600, 4
  %v1602 = vsel %vm1021, %v1600, %v1601
  %v1604 = vmax.f32 %v1585, %v1602
  %v1605 = vmul.f32 %v1540, %v1428
  %v1606 = vmul.f32 %v1546, %v1430
  %1608 = vrot.lane.b32.xlu0 %v1606, 112
  %v1609 = vpop.permute.xlu0 %1608
  %v1610 = vrot.slane %v1609, 4
  %v1611 = vsel %vm1360, %v1609, %v1610
  %v1613 = vadd.f32 %v1605, %v1611
  %v1614 = vmul.f32 %v1613, %v1558
  %v1615 = vadd.f32 %v1614, %v1563
  %v1616 = vmax.f32 %v1615, 0.0
  %1618 = vrot.lane.b32.xlu0 %v1616, 32
  %v1619 = vpop.permute.xlu0 %1618
  %v1620 = vrot.slane %v1619, 4
  %v1621 = vsel %vm1446, %v1619, %v1620
  %v1623 = vmax.f32 %v1604, %v1621
  %v1624 = vld [vmem:[%s14 + $0x3] sm:$0x1]
  %s1626 = vtos %v1624
  %v1627 = vstv %s1626
  %v1629 = vmul.f32 %v1627, %v1343
  %1630 = vrot.lane.b32.xlu0 %v1624, 127
  %v1631 = vpop.permute.xlu0 %1630
  %s1632 = vtos %v1631
  %v1633 = vstv %s1632
  %v1635 = vmul.f32 %v1633, %v1349
  %1637 = vrot.lane.b32.xlu0 %v1635, 112
  %v1638 = vpop.permute.xlu0 %1637
  %v1639 = vrot.slane %v1638, 4
  %v1640 = vsel %vm1360, %v1638, %v1639
  %v1642 = vadd.f32 %v1629, %v1640
  %1643 = vset.pattern.permute.xlu0 3
  %1644 = vperm.xlu0 %1643, %v1368
  %v1645 = vpop.permute.xlu0 %1644
  %v1647 = vmul.f32 %v1642, %v1645
  %1648 = vset.pattern.permute.xlu0 3
  %1649 = vperm.xlu0 %1648, %v1378
  %v1650 = vpop.permute.xlu0 %1649
  %v1652 = vadd.f32 %v1647, %v1650
  %v1653 = vmax.f32 %v1652, 0.0
  %v1654 = vmul.f32 %v1627, %v1385
  %v1655 = vmul.f32 %v1633, %v1387
  %1657 = vrot.lane.b32.xlu0 %v1655, 112
  %v1658 = vpop.permute.xlu0 %1657
  %v1659 = vrot.slane %v1658, 4
  %v1660 = vsel %vm1360, %v1658, %v1659
  %v1662 = vadd.f32 %v1654, %v1660
  %v1663 = vmul.f32 %v1662, %v1645
  %v1664 = vadd.f32 %v1663, %v1650
  %v1665 = vmax.f32 %v1664, 0.0
  %1667 = vrot.lane.b32.xlu0 %v1665, 96
  %v1668 = vpop.permute.xlu0 %1667
  %v1669 = vrot.slane %v1668, 4
  %v1670 = vsel %vm1403, %v1668, %v1669
  %v1672 = vmax.f32 %v1653, %v1670
  %v1673 = vmul.f32 %v1627, %v1407
  %v1674 = vmul.f32 %v1633, %v1409
  %1676 = vrot.lane.b32.xlu0 %v1674, 112
  %v1677 = vpop.permute.xlu0 %1676
  %v1678 = vrot.slane %v1677, 4
  %v1679 = vsel %vm1360, %v1677, %v1678
  %v1681 = vadd.f32 %v1673, %v1679
  %v1682 = vmul.f32 %v1681, %v1645
  %v1683 = vadd.f32 %v1682, %v1650
  %v1684 = vmax.f32 %v1683, 0.0
  %1686 = vrot.lane.b32.xlu0 %v1684, 64
  %v1687 = vpop.permute.xlu0 %1686
  %v1688 = vrot.slane %v1687, 4
  %v1689 = vsel %vm1021, %v1687, %v1688
  %v1691 = vmax.f32 %v1672, %v1689
  %v1692 = vmul.f32 %v1627, %v1428
  %v1693 = vmul.f32 %v1633, %v1430
  %1695 = vrot.lane.b32.xlu0 %v1693, 112
  %v1696 = vpop.permute.xlu0 %1695
  %v1697 = vrot.slane %v1696, 4
  %v1698 = vsel %vm1360, %v1696, %v1697
  %v1700 = vadd.f32 %v1692, %v1698
  %v1701 = vmul.f32 %v1700, %v1645
  %v1702 = vadd.f32 %v1701, %v1650
  %v1703 = vmax.f32 %v1702, 0.0
  %1705 = vrot.lane.b32.xlu0 %v1703, 32
  %v1706 = vpop.permute.xlu0 %1705
  %v1707 = vrot.slane %v1706, 4
  %v1708 = vsel %vm1446, %v1706, %v1707
  %v1710 = vmax.f32 %v1691, %v1708
  %v1711 = vld [vmem:[%s14 + $0x4] sm:$0x1]
  %s1713 = vtos %v1711
  %v1714 = vstv %s1713
  %v1716 = vmul.f32 %v1714, %v1343
  %1717 = vrot.lane.b32.xlu0 %v1711, 127
  %v1718 = vpop.permute.xlu0 %1717
  %s1719 = vtos %v1718
  %v1720 = vstv %s1719
  %v1722 = vmul.f32 %v1720, %v1349
  %1724 = vrot.lane.b32.xlu0 %v1722, 112
  %v1725 = vpop.permute.xlu0 %1724
  %v1726 = vrot.slane %v1725, 4
  %v1727 = vsel %vm1360, %v1725, %v1726
  %v1729 = vadd.f32 %v1716, %v1727
  %1730 = vset.pattern.permute.xlu0 4
  %1731 = vperm.xlu0 %1730, %v1368
  %v1732 = vpop.permute.xlu0 %1731
  %v1734 = vmul.f32 %v1729, %v1732
  %1735 = vset.pattern.permute.xlu0 4
  %1736 = vperm.xlu0 %1735, %v1378
  %v1737 = vpop.permute.xlu0 %1736
  %v1739 = vadd.f32 %v1734, %v1737
  %v1740 = vmax.f32 %v1739, 0.0
  %v1741 = vmul.f32 %v1714, %v1385
  %v1742 = vmul.f32 %v1720, %v1387
  %1744 = vrot.lane.b32.xlu0 %v1742, 112
  %v1745 = vpop.permute.xlu0 %1744
  %v1746 = vrot.slane %v1745, 4
  %v1747 = vsel %vm1360, %v1745, %v1746
  %v1749 = vadd.f32 %v1741, %v1747
  %v1750 = vmul.f32 %v1749, %v1732
  %v1751 = vadd.f32 %v1750, %v1737
  %v1752 = vmax.f32 %v1751, 0.0
  %1754 = vrot.lane.b32.xlu0 %v1752, 96
  %v1755 = vpop.permute.xlu0 %1754
  %v1756 = vrot.slane %v1755, 4
  %v1757 = vsel %vm1403, %v1755, %v1756
  %v1759 = vmax.f32 %v1740, %v1757
  %v1760 = vmul.f32 %v1714, %v1407
  %v1761 = vmul.f32 %v1720, %v1409
  %1763 = vrot.lane.b32.xlu0 %v1761, 112
  %v1764 = vpop.permute.xlu0 %1763
  %v1765 = vrot.slane %v1764, 4
  %v1766 = vsel %vm1360, %v1764, %v1765
  %v1768 = vadd.f32 %v1760, %v1766
  %v1769 = vmul.f32 %v1768, %v1732
  %v1770 = vadd.f32 %v1769, %v1737
  %v1771 = vmax.f32 %v1770, 0.0
  %1773 = vrot.lane.b32.xlu0 %v1771, 64
  %v1774 = vpop.permute.xlu0 %1773
  %v1775 = vrot.slane %v1774, 4
  %v1776 = vsel %vm1021, %v1774, %v1775
  %v1778 = vmax.f32 %v1759, %v1776
  %v1779 = vmul.f32 %v1714, %v1428
  %v1780 = vmul.f32 %v1720, %v1430
  %1782 = vrot.lane.b32.xlu0 %v1780, 112
  %v1783 = vpop.permute.xlu0 %1782
  %v1784 = vrot.slane %v1783, 4
  %v1785 = vsel %vm1360, %v1783, %v1784
  %v1787 = vadd.f32 %v1779, %v1785
  %v1788 = vmul.f32 %v1787, %v1732
  %v1789 = vadd.f32 %v1788, %v1737
  %v1790 = vmax.f32 %v1789, 0.0
  %1792 = vrot.lane.b32.xlu0 %v1790, 32
  %v1793 = vpop.permute.xlu0 %1792
  %v1794 = vrot.slane %v1793, 4
  %v1795 = vsel %vm1446, %v1793, %v1794
  %v1797 = vmax.f32 %v1778, %v1795
  %v1798 = vld [vmem:[%s14 + $0x5] sm:$0x1]
  %s1800 = vtos %v1798
  %v1801 = vstv %s1800
  %v1803 = vmul.f32 %v1801, %v1343
  %1804 = vrot.lane.b32.xlu0 %v1798, 127
  %v1805 = vpop.permute.xlu0 %1804
  %s1806 = vtos %v1805
  %v1807 = vstv %s1806
  %v1809 = vmul.f32 %v1807, %v1349
  %1811 = vrot.lane.b32.xlu0 %v1809, 112
  %v1812 = vpop.permute.xlu0 %1811
  %v1813 = vrot.slane %v1812, 4
  %v1814 = vsel %vm1360, %v1812, %v1813
  %v1816 = vadd.f32 %v1803, %v1814
  %1817 = vset.pattern.permute.xlu0 5
  %1818 = vperm.xlu0 %1817, %v1368
  %v1819 = vpop.permute.xlu0 %1818
  %v1821 = vmul.f32 %v1816, %v1819
  %1822 = vset.pattern.permute.xlu0 5
  %1823 = vperm.xlu0 %1822, %v1378
  %v1824 = vpop.permute.xlu0 %1823
  %v1826 = vadd.f32 %v1821, %v1824
  %v1827 = vmax.f32 %v1826, 0.0
  %v1828 = vmul.f32 %v1801, %v1385
  %v1829 = vmul.f32 %v1807, %v1387
  %1831 = vrot.lane.b32.xlu0 %v1829, 112
  %v1832 = vpop.permute.xlu0 %1831
  %v1833 = vrot.slane %v1832, 4
  %v1834 = vsel %vm1360, %v1832, %v1833
  %v1836 = vadd.f32 %v1828, %v1834
  %v1837 = vmul.f32 %v1836, %v1819
  %v1838 = vadd.f32 %v1837, %v1824
  %v1839 = vmax.f32 %v1838, 0.0
  %1841 = vrot.lane.b32.xlu0 %v1839, 96
  %v1842 = vpop.permute.xlu0 %1841
  %v1843 = vrot.slane %v1842, 4
  %v1844 = vsel %vm1403, %v1842, %v1843
  %v1846 = vmax.f32 %v1827, %v1844
  %v1847 = vmul.f32 %v1801, %v1407
  %v1848 = vmul.f32 %v1807, %v1409
  %1850 = vrot.lane.b32.xlu0 %v1848, 112
  %v1851 = vpop.permute.xlu0 %1850
  %v1852 = vrot.slane %v1851, 4
  %v1853 = vsel %vm1360, %v1851, %v1852
  %v1855 = vadd.f32 %v1847, %v1853
  %v1856 = vmul.f32 %v1855, %v1819
  %v1857 = vadd.f32 %v1856, %v1824
  %v1858 = vmax.f32 %v1857, 0.0
  %1860 = vrot.lane.b32.xlu0 %v1858, 64
  %v1861 = vpop.permute.xlu0 %1860
  %v1862 = vrot.slane %v1861, 4
  %v1863 = vsel %vm1021, %v1861, %v1862
  %v1865 = vmax.f32 %v1846, %v1863
  %v1866 = vmul.f32 %v1801, %v1428
  %v1867 = vmul.f32 %v1807, %v1430
  %1869 = vrot.lane.b32.xlu0 %v1867, 112
  %v1870 = vpop.permute.xlu0 %1869
  %v1871 = vrot.slane %v1870, 4
  %v1872 = vsel %vm1360, %v1870, %v1871
  %v1874 = vadd.f32 %v1866, %v1872
  %v1875 = vmul.f32 %v1874, %v1819
  %v1876 = vadd.f32 %v1875, %v1824
  %v1877 = vmax.f32 %v1876, 0.0
  %1879 = vrot.lane.b32.xlu0 %v1877, 32
  %v1880 = vpop.permute.xlu0 %1879
  %v1881 = vrot.slane %v1880, 4
  %v1882 = vsel %vm1446, %v1880, %v1881
  %v1884 = vmax.f32 %v1865, %v1882
  %v1885 = vld [vmem:[%s14 + $0x6] sm:$0x1]
  %s1887 = vtos %v1885
  %v1888 = vstv %s1887
  %v1890 = vmul.f32 %v1888, %v1343
  %1891 = vrot.lane.b32.xlu0 %v1885, 127
  %v1892 = vpop.permute.xlu0 %1891
  %s1893 = vtos %v1892
  %v1894 = vstv %s1893
  %v1896 = vmul.f32 %v1894, %v1349
  %1898 = vrot.lane.b32.xlu0 %v1896, 112
  %v1899 = vpop.permute.xlu0 %1898
  %v1900 = vrot.slane %v1899, 4
  %v1901 = vsel %vm1360, %v1899, %v1900
  %v1903 = vadd.f32 %v1890, %v1901
  %1904 = vset.pattern.permute.xlu0 6
  %1905 = vperm.xlu0 %1904, %v1368
  %v1906 = vpop.permute.xlu0 %1905
  %v1908 = vmul.f32 %v1903, %v1906
  %1909 = vset.pattern.permute.xlu0 6
  %1910 = vperm.xlu0 %1909, %v1378
  %v1911 = vpop.permute.xlu0 %1910
  %v1913 = vadd.f32 %v1908, %v1911
  %v1914 = vmax.f32 %v1913, 0.0
  %v1915 = vmul.f32 %v1888, %v1385
  %v1916 = vmul.f32 %v1894, %v1387
  %1918 = vrot.lane.b32.xlu0 %v1916, 112
  %v1919 = vpop.permute.xlu0 %1918
  %v1920 = vrot.slane %v1919, 4
  %v1921 = vsel %vm1360, %v1919, %v1920
  %v1923 = vadd.f32 %v1915, %v1921
  %v1924 = vmul.f32 %v1923, %v1906
  %v1925 = vadd.f32 %v1924, %v1911
  %v1926 = vmax.f32 %v1925, 0.0
  %1928 = vrot.lane.b32.xlu0 %v1926, 96
  %v1929 = vpop.permute.xlu0 %1928
  %v1930 = vrot.slane %v1929, 4
  %v1931 = vsel %vm1403, %v1929, %v1930
  %v1933 = vmax.f32 %v1914, %v1931
  %v1934 = vmul.f32 %v1888, %v1407
  %v1935 = vmul.f32 %v1894, %v1409
  %1937 = vrot.lane.b32.xlu0 %v1935, 112
  %v1938 = vpop.permute.xlu0 %1937
  %v1939 = vrot.slane %v1938, 4
  %v1940 = vsel %vm1360, %v1938, %v1939
  %v1942 = vadd.f32 %v1934, %v1940
  %v1943 = vmul.f32 %v1942, %v1906
  %v1944 = vadd.f32 %v1943, %v1911
  %v1945 = vmax.f32 %v1944, 0.0
  %1947 = vrot.lane.b32.xlu0 %v1945, 64
  %v1948 = vpop.permute.xlu0 %1947
  %v1949 = vrot.slane %v1948, 4
  %v1950 = vsel %vm1021, %v1948, %v1949
  %v1952 = vmax.f32 %v1933, %v1950
  %v1953 = vmul.f32 %v1888, %v1428
  %v1954 = vmul.f32 %v1894, %v1430
  %1956 = vrot.lane.b32.xlu0 %v1954, 112
  %v1957 = vpop.permute.xlu0 %1956
  %v1958 = vrot.slane %v1957, 4
  %v1959 = vsel %vm1360, %v1957, %v1958
  %v1961 = vadd.f32 %v1953, %v1959
  %v1962 = vmul.f32 %v1961, %v1906
  %v1963 = vadd.f32 %v1962, %v1911
  %v1964 = vmax.f32 %v1963, 0.0
  %1966 = vrot.lane.b32.xlu0 %v1964, 32
  %v1967 = vpop.permute.xlu0 %1966
  %v1968 = vrot.slane %v1967, 4
  %v1969 = vsel %vm1446, %v1967, %v1968
  %v1971 = vmax.f32 %v1952, %v1969
  %v1972 = vld [vmem:[%s14 + $0x7] sm:$0x1]
  %s1974 = vtos %v1972
  %v1975 = vstv %s1974
  %v1977 = vmul.f32 %v1975, %v1343
  %1978 = vrot.lane.b32.xlu0 %v1972, 127
  %v1979 = vpop.permute.xlu0 %1978
  %s1980 = vtos %v1979
  %v1981 = vstv %s1980
  %v1983 = vmul.f32 %v1981, %v1349
  %1985 = vrot.lane.b32.xlu0 %v1983, 112
  %v1986 = vpop.permute.xlu0 %1985
  %v1987 = vrot.slane %v1986, 4
  %v1988 = vsel %vm1360, %v1986, %v1987
  %v1990 = vadd.f32 %v1977, %v1988
  %1991 = vset.pattern.permute.xlu0 7
  %1992 = vperm.xlu0 %1991, %v1368
  %v1993 = vpop.permute.xlu0 %1992
  %v1995 = vmul.f32 %v1990, %v1993
  %1996 = vset.pattern.permute.xlu0 7
  %1997 = vperm.xlu0 %1996, %v1378
  %v1998 = vpop.permute.xlu0 %1997
  %v2000 = vadd.f32 %v1995, %v1998
  %v2001 = vmax.f32 %v2000, 0.0
  %v2002 = vmul.f32 %v1975, %v1385
  %v2003 = vmul.f32 %v1981, %v1387
  %2005 = vrot.lane.b32.xlu0 %v2003, 112
  %v2006 = vpop.permute.xlu0 %2005
  %v2007 = vrot.slane %v2006, 4
  %v2008 = vsel %vm1360, %v2006, %v2007
  %v2010 = vadd.f32 %v2002, %v2008
  %v2011 = vmul.f32 %v2010, %v1993
  %v2012 = vadd.f32 %v2011, %v1998
  %v2013 = vmax.f32 %v2012, 0.0
  %2015 = vrot.lane.b32.xlu0 %v2013, 96
  %v2016 = vpop.permute.xlu0 %2015
  %v2017 = vrot.slane %v2016, 4
  %v2018 = vsel %vm1403, %v2016, %v2017
  %v2020 = vmax.f32 %v2001, %v2018
  %v2021 = vmul.f32 %v1975, %v1407
  %v2022 = vmul.f32 %v1981, %v1409
  %2024 = vrot.lane.b32.xlu0 %v2022, 112
  %v2025 = vpop.permute.xlu0 %2024
  %v2026 = vrot.slane %v2025, 4
  %v2027 = vsel %vm1360, %v2025, %v2026
  %v2029 = vadd.f32 %v2021, %v2027
  %v2030 = vmul.f32 %v2029, %v1993
  %v2031 = vadd.f32 %v2030, %v1998
  %v2032 = vmax.f32 %v2031, 0.0
  %2034 = vrot.lane.b32.xlu0 %v2032, 64
  %v2035 = vpop.permute.xlu0 %2034
  %v2036 = vrot.slane %v2035, 4
  %v2037 = vsel %vm1021, %v2035, %v2036
  %v2039 = vmax.f32 %v2020, %v2037
  %v2040 = vmul.f32 %v1975, %v1428
  %v2041 = vmul.f32 %v1981, %v1430
  %2043 = vrot.lane.b32.xlu0 %v2041, 112
  %v2044 = vpop.permute.xlu0 %2043
  %v2045 = vrot.slane %v2044, 4
  %v2046 = vsel %vm1360, %v2044, %v2045
  %v2048 = vadd.f32 %v2040, %v2046
  %v2049 = vmul.f32 %v2048, %v1993
  %v2050 = vadd.f32 %v2049, %v1998
  %v2051 = vmax.f32 %v2050, 0.0
  %2053 = vrot.lane.b32.xlu0 %v2051, 32
  %v2054 = vpop.permute.xlu0 %2053
  %v2055 = vrot.slane %v2054, 4
  %v2056 = vsel %vm1446, %v2054, %v2055
  %v2058 = vmax.f32 %v2039, %v2056
  %vm2059 = vcmask 257024
  %2060 = vst.msk [vmem:[#allocation2] sm:$0xf] %vm2059, %v208
  %2062 = vrot.lane.b32.xlu0 %v209, 32
  %v2063 = vpop.permute.xlu0 %2062
  %vm2065 = vcmask 519424
  %2066 = vst.msk [vmem:[#allocation2] sm:$0xf] %vm2065, %v2063
  %2068 = vrot.lane.b32.xlu0 %v210, 64
  %v2069 = vpop.permute.xlu0 %2068
  %vm2071 = vcmask 781824
  %2072 = vst.msk [vmem:[#allocation2] sm:$0xf] %vm2071, %v2069
  %2074 = vrot.lane.b32.xlu0 %v211, 96
  %v2075 = vpop.permute.xlu0 %2074
  %vm2077 = vcmask 1044224
  %2078 = vst.msk [vmem:[#allocation2] sm:$0xf] %vm2077, %v2075
  %vm2079 = vcmask 519168
  %2080 = vst.msk [vmem:[#allocation2 + $0x4] sm:$0xf] %vm2079, %v347
  %2082 = vrot.lane.b32.xlu0 %v348, 64
  %v2083 = vpop.permute.xlu0 %2082
  %vm2085 = vcmask 1043968
  %2086 = vst.msk [vmem:[#allocation2 + $0x4] sm:$0xf] %vm2085, %v2083
  %2087 = vst.msk [vmem:[#allocation2 + $0x8] sm:$0xf] %vm2079, %v349
  %2089 = vrot.lane.b32.xlu0 %v350, 64
  %v2090 = vpop.permute.xlu0 %2089
  %2092 = vst.msk [vmem:[#allocation2 + $0x8] sm:$0xf] %vm2085, %v2090
  %2093 = vst.msk [vmem:[#allocation2 + $0xc] sm:$0xf] %vm2059, %v1338
  %2095 = vrot.lane.b32.xlu0 %v1339, 32
  %v2096 = vpop.permute.xlu0 %2095
  %2098 = vst.msk [vmem:[#allocation2 + $0xc] sm:$0xf] %vm2065, %v2096
  %2100 = vrot.lane.b32.xlu0 %v1449, 64
  %v2101 = vpop.permute.xlu0 %2100
  %v2102 = vrot.slane %v2101, 4
  %v2103 = vsel %vm1021, %v2102, %v2101
  %vm2105 = vcmask 654340
  %vm2106 = vmor %vm2105, %vm2085
  %2107 = vst.msk [vmem:[#allocation2 + $0xc] sm:$0xff] %vm2106, %v2103
  %2109 = vrot.lane.b32.xlu0 %v1536, 80
  %v2110 = vpop.permute.xlu0 %2109
  %v2111 = vrot.slane %v2110, 4
  %vm2112 = vcmask 654336
  %v2113 = vsel %vm2112, %v2111, %v2110
  %vm2115 = vcmask 1044096
  %vm2116 = vcmask 785412
  %vm2117 = vmor %vm2116, %vm2115
  %2118 = vst.msk [vmem:[#allocation2 + $0x10] sm:$0xff] %vm2117, %v2113
  %2120 = vrot.lane.b32.xlu0 %v1623, 96
  %v2121 = vpop.permute.xlu0 %2120
  %v2122 = vrot.slane %v2121, 4
  %v2123 = vsel %vm1403, %v2122, %v2121
  %vm2125 = vcmask 916484
  %vm2126 = vmor %vm2125, %vm2077
  %2127 = vst.msk [vmem:[#allocation2 + $0x14] sm:$0xff] %vm2126, %v2123
  %2129 = vrot.lane.b32.xlu0 %v1710, 112
  %v2130 = vpop.permute.xlu0 %2129
  %v2131 = vrot.slane %v2130, 4
  %v2132 = vsel %vm1360, %v2131, %v2130
  %vm2134 = vcmask 1044352
  %vm2135 = vcmask 1047556
  %vm2136 = vmor %vm2135, %vm2134
  %2137 = vst.msk [vmem:[#allocation2 + $0x18] sm:$0xff] %vm2136, %v2132
  %vm2138 = vcmask 1043456
  %vm2139 = vcmask 130052
  %vm2140 = vmor %vm2139, %vm2138
  %2141 = vst.msk [vmem:[#allocation2 + $0x20] sm:$0xff] %vm2140, %v1797
  %2143 = vrot.lane.b32.xlu0 %v1884, 16
  %v2144 = vpop.permute.xlu0 %2143
  %v2145 = vrot.slane %v2144, 4
  %vm2146 = vcmask 130048
  %v2147 = vsel %vm2146, %v2145, %v2144
  %vm2149 = vcmask 1043584
  %vm2150 = vcmask 261124
  %vm2151 = vmor %vm2150, %vm2149
  %2152 = vst.msk [vmem:[#allocation2 + $0x24] sm:$0xff] %vm2151, %v2147
  %2154 = vrot.lane.b32.xlu0 %v1971, 32
  %v2155 = vpop.permute.xlu0 %2154
  %v2156 = vrot.slane %v2155, 4
  %v2157 = vsel %vm1446, %v2156, %v2155
  %vm2159 = vcmask 1043712
  %vm2160 = vcmask 392196
  %vm2161 = vmor %vm2160, %vm2159
  %2162 = vst.msk [vmem:[#allocation2 + $0x28] sm:$0xff] %vm2161, %v2157
  %2164 = vrot.lane.b32.xlu0 %v2058, 48
  %v2165 = vpop.permute.xlu0 %2164
  %v2166 = vrot.slane %v2165, 4
  %vm2167 = vcmask 392192
  %v2168 = vsel %vm2167, %v2166, %v2165
  %vm2170 = vcmask 1043840
  %vm2171 = vcmask 523268
  %vm2172 = vmor %vm2171, %vm2170
  %2173 = vst.msk [vmem:[#allocation2 + $0x2c] sm:$0xff] %vm2172, %v2168
  %v2174 = vld [vmem:[#allocation2] sm:$0xff]
  %v2175 = vld [vmem:[#allocation2 + $0x8] sm:$0xff]
  %v2176 = vld [vmem:[#allocation2 + $0x10] sm:$0xff]
  %v2177 = vld [vmem:[#allocation2 + $0x18] sm:$0xff]
  %v2178 = vld [vmem:[#allocation2 + $0x20] sm:$0xff]
  %v2179 = vld [vmem:[#allocation2 + $0x28] sm:$0xff]
  %v2180 = vld [vmem:[#allocation2 + $0x30] sm:$0xf]
  %v2181 = vld [vmem:[%s17] sm:$0xff]
  %v2182 = vld [vmem:[%s17 + $0x8] sm:$0xff]
  %v2183 = vld [vmem:[%s17 + $0x10] sm:$0xff]
  %v2184 = vld [vmem:[%s17 + $0x18] sm:$0xff]
  %v2185 = vld [vmem:[%s17 + $0x20] sm:$0xff]
  %v2186 = vld [vmem:[%s17 + $0x28] sm:$0xff]
  %v2187 = vld [vmem:[%s17 + $0x30] sm:$0xff]
  %v2188 = vld [vmem:[%s17 + $0x38] sm:$0xff]
  %v2189 = vld [vmem:[%s17 + $0x40] sm:$0xff]
  %v2190 = vld [vmem:[%s17 + $0x48] sm:$0xff]
  %v2191 = vld [vmem:[%s17 + $0x50] sm:$0xff]
  %v2192 = vld [vmem:[%s17 + $0x58] sm:$0xff]
  %v2193 = vld [vmem:[%s17 + $0x60] sm:$0xff]
  %v2194 = vld [vmem:[%s17 + $0x68] sm:$0xff]
  %v2195 = vld [vmem:[%s17 + $0x70] sm:$0xff]
  %v2196 = vld [vmem:[%s17 + $0x78] sm:$0xff]
  %v2197 = vld [vmem:[%s17 + $0x80] sm:$0xff]
  %v2198 = vld [vmem:[%s17 + $0x88] sm:$0xff]
  %v2199 = vld [vmem:[%s17 + $0x90] sm:$0xff]
  %v2200 = vld [vmem:[%s17 + $0x98] sm:$0xff]
  %v2201 = vld [vmem:[%s17 + $0xa0] sm:$0xff]
  %v2202 = vld [vmem:[%s17 + $0xa8] sm:$0xff]
  %v2203 = vld [vmem:[%s17 + $0xb0] sm:$0xff]
  %v2204 = vld [vmem:[%s17 + $0xb8] sm:$0xff]
  %v2205 = vld [vmem:[%s17 + $0xc0] sm:$0xff]
  %v2206 = vld [vmem:[%s17 + $0xc8] sm:$0xff]
  %v2207 = vld [vmem:[%s17 + $0xd0] sm:$0xff]
  %v2208 = vld [vmem:[%s17 + $0xd8] sm:$0xff]
  %v2209 = vld [vmem:[%s17 + $0xe0] sm:$0xff]
  %v2210 = vld [vmem:[%s17 + $0xe8] sm:$0xff]
  %v2211 = vld [vmem:[%s17 + $0xf0] sm:$0xff]
  %v2212 = vld [vmem:[%s17 + $0xf8] sm:$0xff]
  %v2213 = vld [vmem:[%s17 + $0x100] sm:$0xff]
  %v2214 = vld [vmem:[%s17 + $0x108] sm:$0xff]
  %v2215 = vld [vmem:[%s17 + $0x110] sm:$0xff]
  %v2216 = vld [vmem:[%s17 + $0x118] sm:$0xff]
  %v2217 = vld [vmem:[%s17 + $0x120] sm:$0xff]
  %v2218 = vld [vmem:[%s17 + $0x128] sm:$0xff]
  %v2219 = vld [vmem:[%s17 + $0x130] sm:$0xff]
  %v2220 = vld [vmem:[%s17 + $0x138] sm:$0xff]
  %v2221 = vld [vmem:[%s17 + $0x140] sm:$0xff]
  %v2222 = vld [vmem:[%s17 + $0x148] sm:$0xff]
  %v2223 = vld [vmem:[%s17 + $0x150] sm:$0xff]
  %v2224 = vld [vmem:[%s17 + $0x158] sm:$0xff]
  %v2225 = vld [vmem:[%s17 + $0x160] sm:$0xff]
  %v2226 = vld [vmem:[%s17 + $0x168] sm:$0xff]
  %v2227 = vld [vmem:[%s17 + $0x170] sm:$0xff]
  %v2228 = vld [vmem:[%s17 + $0x178] sm:$0xff]
  %v2229 = vld [vmem:[%s17 + $0x180] sm:$0xff]
  %v2230 = vld [vmem:[%s17 + $0x188] sm:$0xff]
  %v2231 = vld [vmem:[%s17 + $0x190] sm:$0xff]
  %v2232 = vld [vmem:[%s17 + $0x198] sm:$0xff]
  %v2233 = vld [vmem:[%s17 + $0x1a0] sm:$0xff]
  %v2234 = vld [vmem:[%s17 + $0x1a8] sm:$0xff]
  %v2235 = vld [vmem:[%s17 + $0x1b0] sm:$0xff]
  %v2236 = vld [vmem:[%s17 + $0x1b8] sm:$0xff]
  %v2237 = vld [vmem:[%s17 + $0x1c0] sm:$0xff]
  %v2238 = vld [vmem:[%s17 + $0x1c8] sm:$0xff]
  %v2239 = vld [vmem:[%s17 + $0x1d0] sm:$0xff]
  %v2240 = vld [vmem:[%s17 + $0x1d8] sm:$0xff]
  %v2241 = vld [vmem:[%s17 + $0x1e0] sm:$0xff]
  %v2242 = vld [vmem:[%s17 + $0x1e8] sm:$0xff]
  %v2243 = vld [vmem:[%s17 + $0x1f0] sm:$0xff]
  %v2244 = vld [vmem:[%s17 + $0x1f8] sm:$0xff]
  %v2245 = vld [vmem:[%s17 + $0x200] sm:$0xff]
  %v2246 = vld [vmem:[%s17 + $0x208] sm:$0xff]
  %v2247 = vld [vmem:[%s17 + $0x210] sm:$0xff]
  %v2248 = vld [vmem:[%s17 + $0x218] sm:$0xff]
  %v2249 = vld [vmem:[%s17 + $0x220] sm:$0xff]
  %v2250 = vld [vmem:[%s17 + $0x228] sm:$0xff]
  %v2251 = vld [vmem:[%s17 + $0x230] sm:$0xff]
  %v2252 = vld [vmem:[%s17 + $0x238] sm:$0xff]
  %v2253 = vld [vmem:[%s17 + $0x240] sm:$0xff]
  %v2254 = vld [vmem:[%s17 + $0x248] sm:$0xff]
  %v2255 = vld [vmem:[%s17 + $0x250] sm:$0xff]
  %v2256 = vld [vmem:[%s17 + $0x258] sm:$0xff]
  %v2257 = vld [vmem:[%s17 + $0x260] sm:$0xff]
  %v2258 = vld [vmem:[%s17 + $0x268] sm:$0xff]
  %v2259 = vld [vmem:[%s17 + $0x270] sm:$0xff]
  %v2260 = vld [vmem:[%s17 + $0x278] sm:$0xff]
  %v2261 = vld [vmem:[%s17 + $0x280] sm:$0xff]
  %v2262 = vld [vmem:[%s17 + $0x288] sm:$0xff]
  %v2263 = vld [vmem:[%s17 + $0x290] sm:$0xff]
  %v2264 = vld [vmem:[%s17 + $0x298] sm:$0xff]
  %v2265 = vld [vmem:[%s17 + $0x2a0] sm:$0xff]
  %v2266 = vld [vmem:[%s17 + $0x2a8] sm:$0xff]
  %v2267 = vld [vmem:[%s17 + $0x2b0] sm:$0xff]
  %v2268 = vld [vmem:[%s17 + $0x2b8] sm:$0xff]
  %v2269 = vld [vmem:[%s17 + $0x2c0] sm:$0xff]
  %v2270 = vld [vmem:[%s17 + $0x2c8] sm:$0xff]
  %v2271 = vld [vmem:[%s17 + $0x2d0] sm:$0xff]
  %v2272 = vld [vmem:[%s17 + $0x2d8] sm:$0xff]
  %v2273 = vld [vmem:[%s17 + $0x2e0] sm:$0xff]
  %v2274 = vld [vmem:[%s17 + $0x2e8] sm:$0xff]
  %v2275 = vld [vmem:[%s17 + $0x2f0] sm:$0xff]
  %v2276 = vld [vmem:[%s17 + $0x2f8] sm:$0xff]
  %v2277 = vld [vmem:[%s17 + $0x300] sm:$0xff]
  %v2278 = vld [vmem:[%s17 + $0x308] sm:$0xff]
  %v2279 = vld [vmem:[%s17 + $0x310] sm:$0xff]
  %v2280 = vld [vmem:[%s17 + $0x318] sm:$0xff]
  %v2281 = vld [vmem:[%s17 + $0x320] sm:$0xff]
  %v2282 = vld [vmem:[%s17 + $0x328] sm:$0xff]
  %v2283 = vld [vmem:[%s17 + $0x330] sm:$0xff]
  %v2284 = vld [vmem:[%s17 + $0x338] sm:$0xff]
  %v2285 = vld [vmem:[%s17 + $0x340] sm:$0xff]
  %v2286 = vld [vmem:[%s17 + $0x348] sm:$0xff]
  %v2287 = vld [vmem:[%s17 + $0x350] sm:$0xff]
  %v2288 = vld [vmem:[%s17 + $0x358] sm:$0xff]
  %v2289 = vld [vmem:[%s17 + $0x360] sm:$0xff]
  %v2290 = vld [vmem:[%s17 + $0x368] sm:$0xff]
  %v2291 = vld [vmem:[%s17 + $0x370] sm:$0xff]
  %v2292 = vld [vmem:[%s17 + $0x378] sm:$0xff]
  %v2293 = vld [vmem:[%s17 + $0x380] sm:$0xff]
  %v2294 = vld [vmem:[%s17 + $0x388] sm:$0xff]
  %v2295 = vld [vmem:[%s17 + $0x390] sm:$0xff]
  %v2296 = vld [vmem:[%s17 + $0x398] sm:$0xff]
  %v2297 = vld [vmem:[%s17 + $0x3a0] sm:$0xff]
  %v2298 = vld [vmem:[%s17 + $0x3a8] sm:$0xff]
  %v2299 = vld [vmem:[%s17 + $0x3b0] sm:$0xff]
  %v2300 = vld [vmem:[%s17 + $0x3b8] sm:$0xff]
  %v2301 = vld [vmem:[%s17 + $0x3c0] sm:$0xff]
  %v2302 = vld [vmem:[%s17 + $0x3c8] sm:$0xff]
  %v2303 = vld [vmem:[%s17 + $0x3d0] sm:$0xff]
  %v2304 = vld [vmem:[%s17 + $0x3d8] sm:$0xff]
  %v2305 = vld [vmem:[%s17 + $0x3e0] sm:$0xff]
  %v2306 = vld [vmem:[%s17 + $0x3e8] sm:$0xff]
  %v2307 = vld [vmem:[%s17 + $0x3f0] sm:$0xff]
  %v2308 = vld [vmem:[%s17 + $0x3f8] sm:$0xff]
  %v2309 = vld [vmem:[%s17 + $0x400] sm:$0xff]
  %v2310 = vld [vmem:[%s17 + $0x408] sm:$0xff]
  %v2311 = vld [vmem:[%s17 + $0x410] sm:$0xff]
  %v2312 = vld [vmem:[%s17 + $0x418] sm:$0xff]
  %v2313 = vld [vmem:[%s17 + $0x420] sm:$0xff]
  %v2314 = vld [vmem:[%s17 + $0x428] sm:$0xff]
  %v2315 = vld [vmem:[%s17 + $0x430] sm:$0xff]
  %v2316 = vld [vmem:[%s17 + $0x438] sm:$0xff]
  %v2317 = vld [vmem:[%s17 + $0x440] sm:$0xff]
  %v2318 = vld [vmem:[%s17 + $0x448] sm:$0xff]
  %v2319 = vld [vmem:[%s17 + $0x450] sm:$0xff]
  %v2320 = vld [vmem:[%s17 + $0x458] sm:$0xff]
  %v2321 = vld [vmem:[%s17 + $0x460] sm:$0xff]
  %v2322 = vld [vmem:[%s17 + $0x468] sm:$0xff]
  %v2323 = vld [vmem:[%s17 + $0x470] sm:$0xff]
  %v2324 = vld [vmem:[%s17 + $0x478] sm:$0xff]
  %v2325 = vld [vmem:[%s17 + $0x480] sm:$0xff]
  %v2326 = vld [vmem:[%s17 + $0x488] sm:$0xff]
  %v2327 = vld [vmem:[%s17 + $0x490] sm:$0xff]
  %v2328 = vld [vmem:[%s17 + $0x498] sm:$0xff]
  %v2329 = vld [vmem:[%s17 + $0x4a0] sm:$0xff]
  %v2330 = vld [vmem:[%s17 + $0x4a8] sm:$0xff]
  %v2331 = vld [vmem:[%s17 + $0x4b0] sm:$0xff]
  %v2332 = vld [vmem:[%s17 + $0x4b8] sm:$0xff]
  %v2333 = vld [vmem:[%s17 + $0x4c0] sm:$0xff]
  %v2334 = vld [vmem:[%s17 + $0x4c8] sm:$0xff]
  %v2335 = vld [vmem:[%s17 + $0x4d0] sm:$0xff]
  %v2336 = vld [vmem:[%s17 + $0x4d8] sm:$0xff]
  %v2337 = vld [vmem:[%s17 + $0x4e0] sm:$0xff]
  %v2338 = vld [vmem:[%s17 + $0x4e8] sm:$0xff]
  %v2339 = vld [vmem:[%s17 + $0x4f0] sm:$0xff]
  %v2340 = vld [vmem:[%s17 + $0x4f8] sm:$0xff]
  %v2341 = vld [vmem:[%s17 + $0x500] sm:$0xff]
  %v2342 = vld [vmem:[%s17 + $0x508] sm:$0xff]
  %v2343 = vld [vmem:[%s17 + $0x510] sm:$0xff]
  %v2344 = vld [vmem:[%s17 + $0x518] sm:$0xff]
  %v2345 = vld [vmem:[%s17 + $0x520] sm:$0xff]
  %v2346 = vld [vmem:[%s17 + $0x528] sm:$0xff]
  %v2347 = vld [vmem:[%s17 + $0x530] sm:$0xff]
  %v2348 = vld [vmem:[%s17 + $0x538] sm:$0xff]
  %v2349 = vld [vmem:[%s17 + $0x540] sm:$0xff]
  %v2350 = vld [vmem:[%s17 + $0x548] sm:$0xff]
  %v2351 = vld [vmem:[%s17 + $0x550] sm:$0xff]
  %v2352 = vld [vmem:[%s17 + $0x558] sm:$0xff]
  %v2353 = vld [vmem:[%s17 + $0x560] sm:$0xff]
  %v2354 = vld [vmem:[%s17 + $0x568] sm:$0xff]
  %v2355 = vld [vmem:[%s17 + $0x570] sm:$0xff]
  %v2356 = vld [vmem:[%s17 + $0x578] sm:$0xff]
  %v2357 = vld [vmem:[%s17 + $0x580] sm:$0xff]
  %v2358 = vld [vmem:[%s17 + $0x588] sm:$0xff]
  %v2359 = vld [vmem:[%s17 + $0x590] sm:$0xff]
  %v2360 = vld [vmem:[%s17 + $0x598] sm:$0xff]
  %v2361 = vld [vmem:[%s17 + $0x5a0] sm:$0xff]
  %v2362 = vld [vmem:[%s17 + $0x5a8] sm:$0xff]
  %v2363 = vld [vmem:[%s17 + $0x5b0] sm:$0xff]
  %v2364 = vld [vmem:[%s17 + $0x5b8] sm:$0xff]
  %v2365 = vld [vmem:[%s17 + $0x5c0] sm:$0xff]
  %v2366 = vld [vmem:[%s17 + $0x5c8] sm:$0xff]
  %v2367 = vld [vmem:[%s17 + $0x5d0] sm:$0xff]
  %v2368 = vld [vmem:[%s17 + $0x5d8] sm:$0xff]
  %v2369 = vld [vmem:[%s17 + $0x5e0] sm:$0xff]
  %v2370 = vld [vmem:[%s17 + $0x5e8] sm:$0xff]
  %v2371 = vld [vmem:[%s17 + $0x5f0] sm:$0xff]
  %v2372 = vld [vmem:[%s17 + $0x5f8] sm:$0xff]
  %v2373 = vld [vmem:[%s17 + $0x600] sm:$0xff]
  %v2374 = vld [vmem:[%s17 + $0x608] sm:$0xff]
  %v2375 = vld [vmem:[%s17 + $0x610] sm:$0xff]
  %v2376 = vld [vmem:[%s17 + $0x618] sm:$0xff]
  %v2377 = vld [vmem:[%s17 + $0x620] sm:$0xff]
  %v2378 = vld [vmem:[%s17 + $0x628] sm:$0xff]
  %v2379 = vld [vmem:[%s17 + $0x630] sm:$0xff]
  %v2380 = vld [vmem:[%s17 + $0x638] sm:$0xff]
  %v2388 = vcombine.high %v2174, %v2174
  %v2389 = vcombine.high %v2175, %v2175
  %v2390 = vcombine.high %v2176, %v2176
  %v2391 = vcombine.high %v2177, %v2177
  %v2392 = vcombine.high %v2178, %v2178
  %v2393 = vcombine.high %v2179, %v2179
  %v2400 = vsel %vm1021, %v2180, 0
  %2402 = vmatprep.subr.mxu0 0.0
  %2403 = vmatpush1.msra.mxu0 %v2181
  %2404 = vmatprep.subr.mxu0 0.0
  %2405 = vmatpush1.msra.mxu0 %v2182
  %2406 = vmatprep.subr.mxu0 0.0
  %2407 = vmatpush1.msra.mxu0 %v2183
  %2408 = vmatprep.subr.mxu0 0.0
  %2409 = vmatpush1.msra.mxu0 %v2184
  %2410 = vmatprep.subr.mxu0 0.0
  %2411 = vmatpush1.msra.mxu0 %v2185
  %2412 = vmatprep.subr.mxu0 0.0
  %2413 = vmatpush1.msra.mxu0 %v2186
  %2414 = vmatprep.subr.mxu0 0.0
  %2415 = vmatpush1.msra.mxu0 %v2187
  %2416 = vmatprep.subr.mxu0 0.0
  %2417 = vmatpush1.msra.mxu0 %v2188
  %2418 = vmatprep.subr.mxu0 0.0
  %2419 = vmatpush1.msra.mxu0 %v2189
  %2420 = vmatprep.subr.mxu0 0.0
  %2421 = vmatpush1.msra.mxu0 %v2190
  %2422 = vmatprep.subr.mxu0 0.0
  %2423 = vmatpush1.msra.mxu0 %v2191
  %2424 = vmatprep.subr.mxu0 0.0
  %2425 = vmatpush1.msra.mxu0 %v2192
  %2426 = vmatprep.subr.mxu0 0.0
  %2427 = vmatpush1.msra.mxu0 %v2193
  %2428 = vmatprep.subr.mxu0 0.0
  %2429 = vmatpush1.msra.mxu0 %v2194
  %2430 = vmatprep.subr.mxu0 0.0
  %2431 = vmatpush1.msra.mxu0 %v2195
  %2432 = vmatprep.subr.mxu0 0.0
  %2433 = vmatpush1.msra.mxu0 %v2196
  %2434 = vmatprep.subr.mxu0 0.0
  %2435 = vmatpush1.msra.mxu0 %v2197
  %2436 = vmatprep.subr.mxu0 0.0
  %2437 = vmatpush1.msra.mxu0 %v2198
  %2438 = vmatprep.subr.mxu0 0.0
  %2439 = vmatpush1.msra.mxu0 %v2199
  %2440 = vmatprep.subr.mxu0 0.0
  %2441 = vmatpush1.msra.mxu0 %v2200
  %2442 = vmatprep.subr.mxu0 0.0
  %2443 = vmatpush1.msra.mxu0 %v2201
  %2444 = vmatprep.subr.mxu0 0.0
  %2445 = vmatpush1.msra.mxu0 %v2202
  %2446 = vmatprep.subr.mxu0 0.0
  %2447 = vmatpush1.msra.mxu0 %v2203
  %2448 = vmatprep.subr.mxu0 0.0
  %2449 = vmatpush1.msra.mxu0 %v2204
  %2450 = vmatprep.subr.mxu0 0.0
  %2451 = vmatpush1.msra.mxu0 %v2205
  %2452 = vmatprep.subr.mxu0 0.0
  %2453 = vmatpush1.msra.mxu0 %v2206
  %2454 = vmatprep.subr.mxu0 0.0
  %2455 = vmatpush1.msra.mxu0 %v2207
  %2456 = vmatprep.subr.mxu0 0.0
  %2457 = vmatpush1.msra.mxu0 %v2208
  %2458 = vmatprep.subr.mxu0 0.0
  %2459 = vmatpush1.msra.mxu0 %v2209
  %2460 = vmatprep.subr.mxu0 0.0
  %2461 = vmatpush1.msra.mxu0 %v2210
  %2462 = vmatprep.subr.mxu0 0.0
  %2463 = vmatpush1.msra.mxu0 %v2211
  %2464 = vmatprep.subr.mxu0 0.0
  %2465 = vmatpush1.msra.mxu0 %v2212
  %2466 = vmatprep.mubr.f32.mxu0 %v2388
  %2467 = vmatmul.mubr.f32.gmra.mrb[0].mxu0 %v2174
  %v2468 = vpop.f32.mrb[0].mxu0
  %v2469 = vadd.f32 0.0, %v2468
  %v2470 = vpop.f32.mrb[0].mxu0
  %2471 = vdwg.mxu0
  %2472 = vmatprep.subr.mxu0 0.0
  %2473 = vmatpush1.msra.mxu0 %v2213
  %2474 = vmatprep.subr.mxu0 0.0
  %2475 = vmatpush1.msra.mxu0 %v2214
  %2476 = vmatprep.subr.mxu0 0.0
  %2477 = vmatpush1.msra.mxu0 %v2215
  %2478 = vmatprep.subr.mxu0 0.0
  %2479 = vmatpush1.msra.mxu0 %v2216
  %2480 = vmatprep.subr.mxu0 0.0
  %2481 = vmatpush1.msra.mxu0 %v2217
  %2482 = vmatprep.subr.mxu0 0.0
  %2483 = vmatpush1.msra.mxu0 %v2218
  %2484 = vmatprep.subr.mxu0 0.0
  %2485 = vmatpush1.msra.mxu0 %v2219
  %2486 = vmatprep.subr.mxu0 0.0
  %2487 = vmatpush1.msra.mxu0 %v2220
  %2488 = vmatprep.subr.mxu0 0.0
  %2489 = vmatpush1.msra.mxu0 %v2221
  %2490 = vmatprep.subr.mxu0 0.0
  %2491 = vmatpush1.msra.mxu0 %v2222
  %2492 = vmatprep.subr.mxu0 0.0
  %2493 = vmatpush1.msra.mxu0 %v2223
  %2494 = vmatprep.subr.mxu0 0.0
  %2495 = vmatpush1.msra.mxu0 %v2224
  %2496 = vmatprep.subr.mxu0 0.0
  %2497 = vmatpush1.msra.mxu0 %v2225
  %2498 = vmatprep.subr.mxu0 0.0
  %2499 = vmatpush1.msra.mxu0 %v2226
  %2500 = vmatprep.subr.mxu0 0.0
  %2501 = vmatpush1.msra.mxu0 %v2227
  %2502 = vmatprep.subr.mxu0 0.0
  %2503 = vmatpush1.msra.mxu0 %v2228
  %2504 = vmatprep.subr.mxu0 0.0
  %2505 = vmatpush1.msra.mxu0 %v2229
  %2506 = vmatprep.subr.mxu0 0.0
  %2507 = vmatpush1.msra.mxu0 %v2230
  %2508 = vmatprep.subr.mxu0 0.0
  %2509 = vmatpush1.msra.mxu0 %v2231
  %2510 = vmatprep.subr.mxu0 0.0
  %2511 = vmatpush1.msra.mxu0 %v2232
  %2512 = vmatprep.subr.mxu0 0.0
  %2513 = vmatpush1.msra.mxu0 %v2233
  %2514 = vmatprep.subr.mxu0 0.0
  %2515 = vmatpush1.msra.mxu0 %v2234
  %2516 = vmatprep.subr.mxu0 0.0
  %2517 = vmatpush1.msra.mxu0 %v2235
  %2518 = vmatprep.subr.mxu0 0.0
  %2519 = vmatpush1.msra.mxu0 %v2236
  %2520 = vmatprep.subr.mxu0 0.0
  %2521 = vmatpush1.msra.mxu0 %v2237
  %2522 = vmatprep.subr.mxu0 0.0
  %2523 = vmatpush1.msra.mxu0 %v2238
  %2524 = vmatprep.subr.mxu0 0.0
  %2525 = vmatpush1.msra.mxu0 %v2239
  %2526 = vmatprep.subr.mxu0 0.0
  %2527 = vmatpush1.msra.mxu0 %v2240
  %2528 = vmatprep.subr.mxu0 0.0
  %2529 = vmatpush1.msra.mxu0 %v2241
  %2530 = vmatprep.subr.mxu0 0.0
  %2531 = vmatpush1.msra.mxu0 %v2242
  %2532 = vmatprep.subr.mxu0 0.0
  %2533 = vmatpush1.msra.mxu0 %v2243
  %2534 = vmatprep.subr.mxu0 0.0
  %2535 = vmatpush1.msra.mxu0 %v2244
  %2536 = vmatprep.mubr.f32.mxu0 %v2389
  %2537 = vmatmul.mubr.f32.gmra.mrb[0].mxu0 %v2175
  %v2538 = vpop.f32.mrb[0].mxu0
  %v2539 = vadd.f32 %v2469, %v2538
  %v2540 = vpop.f32.mrb[0].mxu0
  %2541 = vdwg.mxu0
  %2542 = vmatprep.subr.mxu0 0.0
  %2543 = vmatpush1.msra.mxu0 %v2245
  %2544 = vmatprep.subr.mxu0 0.0
  %2545 = vmatpush1.msra.mxu0 %v2246
  %2546 = vmatprep.subr.mxu0 0.0
  %2547 = vmatpush1.msra.mxu0 %v2247
  %2548 = vmatprep.subr.mxu0 0.0
  %2549 = vmatpush1.msra.mxu0 %v2248
  %2550 = vmatprep.subr.mxu0 0.0
  %2551 = vmatpush1.msra.mxu0 %v2249
  %2552 = vmatprep.subr.mxu0 0.0
  %2553 = vmatpush1.msra.mxu0 %v2250
  %2554 = vmatprep.subr.mxu0 0.0
  %2555 = vmatpush1.msra.mxu0 %v2251
  %2556 = vmatprep.subr.mxu0 0.0
  %2557 = vmatpush1.msra.mxu0 %v2252
  %2558 = vmatprep.subr.mxu0 0.0
  %2559 = vmatpush1.msra.mxu0 %v2253
  %2560 = vmatprep.subr.mxu0 0.0
  %2561 = vmatpush1.msra.mxu0 %v2254
  %2562 = vmatprep.subr.mxu0 0.0
  %2563 = vmatpush1.msra.mxu0 %v2255
  %2564 = vmatprep.subr.mxu0 0.0
  %2565 = vmatpush1.msra.mxu0 %v2256
  %2566 = vmatprep.subr.mxu0 0.0
  %2567 = vmatpush1.msra.mxu0 %v2257
  %2568 = vmatprep.subr.mxu0 0.0
  %2569 = vmatpush1.msra.mxu0 %v2258
  %2570 = vmatprep.subr.mxu0 0.0
  %2571 = vmatpush1.msra.mxu0 %v2259
  %2572 = vmatprep.subr.mxu0 0.0
  %2573 = vmatpush1.msra.mxu0 %v2260
  %2574 = vmatprep.subr.mxu0 0.0
  %2575 = vmatpush1.msra.mxu0 %v2261
  %2576 = vmatprep.subr.mxu0 0.0
  %2577 = vmatpush1.msra.mxu0 %v2262
  %2578 = vmatprep.subr.mxu0 0.0
  %2579 = vmatpush1.msra.mxu0 %v2263
  %2580 = vmatprep.subr.mxu0 0.0
  %2581 = vmatpush1.msra.mxu0 %v2264
  %2582 = vmatprep.subr.mxu0 0.0
  %2583 = vmatpush1.msra.mxu0 %v2265
  %2584 = vmatprep.subr.mxu0 0.0
  %2585 = vmatpush1.msra.mxu0 %v2266
  %2586 = vmatprep.subr.mxu0 0.0
  %2587 = vmatpush1.msra.mxu0 %v2267
  %2588 = vmatprep.subr.mxu0 0.0
  %2589 = vmatpush1.msra.mxu0 %v2268
  %2590 = vmatprep.subr.mxu0 0.0
  %2591 = vmatpush1.msra.mxu0 %v2269
  %2592 = vmatprep.subr.mxu0 0.0
  %2593 = vmatpush1.msra.mxu0 %v2270
  %2594 = vmatprep.subr.mxu0 0.0
  %2595 = vmatpush1.msra.mxu0 %v2271
  %2596 = vmatprep.subr.mxu0 0.0
  %2597 = vmatpush1.msra.mxu0 %v2272
  %2598 = vmatprep.subr.mxu0 0.0
  %2599 = vmatpush1.msra.mxu0 %v2273
  %2600 = vmatprep.subr.mxu0 0.0
  %2601 = vmatpush1.msra.mxu0 %v2274
  %2602 = vmatprep.subr.mxu0 0.0
  %2603 = vmatpush1.msra.mxu0 %v2275
  %2604 = vmatprep.subr.mxu0 0.0
  %2605 = vmatpush1.msra.mxu0 %v2276
  %2606 = vmatprep.mubr.f32.mxu0 %v2390
  %2607 = vmatmul.mubr.f32.gmra.mrb[0].mxu0 %v2176
  %v2608 = vpop.f32.mrb[0].mxu0
  %v2609 = vadd.f32 %v2539, %v2608
  %v2610 = vpop.f32.mrb[0].mxu0
  %2611 = vdwg.mxu0
  %2612 = vmatprep.subr.mxu0 0.0
  %2613 = vmatpush1.msra.mxu0 %v2277
  %2614 = vmatprep.subr.mxu0 0.0
  %2615 = vmatpush1.msra.mxu0 %v2278
  %2616 = vmatprep.subr.mxu0 0.0
  %2617 = vmatpush1.msra.mxu0 %v2279
  %2618 = vmatprep.subr.mxu0 0.0
  %2619 = vmatpush1.msra.mxu0 %v2280
  %2620 = vmatprep.subr.mxu0 0.0
  %2621 = vmatpush1.msra.mxu0 %v2281
  %2622 = vmatprep.subr.mxu0 0.0
  %2623 = vmatpush1.msra.mxu0 %v2282
  %2624 = vmatprep.subr.mxu0 0.0
  %2625 = vmatpush1.msra.mxu0 %v2283
  %2626 = vmatprep.subr.mxu0 0.0
  %2627 = vmatpush1.msra.mxu0 %v2284
  %2628 = vmatprep.subr.mxu0 0.0
  %2629 = vmatpush1.msra.mxu0 %v2285
  %2630 = vmatprep.subr.mxu0 0.0
  %2631 = vmatpush1.msra.mxu0 %v2286
  %2632 = vmatprep.subr.mxu0 0.0
  %2633 = vmatpush1.msra.mxu0 %v2287
  %2634 = vmatprep.subr.mxu0 0.0
  %2635 = vmatpush1.msra.mxu0 %v2288
  %2636 = vmatprep.subr.mxu0 0.0
  %2637 = vmatpush1.msra.mxu0 %v2289
  %2638 = vmatprep.subr.mxu0 0.0
  %2639 = vmatpush1.msra.mxu0 %v2290
  %2640 = vmatprep.subr.mxu0 0.0
  %2641 = vmatpush1.msra.mxu0 %v2291
  %2642 = vmatprep.subr.mxu0 0.0
  %2643 = vmatpush1.msra.mxu0 %v2292
  %2644 = vmatprep.subr.mxu0 0.0
  %2645 = vmatpush1.msra.mxu0 %v2293
  %2646 = vmatprep.subr.mxu0 0.0
  %2647 = vmatpush1.msra.mxu0 %v2294
  %2648 = vmatprep.subr.mxu0 0.0
  %2649 = vmatpush1.msra.mxu0 %v2295
  %2650 = vmatprep.subr.mxu0 0.0
  %2651 = vmatpush1.msra.mxu0 %v2296
  %2652 = vmatprep.subr.mxu0 0.0
  %2653 = vmatpush1.msra.mxu0 %v2297
  %2654 = vmatprep.subr.mxu0 0.0
  %2655 = vmatpush1.msra.mxu0 %v2298
  %2656 = vmatprep.subr.mxu0 0.0
  %2657 = vmatpush1.msra.mxu0 %v2299
  %2658 = vmatprep.subr.mxu0 0.0
  %2659 = vmatpush1.msra.mxu0 %v2300
  %2660 = vmatprep.subr.mxu0 0.0
  %2661 = vmatpush1.msra.mxu0 %v2301
  %2662 = vmatprep.subr.mxu0 0.0
  %2663 = vmatpush1.msra.mxu0 %v2302
  %2664 = vmatprep.subr.mxu0 0.0
  %2665 = vmatpush1.msra.mxu0 %v2303
  %2666 = vmatprep.subr.mxu0 0.0
  %2667 = vmatpush1.msra.mxu0 %v2304
  %2668 = vmatprep.subr.mxu0 0.0
  %2669 = vmatpush1.msra.mxu0 %v2305
  %2670 = vmatprep.subr.mxu0 0.0
  %2671 = vmatpush1.msra.mxu0 %v2306
  %2672 = vmatprep.subr.mxu0 0.0
  %2673 = vmatpush1.msra.mxu0 %v2307
  %2674 = vmatprep.subr.mxu0 0.0
  %2675 = vmatpush1.msra.mxu0 %v2308
  %2676 = vmatprep.mubr.f32.mxu0 %v2391
  %2677 = vmatmul.mubr.f32.gmra.mrb[0].mxu0 %v2177
  %v2678 = vpop.f32.mrb[0].mxu0
  %v2679 = vadd.f32 %v2609, %v2678
  %v2680 = vpop.f32.mrb[0].mxu0
  %2681 = vdwg.mxu0
  %2682 = vmatprep.subr.mxu0 0.0
  %2683 = vmatpush1.msra.mxu0 %v2309
  %2684 = vmatprep.subr.mxu0 0.0
  %2685 = vmatpush1.msra.mxu0 %v2310
  %2686 = vmatprep.subr.mxu0 0.0
  %2687 = vmatpush1.msra.mxu0 %v2311
  %2688 = vmatprep.subr.mxu0 0.0
  %2689 = vmatpush1.msra.mxu0 %v2312
  %2690 = vmatprep.subr.mxu0 0.0
  %2691 = vmatpush1.msra.mxu0 %v2313
  %2692 = vmatprep.subr.mxu0 0.0
  %2693 = vmatpush1.msra.mxu0 %v2314
  %2694 = vmatprep.subr.mxu0 0.0
  %2695 = vmatpush1.msra.mxu0 %v2315
  %2696 = vmatprep.subr.mxu0 0.0
  %2697 = vmatpush1.msra.mxu0 %v2316
  %2698 = vmatprep.subr.mxu0 0.0
  %2699 = vmatpush1.msra.mxu0 %v2317
  %2700 = vmatprep.subr.mxu0 0.0
  %2701 = vmatpush1.msra.mxu0 %v2318
  %2702 = vmatprep.subr.mxu0 0.0
  %2703 = vmatpush1.msra.mxu0 %v2319
  %2704 = vmatprep.subr.mxu0 0.0
  %2705 = vmatpush1.msra.mxu0 %v2320
  %2706 = vmatprep.subr.mxu0 0.0
  %2707 = vmatpush1.msra.mxu0 %v2321
  %2708 = vmatprep.subr.mxu0 0.0
  %2709 = vmatpush1.msra.mxu0 %v2322
  %2710 = vmatprep.subr.mxu0 0.0
  %2711 = vmatpush1.msra.mxu0 %v2323
  %2712 = vmatprep.subr.mxu0 0.0
  %2713 = vmatpush1.msra.mxu0 %v2324
  %2714 = vmatprep.subr.mxu0 0.0
  %2715 = vmatpush1.msra.mxu0 %v2325
  %2716 = vmatprep.subr.mxu0 0.0
  %2717 = vmatpush1.msra.mxu0 %v2326
  %2718 = vmatprep.subr.mxu0 0.0
  %2719 = vmatpush1.msra.mxu0 %v2327
  %2720 = vmatprep.subr.mxu0 0.0
  %2721 = vmatpush1.msra.mxu0 %v2328
  %2722 = vmatprep.subr.mxu0 0.0
  %2723 = vmatpush1.msra.mxu0 %v2329
  %2724 = vmatprep.subr.mxu0 0.0
  %2725 = vmatpush1.msra.mxu0 %v2330
  %2726 = vmatprep.subr.mxu0 0.0
  %2727 = vmatpush1.msra.mxu0 %v2331
  %2728 = vmatprep.subr.mxu0 0.0
  %2729 = vmatpush1.msra.mxu0 %v2332
  %2730 = vmatprep.subr.mxu0 0.0
  %2731 = vmatpush1.msra.mxu0 %v2333
  %2732 = vmatprep.subr.mxu0 0.0
  %2733 = vmatpush1.msra.mxu0 %v2334
  %2734 = vmatprep.subr.mxu0 0.0
  %2735 = vmatpush1.msra.mxu0 %v2335
  %2736 = vmatprep.subr.mxu0 0.0
  %2737 = vmatpush1.msra.mxu0 %v2336
  %2738 = vmatprep.subr.mxu0 0.0
  %2739 = vmatpush1.msra.mxu0 %v2337
  %2740 = vmatprep.subr.mxu0 0.0
  %2741 = vmatpush1.msra.mxu0 %v2338
  %2742 = vmatprep.subr.mxu0 0.0
  %2743 = vmatpush1.msra.mxu0 %v2339
  %2744 = vmatprep.subr.mxu0 0.0
  %2745 = vmatpush1.msra.mxu0 %v2340
  %2746 = vmatprep.mubr.f32.mxu0 %v2392
  %2747 = vmatmul.mubr.f32.gmra.mrb[0].mxu0 %v2178
  %v2748 = vpop.f32.mrb[0].mxu0
  %v2749 = vadd.f32 %v2679, %v2748
  %v2750 = vpop.f32.mrb[0].mxu0
  %2751 = vdwg.mxu0
  %2752 = vmatprep.subr.mxu0 0.0
  %2753 = vmatpush1.msra.mxu0 %v2341
  %2754 = vmatprep.subr.mxu0 0.0
  %2755 = vmatpush1.msra.mxu0 %v2342
  %2756 = vmatprep.subr.mxu0 0.0
  %2757 = vmatpush1.msra.mxu0 %v2343
  %2758 = vmatprep.subr.mxu0 0.0
  %2759 = vmatpush1.msra.mxu0 %v2344
  %2760 = vmatprep.subr.mxu0 0.0
  %2761 = vmatpush1.msra.mxu0 %v2345
  %2762 = vmatprep.subr.mxu0 0.0
  %2763 = vmatpush1.msra.mxu0 %v2346
  %2764 = vmatprep.subr.mxu0 0.0
  %2765 = vmatpush1.msra.mxu0 %v2347
  %2766 = vmatprep.subr.mxu0 0.0
  %2767 = vmatpush1.msra.mxu0 %v2348
  %2768 = vmatprep.subr.mxu0 0.0
  %2769 = vmatpush1.msra.mxu0 %v2349
  %2770 = vmatprep.subr.mxu0 0.0
  %2771 = vmatpush1.msra.mxu0 %v2350
  %2772 = vmatprep.subr.mxu0 0.0
  %2773 = vmatpush1.msra.mxu0 %v2351
  %2774 = vmatprep.subr.mxu0 0.0
  %2775 = vmatpush1.msra.mxu0 %v2352
  %2776 = vmatprep.subr.mxu0 0.0
  %2777 = vmatpush1.msra.mxu0 %v2353
  %2778 = vmatprep.subr.mxu0 0.0
  %2779 = vmatpush1.msra.mxu0 %v2354
  %2780 = vmatprep.subr.mxu0 0.0
  %2781 = vmatpush1.msra.mxu0 %v2355
  %2782 = vmatprep.subr.mxu0 0.0
  %2783 = vmatpush1.msra.mxu0 %v2356
  %2784 = vmatprep.subr.mxu0 0.0
  %2785 = vmatpush1.msra.mxu0 %v2357
  %2786 = vmatprep.subr.mxu0 0.0
  %2787 = vmatpush1.msra.mxu0 %v2358
  %2788 = vmatprep.subr.mxu0 0.0
  %2789 = vmatpush1.msra.mxu0 %v2359
  %2790 = vmatprep.subr.mxu0 0.0
  %2791 = vmatpush1.msra.mxu0 %v2360
  %2792 = vmatprep.subr.mxu0 0.0
  %2793 = vmatpush1.msra.mxu0 %v2361
  %2794 = vmatprep.subr.mxu0 0.0
  %2795 = vmatpush1.msra.mxu0 %v2362
  %2796 = vmatprep.subr.mxu0 0.0
  %2797 = vmatpush1.msra.mxu0 %v2363
  %2798 = vmatprep.subr.mxu0 0.0
  %2799 = vmatpush1.msra.mxu0 %v2364
  %2800 = vmatprep.subr.mxu0 0.0
  %2801 = vmatpush1.msra.mxu0 %v2365
  %2802 = vmatprep.subr.mxu0 0.0
  %2803 = vmatpush1.msra.mxu0 %v2366
  %2804 = vmatprep.subr.mxu0 0.0
  %2805 = vmatpush1.msra.mxu0 %v2367
  %2806 = vmatprep.subr.mxu0 0.0
  %2807 = vmatpush1.msra.mxu0 %v2368
  %2808 = vmatprep.subr.mxu0 0.0
  %2809 = vmatpush1.msra.mxu0 %v2369
  %2810 = vmatprep.subr.mxu0 0.0
  %2811 = vmatpush1.msra.mxu0 %v2370
  %2812 = vmatprep.subr.mxu0 0.0
  %2813 = vmatpush1.msra.mxu0 %v2371
  %2814 = vmatprep.subr.mxu0 0.0
  %2815 = vmatpush1.msra.mxu0 %v2372
  %2816 = vmatprep.mubr.f32.mxu0 %v2393
  %2817 = vmatmul.mubr.f32.gmra.mrb[0].mxu0 %v2179
  %v2818 = vpop.f32.mrb[0].mxu0
  %v2819 = vadd.f32 %v2749, %v2818
  %v2820 = vpop.f32.mrb[0].mxu0
  %2821 = vdwg.mxu0
  %2822 = vmatprep.subr.mxu0 0.0
  %2823 = vmatpush1.msra.mxu0 %v2373
  %2824 = vmatprep.subr.mxu0 0.0
  %2825 = vmatpush1.msra.mxu0 %v2374
  %2826 = vmatprep.subr.mxu0 0.0
  %2827 = vmatpush1.msra.mxu0 %v2375
  %2828 = vmatprep.subr.mxu0 0.0
  %2829 = vmatpush1.msra.mxu0 %v2376
  %2830 = vmatprep.subr.mxu0 0.0
  %2831 = vmatpush1.msra.mxu0 %v2377
  %2832 = vmatprep.subr.mxu0 0.0
  %2833 = vmatpush1.msra.mxu0 %v2378
  %2834 = vmatprep.subr.mxu0 0.0
  %2835 = vmatpush1.msra.mxu0 %v2379
  %2836 = vmatprep.subr.mxu0 0.0
  %2837 = vmatpush1.msra.mxu0 %v2380
  %2838 = vmatprep.subr.mxu0 0.0
  %2839 = vmatpush1.msra.mxu0 0.0
  %2840 = vmatprep.subr.mxu0 0.0
  %2841 = vmatpush1.msra.mxu0 0.0
  %2842 = vmatprep.subr.mxu0 0.0
  %2843 = vmatpush1.msra.mxu0 0.0
  %2844 = vmatprep.subr.mxu0 0.0
  %2845 = vmatpush1.msra.mxu0 0.0
  %2846 = vmatprep.subr.mxu0 0.0
  %2847 = vmatpush1.msra.mxu0 0.0
  %2848 = vmatprep.subr.mxu0 0.0
  %2849 = vmatpush1.msra.mxu0 0.0
  %2850 = vmatprep.subr.mxu0 0.0
  %2851 = vmatpush1.msra.mxu0 0.0
  %2852 = vmatprep.subr.mxu0 0.0
  %2853 = vmatpush1.msra.mxu0 0.0
  %2854 = vmatprep.subr.mxu0 0.0
  %2855 = vmatpush1.msra.mxu0 0.0
  %2856 = vmatprep.subr.mxu0 0.0
  %2857 = vmatpush1.msra.mxu0 0.0
  %2858 = vmatprep.subr.mxu0 0.0
  %2859 = vmatpush1.msra.mxu0 0.0
  %2860 = vmatprep.subr.mxu0 0.0
  %2861 = vmatpush1.msra.mxu0 0.0
  %2862 = vmatprep.subr.mxu0 0.0
  %2863 = vmatpush1.msra.mxu0 0.0
  %2864 = vmatprep.subr.mxu0 0.0
  %2865 = vmatpush1.msra.mxu0 0.0
  %2866 = vmatprep.subr.mxu0 0.0
  %2867 = vmatpush1.msra.mxu0 0.0
  %2868 = vmatprep.subr.mxu0 0.0
  %2869 = vmatpush1.msra.mxu0 0.0
  %2870 = vmatprep.subr.mxu0 0.0
  %2871 = vmatpush1.msra.mxu0 0.0
  %2872 = vmatprep.subr.mxu0 0.0
  %2873 = vmatpush1.msra.mxu0 0.0
  %2874 = vmatprep.subr.mxu0 0.0
  %2875 = vmatpush1.msra.mxu0 0.0
  %2876 = vmatprep.subr.mxu0 0.0
  %2877 = vmatpush1.msra.mxu0 0.0
  %2878 = vmatprep.subr.mxu0 0.0
  %2879 = vmatpush1.msra.mxu0 0.0
  %2880 = vmatprep.subr.mxu0 0.0
  %2881 = vmatpush1.msra.mxu0 0.0
  %2882 = vmatprep.subr.mxu0 0.0
  %2883 = vmatpush1.msra.mxu0 0.0
  %2884 = vmatprep.subr.mxu0 0.0
  %2885 = vmatpush1.msra.mxu0 0.0
  %2886 = vmatprep.mubr.f32.mxu0 0.0
  %2887 = vmatmul.mubr.f32.gmra.mrb[0].mxu0 %v2400
  %v2888 = vpop.f32.mrb[0].mxu0
  %v2889 = vadd.f32 %v2819, %v2888
  %v2890 = vpop.f32.mrb[0].mxu0
  %2891 = vdwg.mxu0
  %v2892 = vld [vmem:[%s18] sm:$0x1]
  %v2894 = vlaneseq
  %v2895 = vshrl.u32 %v2894, 7
  %v2896 = vsub.s32 0, %v2895
  %v2897 = vrot.slane %v2892, %v2896
  %v2899 = vmul.f32 %v2889, %v2897
  %v2900 = vld [vmem:[%s19] sm:$0x1]
  %v2902 = vlaneseq
  %v2903 = vshrl.u32 %v2902, 7
  %v2904 = vsub.s32 0, %v2903
  %v2905 = vrot.slane %v2900, %v2904
  %v2907 = vadd.f32 %v2899, %v2905
  %v2908 = vmax.f32 %v2907, 0.0
  %v2909 = vld [vmem:[%s20] sm:$0xff]
  %v2910 = vld [vmem:[%s20 + $0x8] sm:$0xff]
  %v2911 = vld [vmem:[%s20 + $0x10] sm:$0xff]
  %v2912 = vld [vmem:[%s20 + $0x18] sm:$0xff]
  %v2913 = vld [vmem:[%s20 + $0x20] sm:$0xff]
  %v2914 = vld [vmem:[%s20 + $0x28] sm:$0xff]
  %v2915 = vld [vmem:[%s20 + $0x30] sm:$0xff]
  %v2916 = vld [vmem:[%s20 + $0x38] sm:$0xff]
  %v2917 = vld [vmem:[%s20 + $0x40] sm:$0xff]
  %v2918 = vld [vmem:[%s20 + $0x48] sm:$0xff]
  %v2919 = vld [vmem:[%s20 + $0x50] sm:$0xff]
  %v2920 = vld [vmem:[%s20 + $0x58] sm:$0xff]
  %v2921 = vld [vmem:[%s20 + $0x60] sm:$0xff]
  %v2922 = vld [vmem:[%s20 + $0x68] sm:$0xff]
  %v2923 = vld [vmem:[%s20 + $0x70] sm:$0xff]
  %v2924 = vld [vmem:[%s20 + $0x78] sm:$0xff]
  %v2925 = vld [vmem:[%s21] sm:$0x1]
  %v2927 = vlaneseq
  %v2928 = vshrl.u32 %v2927, 7
  %v2929 = vsub.s32 0, %v2928
  %v2930 = vrot.slane %v2925, %v2929
  %2932 = vmatprep.subr.mxu0 0.0
  %2933 = vmatpush1.msra.mxu0 %v2909
  %2934 = vmatprep.subr.mxu0 0.0
  %2935 = vmatpush1.msra.mxu0 %v2910
  %2936 = vmatprep.subr.mxu0 0.0
  %2937 = vmatpush1.msra.mxu0 %v2911
  %2938 = vmatprep.subr.mxu0 0.0
  %2939 = vmatpush1.msra.mxu0 %v2912
  %2940 = vmatprep.subr.mxu0 0.0
  %2941 = vmatpush1.msra.mxu0 %v2913
  %2942 = vmatprep.subr.mxu0 0.0
  %2943 = vmatpush1.msra.mxu0 %v2914
  %2944 = vmatprep.subr.mxu0 0.0
  %2945 = vmatpush1.msra.mxu0 %v2915
  %2946 = vmatprep.subr.mxu0 0.0
  %2947 = vmatpush1.msra.mxu0 %v2916
  %2948 = vmatprep.subr.mxu0 0.0
  %2949 = vmatpush1.msra.mxu0 %v2917
  %2950 = vmatprep.subr.mxu0 0.0
  %2951 = vmatpush1.msra.mxu0 %v2918
  %2952 = vmatprep.subr.mxu0 0.0
  %2953 = vmatpush1.msra.mxu0 %v2919
  %2954 = vmatprep.subr.mxu0 0.0
  %2955 = vmatpush1.msra.mxu0 %v2920
  %2956 = vmatprep.subr.mxu0 0.0
  %2957 = vmatpush1.msra.mxu0 %v2921
  %2958 = vmatprep.subr.mxu0 0.0
  %2959 = vmatpush1.msra.mxu0 %v2922
  %2960 = vmatprep.subr.mxu0 0.0
  %2961 = vmatpush1.msra.mxu0 %v2923
  %2962 = vmatprep.subr.mxu0 0.0
  %2963 = vmatpush1.msra.mxu0 %v2924
  %2964 = vmatprep.subr.mxu0 0.0
  %2965 = vmatpush1.msra.mxu0 0.0
  %2966 = vmatprep.subr.mxu0 0.0
  %2967 = vmatpush1.msra.mxu0 0.0
  %2968 = vmatprep.subr.mxu0 0.0
  %2969 = vmatpush1.msra.mxu0 0.0
  %2970 = vmatprep.subr.mxu0 0.0
  %2971 = vmatpush1.msra.mxu0 0.0
  %2972 = vmatprep.subr.mxu0 0.0
  %2973 = vmatpush1.msra.mxu0 0.0
  %2974 = vmatprep.subr.mxu0 0.0
  %2975 = vmatpush1.msra.mxu0 0.0
  %2976 = vmatprep.subr.mxu0 0.0
  %2977 = vmatpush1.msra.mxu0 0.0
  %2978 = vmatprep.subr.mxu0 0.0
  %2979 = vmatpush1.msra.mxu0 0.0
  %2980 = vmatprep.subr.mxu0 0.0
  %2981 = vmatpush1.msra.mxu0 0.0
  %2982 = vmatprep.subr.mxu0 0.0
  %2983 = vmatpush1.msra.mxu0 0.0
  %2984 = vmatprep.subr.mxu0 0.0
  %2985 = vmatpush1.msra.mxu0 0.0
  %2986 = vmatprep.subr.mxu0 0.0
  %2987 = vmatpush1.msra.mxu0 0.0
  %2988 = vmatprep.subr.mxu0 0.0
  %2989 = vmatpush1.msra.mxu0 0.0
  %2990 = vmatprep.subr.mxu0 0.0
  %2991 = vmatpush1.msra.mxu0 0.0
  %2992 = vmatprep.subr.mxu0 0.0
  %2993 = vmatpush1.msra.mxu0 0.0
  %2994 = vmatprep.subr.mxu0 0.0
  %2995 = vmatpush1.msra.mxu0 0.0
  %2996 = vmatprep.mubr.f32.mxu0 0.0
  %2997 = vmatmul.mubr.f32.gmra.mrb[0].mxu0 %v2908
  %v2998 = vpop.f32.mrb[0].mxu0
  %v2999 = vadd.f32 %v2930, %v2998
  %v3000 = vpop.f32.mrb[0].mxu0
  %3001 = vdwg.mxu0
  %vm3002 = vcmask 11264
  %3003 = vst.msk [vmem:[%s22] sm:$0xf] %vm3002, %v2999
  // Predicated region
  $region90: #{a_call__.1} parent=0 // pred_check
    _
  $region91: #{a_call__.1} parent=0 // pred_check_branch
    %3005 = sbr.rel (0) target = $region93
  $region92: #{a_call__.1} parent=0 // pred_region
    _
  $region93: #{a_call__.1} parent=0 // pred_fallthru
    _
  // Predicated region
  $region94: #{a_call__.1} parent=0 // pred_check
    _
  $region95: #{a_call__.1} parent=0 // pred_check_branch
    %3007 = sbr.rel (0) target = $region97
  $region96: #{a_call__.1} parent=0 // pred_region
    _
  $region97: #{a_call__.1} parent=0 // pred_fallthru
    _

</llo_original>
